<compile_context>
chip_gen: v5e
topology: v5e:2x2
jax: 0.10.0
libtpu: 0.0.40
codegen_flags: <defaults>
</compile_context>

<pallas_src>
import functools

import jax
import jax.numpy as jnp
from jax.experimental import pallas as pl
from jax.experimental.pallas import tpu as pltpu


def _basic_block_kernel(xp_ref, w1_ref, c1_ref, w2_ref, c2_ref, o_ref, mid_ref,
                        *, H, W, Wc):
    """One batch element per grid step.

    xp_ref : (H+2, Wc+2, Cin)  zero-padded NHWC input slab
    w*_ref : (9, in, out)      3x3 conv taps (BN scale folded in), matmul operands
    c*_ref : (1, out)          folded BatchNorm bias
    o_ref  : (H, Wc, out)
    mid_ref: (H+2, Wc+2, out)  VMEM scratch: zero-padded conv1 activation
    """
    cin = xp_ref.shape[-1]
    p = o_ref.shape[-1]

    # ---- conv1 (3x3, pad 1) as 9 shifted (H*Wc, Cin) @ (Cin, P) MXU matmuls.
    acc = jnp.zeros((H * Wc, p), jnp.float32)
    for ky in range(3):
        for kx in range(3):
            patch = xp_ref[ky:ky + H, kx:kx + Wc, :].reshape(H * Wc, cin)
            acc = acc + jnp.dot(patch, w1_ref[3 * ky + kx],
                                preferred_element_type=jnp.float32)
    h = jnp.maximum(acc + c1_ref[...], 0.0)          # bn1 (scale in w1) + relu

    # Stage conv1 output into a zero-padded VMEM scratch so conv2's border taps
    # read zeros.  Only the O(H+W) border strips are zeroed (not the whole
    # slab); the right strip also wipes the width-alignment columns so they
    # cannot leak into the last valid output column.  Interior write must come
    # first so the right strip overwrites any alignment-column garbage.
    mid_ref[1:H + 1, 1:Wc + 1, :] = h.reshape(H, Wc, p)
    zrow = jnp.zeros((1, Wc + 2, p), jnp.float32)
    mid_ref[0:1, :, :] = zrow
    mid_ref[H + 1:H + 2, :, :] = zrow
    mid_ref[:, 0:1, :] = jnp.zeros((H + 2, 1, p), jnp.float32)
    mid_ref[:, W + 1:Wc + 2, :] = jnp.zeros((H + 2, Wc + 1 - W, p), jnp.float32)

    # ---- conv2 (3x3, pad 1) + bn2 + identity residual + relu.
    acc2 = jnp.zeros((H * Wc, p), jnp.float32)
    for ky in range(3):
        for kx in range(3):
            patch = mid_ref[ky:ky + H, kx:kx + Wc, :].reshape(H * Wc, p)
            acc2 = acc2 + jnp.dot(patch, w2_ref[3 * ky + kx],
                                  preferred_element_type=jnp.float32)
    y = acc2 + c2_ref[...]                                     # bn2 (scale in w2)
    y = y + xp_ref[1:H + 1, 1:Wc + 1, :].reshape(H * Wc, cin)  # residual (Cin==P)
    o_ref[...] = jnp.maximum(y, 0.0).reshape(H, Wc, p).astype(o_ref.dtype)


def basic_block_v1b(x, conv1_w, bn1, conv2_w, bn2, *, eps=1e-5):
    """BasicBlockV1b forward (stride=1, dilation=1, downsample=None).

    x        : (N, Cin, H, W) float32, NCHW (PyTorch layout)
    conv*_w  : PyTorch OIHW 3x3 conv weights
    bn1, bn2 : (gamma, beta, running_mean, running_var), each shape (planes,)
    Returns  : (N, planes, H, W) float32
    """
    N, Cin, H, W = x.shape
    P = conv1_w.shape[0]
    assert conv1_w.shape == (P, Cin, 3, 3) and conv2_w.shape == (P, P, 3, 3)
    # TODO(synk): stride>1 / dilation>1 / downsample branch of BasicBlockV1b is
    # not implemented (module defaults: stride=1, dilation=1, downsample=None);
    # BatchNorm is inference-mode (running statistics folded into scale/bias).
    assert Cin == P, "identity residual requires inplanes == planes"

    g1, be1, m1, v1 = bn1
    g2, be2, m2, v2 = bn2
    s1 = g1 / jnp.sqrt(v1 + eps); c1 = be1 - m1 * s1   # folded BN (inference)
    s2 = g2 / jnp.sqrt(v2 + eps); c2 = be2 - m2 * s2

    # Fold BN scale directly into the conv weights (per output channel) so the
    # kernel only adds a bias.
    w1f = conv1_w * s1[:, None, None, None]
    w2f = conv2_w * s2[:, None, None, None]

    # NCHW -> NHWC: channels on the lane axis, width on sublanes.
    x_nhwc = jnp.transpose(x, (0, 2, 3, 1))
    Wc = ((W + 7) // 8) * 8                   # sublane-aligned compute width
    # 1-pixel zero pad for the 3x3 convs; extra zero columns on the right make
    # the compute width a multiple of 8 (extra output columns are discarded).
    xp = jnp.pad(x_nhwc, ((0, 0), (1, 1), (1, 1 + (Wc - W)), (0, 0)))

    # OIHW -> (9, in, out): tap k = 3*ky + kx is a (Cin, P) matmul operand.
    w1 = jnp.transpose(w1f, (2, 3, 1, 0)).reshape(9, Cin, P)
    w2 = jnp.transpose(w2f, (2, 3, 1, 0)).reshape(9, P, P)
    c1 = c1.reshape(1, P)
    c2 = c2.reshape(1, P)

    kernel = functools.partial(_basic_block_kernel, H=H, W=W, Wc=Wc)

    flops = 2 * N * H * Wc * 9 * (Cin * P + P * P)
    bytes_accessed = (xp.size + N * H * Wc * P + w1.size + w2.size + 2 * P) * 4

    resident3 = lambda n: (0, 0, 0)   # weights: fetched once, stay VMEM-resident
    resident2 = lambda n: (0, 0)

    out_nhwc = pl.pallas_call(
        kernel,
        out_shape=jax.ShapeDtypeStruct((N, H, Wc, P), jnp.float32),
        grid=(N,),
        in_specs=[
            pl.BlockSpec((None, H + 2, Wc + 2, Cin), lambda n: (n, 0, 0, 0)),
            pl.BlockSpec((9, Cin, P), resident3),
            pl.BlockSpec((1, P), resident2),
            pl.BlockSpec((9, P, P), resident3),
            pl.BlockSpec((1, P), resident2),
        ],
        out_specs=pl.BlockSpec((None, H, Wc, P), lambda n: (n, 0, 0, 0)),
        scratch_shapes=[pltpu.VMEM((H + 2, Wc + 2, P), jnp.float32)],
        compiler_params=pltpu.CompilerParams(
            dimension_semantics=("parallel",)),
        cost_estimate=pl.CostEstimate(
            flops=flops, transcendentals=0, bytes_accessed=bytes_accessed),
    )(xp, w1, c1, w2, c2)

    out = out_nhwc[:, :, :W, :]                   # drop alignment columns
    return jnp.transpose(out, (0, 3, 1, 2))       # back to NCHW


def _reference(x, w1, bn1, w2, bn2, eps=1e-5):
    """Plain-JAX reference mirroring the PyTorch forward (inference-mode BN)."""
    def bn(y, p):
        g, b, m, v = p
        s = g / jnp.sqrt(v + eps)
        return y * s[None, :, None, None] + (b - m * s)[None, :, None, None]

    def conv(y, w):
        return jax.lax.conv_general_dilated(
            y, w, window_strides=(1, 1), padding=((1, 1), (1, 1)),
            dimension_numbers=("NCHW", "OIHW", "NCHW"))

    out = jax.nn.relu(bn(conv(x, w1), bn1))
    out = bn(conv(out, w2), bn2)
    return jax.nn.relu(out + x)


if __name__ == "__main__":
    # Small deterministic example: inplanes = planes = 4, batch 2, 16x16 spatial.
    N, C, H, W = 2, 4, 16, 16

    key = jax.random.PRNGKey(0)
    ks = jax.random.split(key, 12)

    x = jax.random.normal(ks[0], (N, C, H, W), dtype=jnp.float32)
    w1 = jax.random.normal(ks[1], (C, C, 3, 3), dtype=jnp.float32) * 0.15
    w2 = jax.random.normal(ks[2], (C, C, 3, 3), dtype=jnp.float32) * 0.15
    g1 = 1.0 + 0.1 * jax.random.normal(ks[3], (C,), dtype=jnp.float32)
    b1 = 0.1 * jax.random.normal(ks[4], (C,), dtype=jnp.float32)
    m1 = 0.1 * jax.random.normal(ks[5], (C,), dtype=jnp.float32)
    v1 = jax.random.uniform(ks[6], (C,), jnp.float32, minval=0.5, maxval=1.5)
    g2 = 1.0 + 0.1 * jax.random.normal(ks[7], (C,), dtype=jnp.float32)
    b2 = 0.1 * jax.random.normal(ks[8], (C,), dtype=jnp.float32)
    m2 = 0.1 * jax.random.normal(ks[9], (C,), dtype=jnp.float32)
    v2 = jax.random.uniform(ks[10], (C,), jnp.float32, minval=0.5, maxval=1.5)

    bn1 = (g1, b1, m1, v1)
    bn2 = (g2, b2, m2, v2)

    out = basic_block_v1b(x, w1, bn1, w2, bn2)
    out = jax.block_until_ready(out)

    ref = _reference(x, w1, bn1, w2, bn2)
    assert out.shape == (N, C, H, W)
    # Both the Pallas kernel and the XLA reference run the f32 convolutions on
    # the MXU with JAX's default matmul precision (bf16-mantissa input passes,
    # f32 accumulation); the tolerance covers that rounding mode.
    assert jnp.allclose(out, ref, atol=3e-2, rtol=3e-2), \
        f"max abs diff {jnp.max(jnp.abs(out - ref))}"

    # Second check: width NOT a multiple of 8 exercises the alignment-column
    # handling in the kernel (extra compute columns must not leak into output).
    W2 = 12
    x2 = jax.random.normal(ks[11], (N, C, H, W2), dtype=jnp.float32)
    out2 = jax.block_until_ready(basic_block_v1b(x2, w1, bn1, w2, bn2))
    ref2 = _reference(x2, w1, bn1, w2, bn2)
    assert out2.shape == (N, C, H, W2)
    assert jnp.allclose(out2, ref2, atol=3e-2, rtol=3e-2), \
        f"max abs diff {jnp.max(jnp.abs(out2 - ref2))}"

    print("KERNEL_OK")
</pallas_src>

<mosaic_0001>
module attributes {stable_mosaic.version = 11 : i64} {
  func.func @_basic_block_kernel(%arg0: i32, %arg1: memref<1x18x18x4xf32, #tpu.memory_space<vmem>>, %arg2: memref<9x4x4xf32, #tpu.memory_space<vmem>>, %arg3: memref<1x4xf32, #tpu.memory_space<vmem>>, %arg4: memref<9x4x4xf32, #tpu.memory_space<vmem>>, %arg5: memref<1x4xf32, #tpu.memory_space<vmem>>, %arg6: memref<1x16x16x4xf32, #tpu.memory_space<vmem>>, %arg7: memref<18x18x4xf32, #tpu.memory_space<vmem>>) attributes {dimension_semantics = [#tpu.dimension_semantics<parallel>], iteration_bounds = array<i64: 2>, scalar_prefetch = 0 : i64, scratch_operands = 1 : i64, tpu.core_type = #tpu.core_type<tc>, window_params = [{transform_indices = @transform_0, window_bounds = array<i64: 1, 18, 18, 4>}, {pipeline_mode = #tpu.pipeline_mode<synchronous>, transform_indices = @transform_1, window_bounds = array<i64: 9, 4, 4>}, {pipeline_mode = #tpu.pipeline_mode<synchronous>, transform_indices = @transform_2, window_bounds = array<i64: 1, 4>}, {pipeline_mode = #tpu.pipeline_mode<synchronous>, transform_indices = @transform_3, window_bounds = array<i64: 9, 4, 4>}, {pipeline_mode = #tpu.pipeline_mode<synchronous>, transform_indices = @transform_4, window_bounds = array<i64: 1, 4>}, {transform_indices = @transform_5, window_bounds = array<i64: 1, 16, 16, 4>}]} {
    %cst = arith.constant 0.000000e+00 : f32
    %0 = vector.broadcast %cst : f32 to vector<256x4xf32>
    %c0 = arith.constant 0 : index
    %c0_0 = arith.constant 0 : index
    %c0_1 = arith.constant 0 : index
    %c0_2 = arith.constant 0 : index
    %1 = vector.load %arg1[%c0, %c0_0, %c0_1, %c0_2] : memref<1x18x18x4xf32, #tpu.memory_space<vmem>>, vector<1x16x16x4xf32>
    %2 = vector.shape_cast %1 : vector<1x16x16x4xf32> to vector<16x16x4xf32>
    %3 = vector.shape_cast %2 : vector<16x16x4xf32> to vector<256x4xf32>
    %c0_3 = arith.constant 0 : index
    %c0_4 = arith.constant 0 : index
    %c0_5 = arith.constant 0 : index
    %4 = vector.load %arg2[%c0_3, %c0_4, %c0_5] : memref<9x4x4xf32, #tpu.memory_space<vmem>>, vector<1x4x4xf32>
    %5 = vector.shape_cast %4 : vector<1x4x4xf32> to vector<4x4xf32>
    %cst_6 = arith.constant dense<0.000000e+00> : vector<256x4xf32>
    %6 = tpu.matmul %3, %5, %cst_6 {dimension_numbers = #tpu.dot_dimension_numbers<[1], [0], [0], [1], [0, 0, 1, 1], [], []>} : vector<256x4xf32>, vector<4x4xf32>, vector<256x4xf32> -> vector<256x4xf32>
    %7 = arith.addf %0, %6 : vector<256x4xf32>
    %c0_7 = arith.constant 0 : index
    %c0_8 = arith.constant 0 : index
    %c1 = arith.constant 1 : index
    %c0_9 = arith.constant 0 : index
    %8 = vector.load %arg1[%c0_7, %c0_8, %c1, %c0_9] : memref<1x18x18x4xf32, #tpu.memory_space<vmem>>, vector<1x16x16x4xf32>
    %9 = vector.shape_cast %8 : vector<1x16x16x4xf32> to vector<16x16x4xf32>
    %10 = vector.shape_cast %9 : vector<16x16x4xf32> to vector<256x4xf32>
    %c1_10 = arith.constant 1 : index
    %c0_11 = arith.constant 0 : index
    %c0_12 = arith.constant 0 : index
    %11 = vector.load %arg2[%c1_10, %c0_11, %c0_12] : memref<9x4x4xf32, #tpu.memory_space<vmem>>, vector<1x4x4xf32>
    %12 = vector.shape_cast %11 : vector<1x4x4xf32> to vector<4x4xf32>
    %cst_13 = arith.constant dense<0.000000e+00> : vector<256x4xf32>
    %13 = tpu.matmul %10, %12, %cst_13 {dimension_numbers = #tpu.dot_dimension_numbers<[1], [0], [0], [1], [0, 0, 1, 1], [], []>} : vector<256x4xf32>, vector<4x4xf32>, vector<256x4xf32> -> vector<256x4xf32>
    %14 = arith.addf %7, %13 : vector<256x4xf32>
    %c0_14 = arith.constant 0 : index
    %c0_15 = arith.constant 0 : index
    %c2 = arith.constant 2 : index
    %c0_16 = arith.constant 0 : index
    %15 = vector.load %arg1[%c0_14, %c0_15, %c2, %c0_16] : memref<1x18x18x4xf32, #tpu.memory_space<vmem>>, vector<1x16x16x4xf32>
    %16 = vector.shape_cast %15 : vector<1x16x16x4xf32> to vector<16x16x4xf32>
    %17 = vector.shape_cast %16 : vector<16x16x4xf32> to vector<256x4xf32>
    %c2_17 = arith.constant 2 : index
    %c0_18 = arith.constant 0 : index
    %c0_19 = arith.constant 0 : index
    %18 = vector.load %arg2[%c2_17, %c0_18, %c0_19] : memref<9x4x4xf32, #tpu.memory_space<vmem>>, vector<1x4x4xf32>
    %19 = vector.shape_cast %18 : vector<1x4x4xf32> to vector<4x4xf32>
    %cst_20 = arith.constant dense<0.000000e+00> : vector<256x4xf32>
    %20 = tpu.matmul %17, %19, %cst_20 {dimension_numbers = #tpu.dot_dimension_numbers<[1], [0], [0], [1], [0, 0, 1, 1], [], []>} : vector<256x4xf32>, vector<4x4xf32>, vector<256x4xf32> -> vector<256x4xf32>
    %21 = arith.addf %14, %20 : vector<256x4xf32>
    %c0_21 = arith.constant 0 : index
    %c1_22 = arith.constant 1 : index
    %c0_23 = arith.constant 0 : index
    %c0_24 = arith.constant 0 : index
    %22 = vector.load %arg1[%c0_21, %c1_22, %c0_23, %c0_24] : memref<1x18x18x4xf32, #tpu.memory_space<vmem>>, vector<1x16x16x4xf32>
    %23 = vector.shape_cast %22 : vector<1x16x16x4xf32> to vector<16x16x4xf32>
    %24 = vector.shape_cast %23 : vector<16x16x4xf32> to vector<256x4xf32>
    %c3 = arith.constant 3 : index
    %c0_25 = arith.constant 0 : index
    %c0_26 = arith.constant 0 : index
    %25 = vector.load %arg2[%c3, %c0_25, %c0_26] : memref<9x4x4xf32, #tpu.memory_space<vmem>>, vector<1x4x4xf32>
    %26 = vector.shape_cast %25 : vector<1x4x4xf32> to vector<4x4xf32>
    %cst_27 = arith.constant dense<0.000000e+00> : vector<256x4xf32>
    %27 = tpu.matmul %24, %26, %cst_27 {dimension_numbers = #tpu.dot_dimension_numbers<[1], [0], [0], [1], [0, 0, 1, 1], [], []>} : vector<256x4xf32>, vector<4x4xf32>, vector<256x4xf32> -> vector<256x4xf32>
    %28 = arith.addf %21, %27 : vector<256x4xf32>
    %c0_28 = arith.constant 0 : index
    %c1_29 = arith.constant 1 : index
    %c1_30 = arith.constant 1 : index
    %c0_31 = arith.constant 0 : index
    %29 = vector.load %arg1[%c0_28, %c1_29, %c1_30, %c0_31] : memref<1x18x18x4xf32, #tpu.memory_space<vmem>>, vector<1x16x16x4xf32>
    %30 = vector.shape_cast %29 : vector<1x16x16x4xf32> to vector<16x16x4xf32>
    %31 = vector.shape_cast %30 : vector<16x16x4xf32> to vector<256x4xf32>
    %c4 = arith.constant 4 : index
    %c0_32 = arith.constant 0 : index
    %c0_33 = arith.constant 0 : index
    %32 = vector.load %arg2[%c4, %c0_32, %c0_33] : memref<9x4x4xf32, #tpu.memory_space<vmem>>, vector<1x4x4xf32>
    %33 = vector.shape_cast %32 : vector<1x4x4xf32> to vector<4x4xf32>
    %cst_34 = arith.constant dense<0.000000e+00> : vector<256x4xf32>
    %34 = tpu.matmul %31, %33, %cst_34 {dimension_numbers = #tpu.dot_dimension_numbers<[1], [0], [0], [1], [0, 0, 1, 1], [], []>} : vector<256x4xf32>, vector<4x4xf32>, vector<256x4xf32> -> vector<256x4xf32>
    %35 = arith.addf %28, %34 : vector<256x4xf32>
    %c0_35 = arith.constant 0 : index
    %c1_36 = arith.constant 1 : index
    %c2_37 = arith.constant 2 : index
    %c0_38 = arith.constant 0 : index
    %36 = vector.load %arg1[%c0_35, %c1_36, %c2_37, %c0_38] : memref<1x18x18x4xf32, #tpu.memory_space<vmem>>, vector<1x16x16x4xf32>
    %37 = vector.shape_cast %36 : vector<1x16x16x4xf32> to vector<16x16x4xf32>
    %38 = vector.shape_cast %37 : vector<16x16x4xf32> to vector<256x4xf32>
    %c5 = arith.constant 5 : index
    %c0_39 = arith.constant 0 : index
    %c0_40 = arith.constant 0 : index
    %39 = vector.load %arg2[%c5, %c0_39, %c0_40] : memref<9x4x4xf32, #tpu.memory_space<vmem>>, vector<1x4x4xf32>
    %40 = vector.shape_cast %39 : vector<1x4x4xf32> to vector<4x4xf32>
    %cst_41 = arith.constant dense<0.000000e+00> : vector<256x4xf32>
    %41 = tpu.matmul %38, %40, %cst_41 {dimension_numbers = #tpu.dot_dimension_numbers<[1], [0], [0], [1], [0, 0, 1, 1], [], []>} : vector<256x4xf32>, vector<4x4xf32>, vector<256x4xf32> -> vector<256x4xf32>
    %42 = arith.addf %35, %41 : vector<256x4xf32>
    %c0_42 = arith.constant 0 : index
    %c2_43 = arith.constant 2 : index
    %c0_44 = arith.constant 0 : index
    %c0_45 = arith.constant 0 : index
    %43 = vector.load %arg1[%c0_42, %c2_43, %c0_44, %c0_45] : memref<1x18x18x4xf32, #tpu.memory_space<vmem>>, vector<1x16x16x4xf32>
    %44 = vector.shape_cast %43 : vector<1x16x16x4xf32> to vector<16x16x4xf32>
    %45 = vector.shape_cast %44 : vector<16x16x4xf32> to vector<256x4xf32>
    %c6 = arith.constant 6 : index
    %c0_46 = arith.constant 0 : index
    %c0_47 = arith.constant 0 : index
    %46 = vector.load %arg2[%c6, %c0_46, %c0_47] : memref<9x4x4xf32, #tpu.memory_space<vmem>>, vector<1x4x4xf32>
    %47 = vector.shape_cast %46 : vector<1x4x4xf32> to vector<4x4xf32>
    %cst_48 = arith.constant dense<0.000000e+00> : vector<256x4xf32>
    %48 = tpu.matmul %45, %47, %cst_48 {dimension_numbers = #tpu.dot_dimension_numbers<[1], [0], [0], [1], [0, 0, 1, 1], [], []>} : vector<256x4xf32>, vector<4x4xf32>, vector<256x4xf32> -> vector<256x4xf32>
    %49 = arith.addf %42, %48 : vector<256x4xf32>
    %c0_49 = arith.constant 0 : index
    %c2_50 = arith.constant 2 : index
    %c1_51 = arith.constant 1 : index
    %c0_52 = arith.constant 0 : index
    %50 = vector.load %arg1[%c0_49, %c2_50, %c1_51, %c0_52] : memref<1x18x18x4xf32, #tpu.memory_space<vmem>>, vector<1x16x16x4xf32>
    %51 = vector.shape_cast %50 : vector<1x16x16x4xf32> to vector<16x16x4xf32>
    %52 = vector.shape_cast %51 : vector<16x16x4xf32> to vector<256x4xf32>
    %c7 = arith.constant 7 : index
    %c0_53 = arith.constant 0 : index
    %c0_54 = arith.constant 0 : index
    %53 = vector.load %arg2[%c7, %c0_53, %c0_54] : memref<9x4x4xf32, #tpu.memory_space<vmem>>, vector<1x4x4xf32>
    %54 = vector.shape_cast %53 : vector<1x4x4xf32> to vector<4x4xf32>
    %cst_55 = arith.constant dense<0.000000e+00> : vector<256x4xf32>
    %55 = tpu.matmul %52, %54, %cst_55 {dimension_numbers = #tpu.dot_dimension_numbers<[1], [0], [0], [1], [0, 0, 1, 1], [], []>} : vector<256x4xf32>, vector<4x4xf32>, vector<256x4xf32> -> vector<256x4xf32>
    %56 = arith.addf %49, %55 : vector<256x4xf32>
    %c0_56 = arith.constant 0 : index
    %c2_57 = arith.constant 2 : index
    %c2_58 = arith.constant 2 : index
    %c0_59 = arith.constant 0 : index
    %57 = vector.load %arg1[%c0_56, %c2_57, %c2_58, %c0_59] : memref<1x18x18x4xf32, #tpu.memory_space<vmem>>, vector<1x16x16x4xf32>
    %58 = vector.shape_cast %57 : vector<1x16x16x4xf32> to vector<16x16x4xf32>
    %59 = vector.shape_cast %58 : vector<16x16x4xf32> to vector<256x4xf32>
    %c8 = arith.constant 8 : index
    %c0_60 = arith.constant 0 : index
    %c0_61 = arith.constant 0 : index
    %60 = vector.load %arg2[%c8, %c0_60, %c0_61] : memref<9x4x4xf32, #tpu.memory_space<vmem>>, vector<1x4x4xf32>
    %61 = vector.shape_cast %60 : vector<1x4x4xf32> to vector<4x4xf32>
    %cst_62 = arith.constant dense<0.000000e+00> : vector<256x4xf32>
    %62 = tpu.matmul %59, %61, %cst_62 {dimension_numbers = #tpu.dot_dimension_numbers<[1], [0], [0], [1], [0, 0, 1, 1], [], []>} : vector<256x4xf32>, vector<4x4xf32>, vector<256x4xf32> -> vector<256x4xf32>
    %63 = arith.addf %56, %62 : vector<256x4xf32>
    %c0_63 = arith.constant 0 : index
    %c0_64 = arith.constant 0 : index
    %64 = vector.load %arg3[%c0_63, %c0_64] : memref<1x4xf32, #tpu.memory_space<vmem>>, vector<1x4xf32>
    %65 = vector.broadcast %64 : vector<1x4xf32> to vector<256x4xf32>
    %66 = arith.addf %63, %65 : vector<256x4xf32>
    %cst_65 = arith.constant 0.000000e+00 : f32
    %67 = vector.broadcast %cst_65 : f32 to vector<256x4xf32>
    %68 = arith.maximumf %66, %67 : vector<256x4xf32>
    %69 = vector.shape_cast %68 : vector<256x4xf32> to vector<16x16x4xf32>
    %c1_66 = arith.constant 1 : index
    %c1_67 = arith.constant 1 : index
    %c0_68 = arith.constant 0 : index
    %70 = vector.load %arg7[%c1_66, %c1_67, %c0_68] : memref<18x18x4xf32, #tpu.memory_space<vmem>>, vector<16x16x4xf32>
    tpu.vector_store %arg7[%c1_66, %c1_67, %c0_68], %69 {strides = array<i32>} : memref<18x18x4xf32, #tpu.memory_space<vmem>>, vector<16x16x4xf32>,
    %cst_69 = arith.constant 0.000000e+00 : f32
    %71 = vector.broadcast %cst_69 : f32 to vector<1x18x4xf32>
    %c0_70 = arith.constant 0 : index
    %c0_71 = arith.constant 0 : index
    %c0_72 = arith.constant 0 : index
    %72 = vector.load %arg7[%c0_70, %c0_71, %c0_72] : memref<18x18x4xf32, #tpu.memory_space<vmem>>, vector<1x18x4xf32>
    tpu.vector_store %arg7[%c0_70, %c0_71, %c0_72], %71 {strides = array<i32>} : memref<18x18x4xf32, #tpu.memory_space<vmem>>, vector<1x18x4xf32>,
    %c17 = arith.constant 17 : index
    %c0_73 = arith.constant 0 : index
    %c0_74 = arith.constant 0 : index
    %73 = vector.load %arg7[%c17, %c0_73, %c0_74] : memref<18x18x4xf32, #tpu.memory_space<vmem>>, vector<1x18x4xf32>
    tpu.vector_store %arg7[%c17, %c0_73, %c0_74], %71 {strides = array<i32>} : memref<18x18x4xf32, #tpu.memory_space<vmem>>, vector<1x18x4xf32>,
    %cst_75 = arith.constant 0.000000e+00 : f32
    %74 = vector.broadcast %cst_75 : f32 to vector<18x1x4xf32>
    %c0_76 = arith.constant 0 : index
    %c0_77 = arith.constant 0 : index
    %c0_78 = arith.constant 0 : index
    %75 = vector.load %arg7[%c0_76, %c0_77, %c0_78] : memref<18x18x4xf32, #tpu.memory_space<vmem>>, vector<18x1x4xf32>
    tpu.vector_store %arg7[%c0_76, %c0_77, %c0_78], %74 {strides = array<i32>} : memref<18x18x4xf32, #tpu.memory_space<vmem>>, vector<18x1x4xf32>,
    %cst_79 = arith.constant 0.000000e+00 : f32
    %76 = vector.broadcast %cst_79 : f32 to vector<18x1x4xf32>
    %c0_80 = arith.constant 0 : index
    %c17_81 = arith.constant 17 : index
    %c0_82 = arith.constant 0 : index
    %77 = vector.load %arg7[%c0_80, %c17_81, %c0_82] : memref<18x18x4xf32, #tpu.memory_space<vmem>>, vector<18x1x4xf32>
    tpu.vector_store %arg7[%c0_80, %c17_81, %c0_82], %76 {strides = array<i32>} : memref<18x18x4xf32, #tpu.memory_space<vmem>>, vector<18x1x4xf32>,
    %cst_83 = arith.constant 0.000000e+00 : f32
    %78 = vector.broadcast %cst_83 : f32 to vector<256x4xf32>
    %c0_84 = arith.constant 0 : index
    %c0_85 = arith.constant 0 : index
    %c0_86 = arith.constant 0 : index
    %79 = vector.load %arg7[%c0_84, %c0_85, %c0_86] : memref<18x18x4xf32, #tpu.memory_space<vmem>>, vector<16x16x4xf32>
    %80 = vector.shape_cast %79 : vector<16x16x4xf32> to vector<256x4xf32>
    %c0_87 = arith.constant 0 : index
    %c0_88 = arith.constant 0 : index
    %c0_89 = arith.constant 0 : index
    %81 = vector.load %arg4[%c0_87, %c0_88, %c0_89] : memref<9x4x4xf32, #tpu.memory_space<vmem>>, vector<1x4x4xf32>
    %82 = vector.shape_cast %81 : vector<1x4x4xf32> to vector<4x4xf32>
    %cst_90 = arith.constant dense<0.000000e+00> : vector<256x4xf32>
    %83 = tpu.matmul %80, %82, %cst_90 {dimension_numbers = #tpu.dot_dimension_numbers<[1], [0], [0], [1], [0, 0, 1, 1], [], []>} : vector<256x4xf32>, vector<4x4xf32>, vector<256x4xf32> -> vector<256x4xf32>
    %84 = arith.addf %78, %83 : vector<256x4xf32>
    %c0_91 = arith.constant 0 : index
    %c1_92 = arith.constant 1 : index
    %c0_93 = arith.constant 0 : index
    %85 = vector.load %arg7[%c0_91, %c1_92, %c0_93] : memref<18x18x4xf32, #tpu.memory_space<vmem>>, vector<16x16x4xf32>
    %86 = vector.shape_cast %85 : vector<16x16x4xf32> to vector<256x4xf32>
    %c1_94 = arith.constant 1 : index
    %c0_95 = arith.constant 0 : index
    %c0_96 = arith.constant 0 : index
    %87 = vector.load %arg4[%c1_94, %c0_95, %c0_96] : memref<9x4x4xf32, #tpu.memory_space<vmem>>, vector<1x4x4xf32>
    %88 = vector.shape_cast %87 : vector<1x4x4xf32> to vector<4x4xf32>
    %cst_97 = arith.constant dense<0.000000e+00> : vector<256x4xf32>
    %89 = tpu.matmul %86, %88, %cst_97 {dimension_numbers = #tpu.dot_dimension_numbers<[1], [0], [0], [1], [0, 0, 1, 1], [], []>} : vector<256x4xf32>, vector<4x4xf32>, vector<256x4xf32> -> vector<256x4xf32>
    %90 = arith.addf %84, %89 : vector<256x4xf32>
    %c0_98 = arith.constant 0 : index
    %c2_99 = arith.constant 2 : index
    %c0_100 = arith.constant 0 : index
    %91 = vector.load %arg7[%c0_98, %c2_99, %c0_100] : memref<18x18x4xf32, #tpu.memory_space<vmem>>, vector<16x16x4xf32>
    %92 = vector.shape_cast %91 : vector<16x16x4xf32> to vector<256x4xf32>
    %c2_101 = arith.constant 2 : index
    %c0_102 = arith.constant 0 : index
    %c0_103 = arith.constant 0 : index
    %93 = vector.load %arg4[%c2_101, %c0_102, %c0_103] : memref<9x4x4xf32, #tpu.memory_space<vmem>>, vector<1x4x4xf32>
    %94 = vector.shape_cast %93 : vector<1x4x4xf32> to vector<4x4xf32>
    %cst_104 = arith.constant dense<0.000000e+00> : vector<256x4xf32>
    %95 = tpu.matmul %92, %94, %cst_104 {dimension_numbers = #tpu.dot_dimension_numbers<[1], [0], [0], [1], [0, 0, 1, 1], [], []>} : vector<256x4xf32>, vector<4x4xf32>, vector<256x4xf32> -> vector<256x4xf32>
    %96 = arith.addf %90, %95 : vector<256x4xf32>
    %c1_105 = arith.constant 1 : index
    %c0_106 = arith.constant 0 : index
    %c0_107 = arith.constant 0 : index
    %97 = vector.load %arg7[%c1_105, %c0_106, %c0_107] : memref<18x18x4xf32, #tpu.memory_space<vmem>>, vector<16x16x4xf32>
    %98 = vector.shape_cast %97 : vector<16x16x4xf32> to vector<256x4xf32>
    %c3_108 = arith.constant 3 : index
    %c0_109 = arith.constant 0 : index
    %c0_110 = arith.constant 0 : index
    %99 = vector.load %arg4[%c3_108, %c0_109, %c0_110] : memref<9x4x4xf32, #tpu.memory_space<vmem>>, vector<1x4x4xf32>
    %100 = vector.shape_cast %99 : vector<1x4x4xf32> to vector<4x4xf32>
    %cst_111 = arith.constant dense<0.000000e+00> : vector<256x4xf32>
    %101 = tpu.matmul %98, %100, %cst_111 {dimension_numbers = #tpu.dot_dimension_numbers<[1], [0], [0], [1], [0, 0, 1, 1], [], []>} : vector<256x4xf32>, vector<4x4xf32>, vector<256x4xf32> -> vector<256x4xf32>
    %102 = arith.addf %96, %101 : vector<256x4xf32>
    %c1_112 = arith.constant 1 : index
    %c1_113 = arith.constant 1 : index
    %c0_114 = arith.constant 0 : index
    %103 = vector.load %arg7[%c1_112, %c1_113, %c0_114] : memref<18x18x4xf32, #tpu.memory_space<vmem>>, vector<16x16x4xf32>
    %104 = vector.shape_cast %103 : vector<16x16x4xf32> to vector<256x4xf32>
    %c4_115 = arith.constant 4 : index
    %c0_116 = arith.constant 0 : index
    %c0_117 = arith.constant 0 : index
    %105 = vector.load %arg4[%c4_115, %c0_116, %c0_117] : memref<9x4x4xf32, #tpu.memory_space<vmem>>, vector<1x4x4xf32>
    %106 = vector.shape_cast %105 : vector<1x4x4xf32> to vector<4x4xf32>
    %cst_118 = arith.constant dense<0.000000e+00> : vector<256x4xf32>
    %107 = tpu.matmul %104, %106, %cst_118 {dimension_numbers = #tpu.dot_dimension_numbers<[1], [0], [0], [1], [0, 0, 1, 1], [], []>} : vector<256x4xf32>, vector<4x4xf32>, vector<256x4xf32> -> vector<256x4xf32>
    %108 = arith.addf %102, %107 : vector<256x4xf32>
    %c1_119 = arith.constant 1 : index
    %c2_120 = arith.constant 2 : index
    %c0_121 = arith.constant 0 : index
    %109 = vector.load %arg7[%c1_119, %c2_120, %c0_121] : memref<18x18x4xf32, #tpu.memory_space<vmem>>, vector<16x16x4xf32>
    %110 = vector.shape_cast %109 : vector<16x16x4xf32> to vector<256x4xf32>
    %c5_122 = arith.constant 5 : index
    %c0_123 = arith.constant 0 : index
    %c0_124 = arith.constant 0 : index
    %111 = vector.load %arg4[%c5_122, %c0_123, %c0_124] : memref<9x4x4xf32, #tpu.memory_space<vmem>>, vector<1x4x4xf32>
    %112 = vector.shape_cast %111 : vector<1x4x4xf32> to vector<4x4xf32>
    %cst_125 = arith.constant dense<0.000000e+00> : vector<256x4xf32>
    %113 = tpu.matmul %110, %112, %cst_125 {dimension_numbers = #tpu.dot_dimension_numbers<[1], [0], [0], [1], [0, 0, 1, 1], [], []>} : vector<256x4xf32>, vector<4x4xf32>, vector<256x4xf32> -> vector<256x4xf32>
    %114 = arith.addf %108, %113 : vector<256x4xf32>
    %c2_126 = arith.constant 2 : index
    %c0_127 = arith.constant 0 : index
    %c0_128 = arith.constant 0 : index
    %115 = vector.load %arg7[%c2_126, %c0_127, %c0_128] : memref<18x18x4xf32, #tpu.memory_space<vmem>>, vector<16x16x4xf32>
    %116 = vector.shape_cast %115 : vector<16x16x4xf32> to vector<256x4xf32>
    %c6_129 = arith.constant 6 : index
    %c0_130 = arith.constant 0 : index
    %c0_131 = arith.constant 0 : index
    %117 = vector.load %arg4[%c6_129, %c0_130, %c0_131] : memref<9x4x4xf32, #tpu.memory_space<vmem>>, vector<1x4x4xf32>
    %118 = vector.shape_cast %117 : vector<1x4x4xf32> to vector<4x4xf32>
    %cst_132 = arith.constant dense<0.000000e+00> : vector<256x4xf32>
    %119 = tpu.matmul %116, %118, %cst_132 {dimension_numbers = #tpu.dot_dimension_numbers<[1], [0], [0], [1], [0, 0, 1, 1], [], []>} : vector<256x4xf32>, vector<4x4xf32>, vector<256x4xf32> -> vector<256x4xf32>
    %120 = arith.addf %114, %119 : vector<256x4xf32>
    %c2_133 = arith.constant 2 : index
    %c1_134 = arith.constant 1 : index
    %c0_135 = arith.constant 0 : index
    %121 = vector.load %arg7[%c2_133, %c1_134, %c0_135] : memref<18x18x4xf32, #tpu.memory_space<vmem>>, vector<16x16x4xf32>
    %122 = vector.shape_cast %121 : vector<16x16x4xf32> to vector<256x4xf32>
    %c7_136 = arith.constant 7 : index
    %c0_137 = arith.constant 0 : index
    %c0_138 = arith.constant 0 : index
    %123 = vector.load %arg4[%c7_136, %c0_137, %c0_138] : memref<9x4x4xf32, #tpu.memory_space<vmem>>, vector<1x4x4xf32>
    %124 = vector.shape_cast %123 : vector<1x4x4xf32> to vector<4x4xf32>
    %cst_139 = arith.constant dense<0.000000e+00> : vector<256x4xf32>
    %125 = tpu.matmul %122, %124, %cst_139 {dimension_numbers = #tpu.dot_dimension_numbers<[1], [0], [0], [1], [0, 0, 1, 1], [], []>} : vector<256x4xf32>, vector<4x4xf32>, vector<256x4xf32> -> vector<256x4xf32>
    %126 = arith.addf %120, %125 : vector<256x4xf32>
    %c2_140 = arith.constant 2 : index
    %c2_141 = arith.constant 2 : index
    %c0_142 = arith.constant 0 : index
    %127 = vector.load %arg7[%c2_140, %c2_141, %c0_142] : memref<18x18x4xf32, #tpu.memory_space<vmem>>, vector<16x16x4xf32>
    %128 = vector.shape_cast %127 : vector<16x16x4xf32> to vector<256x4xf32>
    %c8_143 = arith.constant 8 : index
    %c0_144 = arith.constant 0 : index
    %c0_145 = arith.constant 0 : index
    %129 = vector.load %arg4[%c8_143, %c0_144, %c0_145] : memref<9x4x4xf32, #tpu.memory_space<vmem>>, vector<1x4x4xf32>
    %130 = vector.shape_cast %129 : vector<1x4x4xf32> to vector<4x4xf32>
    %cst_146 = arith.constant dense<0.000000e+00> : vector<256x4xf32>
    %131 = tpu.matmul %128, %130, %cst_146 {dimension_numbers = #tpu.dot_dimension_numbers<[1], [0], [0], [1], [0, 0, 1, 1], [], []>} : vector<256x4xf32>, vector<4x4xf32>, vector<256x4xf32> -> vector<256x4xf32>
    %132 = arith.addf %126, %131 : vector<256x4xf32>
    %c0_147 = arith.constant 0 : index
    %c0_148 = arith.constant 0 : index
    %133 = vector.load %arg5[%c0_147, %c0_148] : memref<1x4xf32, #tpu.memory_space<vmem>>, vector<1x4xf32>
    %134 = vector.broadcast %133 : vector<1x4xf32> to vector<256x4xf32>
    %135 = arith.addf %132, %134 : vector<256x4xf32>
    %c0_149 = arith.constant 0 : index
    %c1_150 = arith.constant 1 : index
    %c1_151 = arith.constant 1 : index
    %c0_152 = arith.constant 0 : index
    %136 = vector.load %arg1[%c0_149, %c1_150, %c1_151, %c0_152] : memref<1x18x18x4xf32, #tpu.memory_space<vmem>>, vector<1x16x16x4xf32>
    %137 = vector.shape_cast %136 : vector<1x16x16x4xf32> to vector<16x16x4xf32>
    %138 = vector.shape_cast %137 : vector<16x16x4xf32> to vector<256x4xf32>
    %139 = arith.addf %135, %138 : vector<256x4xf32>
    %cst_153 = arith.constant 0.000000e+00 : f32
    %140 = vector.broadcast %cst_153 : f32 to vector<256x4xf32>
    %141 = arith.maximumf %139, %140 : vector<256x4xf32>
    %142 = vector.shape_cast %141 : vector<256x4xf32> to vector<16x16x4xf32>
    %c0_154 = arith.constant 0 : index
    %c0_155 = arith.constant 0 : index
    %c0_156 = arith.constant 0 : index
    %c0_157 = arith.constant 0 : index
    %143 = vector.load %arg6[%c0_154, %c0_155, %c0_156, %c0_157] : memref<1x16x16x4xf32, #tpu.memory_space<vmem>>, vector<1x16x16x4xf32>
    %144 = vector.shape_cast %143 : vector<1x16x16x4xf32> to vector<16x16x4xf32>
    %145 = vector.shape_cast %142 : vector<16x16x4xf32> to vector<1x16x16x4xf32>
    tpu.vector_store %arg6[%c0_154, %c0_155, %c0_156, %c0_157], %145 {strides = array<i32>} : memref<1x16x16x4xf32, #tpu.memory_space<vmem>>, vector<1x16x16x4xf32>,
    return
  }
  func.func @transform_0(%arg0: i32) -> (i32, i32, i32, i32) {
    %c0_i32 = arith.constant 0 : i32
    %c0_i32_0 = arith.constant 0 : i32
    %c0_i32_1 = arith.constant 0 : i32
    %c0_i32_2 = arith.constant 0 : i32
    return %arg0, %c0_i32, %c0_i32_0, %c0_i32_1 : i32, i32, i32, i32
  }
  func.func @transform_1(%arg0: i32) -> (i32, i32, i32) {
    %c0_i32 = arith.constant 0 : i32
    %c0_i32_0 = arith.constant 0 : i32
    %c0_i32_1 = arith.constant 0 : i32
    %c0_i32_2 = arith.constant 0 : i32
    return %c0_i32, %c0_i32_0, %c0_i32_1 : i32, i32, i32
  }
  func.func @transform_2(%arg0: i32) -> (i32, i32) {
    %c0_i32 = arith.constant 0 : i32
    %c0_i32_0 = arith.constant 0 : i32
    %c0_i32_1 = arith.constant 0 : i32
    return %c0_i32, %c0_i32_0 : i32, i32
  }
  func.func @transform_3(%arg0: i32) -> (i32, i32, i32) {
    %c0_i32 = arith.constant 0 : i32
    %c0_i32_0 = arith.constant 0 : i32
    %c0_i32_1 = arith.constant 0 : i32
    %c0_i32_2 = arith.constant 0 : i32
    return %c0_i32, %c0_i32_0, %c0_i32_1 : i32, i32, i32
  }
  func.func @transform_4(%arg0: i32) -> (i32, i32) {
    %c0_i32 = arith.constant 0 : i32
    %c0_i32_0 = arith.constant 0 : i32
    %c0_i32_1 = arith.constant 0 : i32
    return %c0_i32, %c0_i32_0 : i32, i32
  }
  func.func @transform_5(%arg0: i32) -> (i32, i32, i32, i32) {
    %c0_i32 = arith.constant 0 : i32
    %c0_i32_0 = arith.constant 0 : i32
    %c0_i32_1 = arith.constant 0 : i32
    %c0_i32_2 = arith.constant 0 : i32
    return %arg0, %c0_i32, %c0_i32_0, %c0_i32_1 : i32, i32, i32, i32
  }
}

</mosaic_0001>

<llo_original>
// kernel: tpu_custom_call.1
$region0: #{tpu_custom_call.1}
  #allocation0 [shape = 'u32[]', space=smem, size = 0x4, offset = 0x4, fixed_abs, tag = 'smem constant byte address 0x4 - core index']
  #allocation1 [shape = 'u32[72,128]{1,0:T(1,128)}', space=vmem, size = 0x9000, scoped, tag = 'internal scratch']
  #allocation2 [shape = 'f32[18,18,4]{2,1,0:T(8,128)}', space=vmem, size = 0x36000, scoped, tag = 'scratch operand']
  %s0 = inlined_call_operand.vmem [shape: f32[2,18,18,4], index: 0, kind: input, shape index: {}]
  %s1 = inlined_call_operand.vmem [shape: f32[9,4,4], index: 1, kind: input, shape index: {}]
  %s2 = inlined_call_operand.vmem [shape: f32[1,4], index: 2, kind: input, shape index: {}]
  %s3 = inlined_call_operand.vmem [shape: f32[9,4,4], index: 3, kind: input, shape index: {}]
  %s4 = inlined_call_operand.vmem [shape: f32[1,4], index: 4, kind: input, shape index: {}]
  %s5 = inlined_call_operand.vmem [shape: f32[2,16,16,4], index: 5, kind: output, shape index: {}]
  %s6 = sld [smem:[#allocation0]]
  $region53: #{tpu_custom_call.1} parent=0
    _
  %s8 = ssub.s32 1, %s6
  %s9 = scalar_select 0, %s8, %s6
  loop: start=0, step=1, limit=4
  $region2: #{tpu_custom_call.1} parent=0 // loop_pre_header
    _
  $region3: #{tpu_custom_call.1} parent=0 // loop_header
    %s11 = sphi 0, %s15
    %p12 = scmp.ge.s32.totalorder %s11, 4
    %s21 = sphi 0, %s23
    %s24 = sphi 0, %s21
    %s25 = sphi 0, %s24
    %s41 = sphi 0, %s25
    %s45 = sphi 0, %s45
    %s47 = sphi 0, %s45
    %s48 = sphi 0, %s47
    %s62 = sphi 0, %s48
    %s66 = sphi 0, %s66
    %s68 = sphi 0, %s66
    %s69 = sphi 0, %s68
    %s83 = sphi 0, %s69
    %s87 = sphi 0, %s87
    %s89 = sphi 0, %s87
    %s90 = sphi 0, %s89
    %s104 = sphi 0, %s90
    %s108 = sphi 0, %s108
    %s110 = sphi 0, %s108
    %s111 = sphi 0, %s110
    %s125 = sphi 0, %s111
    %s131 = sphi 0, %s133
    %s134 = sphi 0, %s131
    %s135 = sphi 0, %s134
    %s151 = sphi 0, %s135
  $region4: #{tpu_custom_call.1} parent=0 // loop_header_branch
    %14 = sbr.rel (%p12) target = $region8
  $region5: #{tpu_custom_call.1} parent=0 // loop_body
    %s16 = ssub.s32 %s11, 1
    %s17 = ssub.s32 %s11, 2
    %s18 = sadd.s32 %s11, 1
    %s19 = ssub.s32 %s11, %s18
    %p20 = scmp.eq.s32.totalorder %s19, 0
    %s22 = sadd.s32 %s21, 1
    %s23 = scalar_select %p20, %s21, %s22
    %p26 = pneg %p20
    %p27 = scmp.eq.s32.totalorder %s11, 1
    %p28 = por %p26, %p27
    %p29 = scmp.ne.s32.totalorder %s21, %s24
    %p30 = scmp.eq.s32.totalorder %s11, 0
    %p31 = por %p29, %p30
    %p32 = scmp.ne.s32.totalorder %s21, %s24
    %p33 = scmp.eq.s32.totalorder %s16, 1
    %p34 = por %p32, %p33
    %p35 = scmp.ne.s32.totalorder %s24, %s25
    %p36 = scmp.eq.s32.totalorder %s16, 0
    %p37 = por %p35, %p36
    %p38 = scmp.ne.s32.totalorder %s24, %s25
    %p39 = scmp.eq.s32.totalorder %s17, 1
    %p40 = por %p38, %p39
    %p42 = scmp.ne.s32.totalorder %s25, %s41
    %p43 = scmp.eq.s32.totalorder %s17, 0
    %p44 = por %p42, %p43
    %s46 = sadd.s32 %s45, 1
    %p49 = scmp.eq.s32.totalorder %s11, 1
    %p50 = scmp.ne.s32.totalorder %s45, %s47
    %p51 = scmp.eq.s32.totalorder %s11, 0
    %p52 = por %p50, %p51
    %p53 = scmp.ne.s32.totalorder %s45, %s47
    %p54 = scmp.eq.s32.totalorder %s16, 1
    %p55 = por %p53, %p54
    %p56 = scmp.ne.s32.totalorder %s47, %s48
    %p57 = scmp.eq.s32.totalorder %s16, 0
    %p58 = por %p56, %p57
    %p59 = scmp.ne.s32.totalorder %s47, %s48
    %p60 = scmp.eq.s32.totalorder %s17, 1
    %p61 = por %p59, %p60
    %p63 = scmp.ne.s32.totalorder %s48, %s62
    %p64 = scmp.eq.s32.totalorder %s17, 0
    %p65 = por %p63, %p64
    %s67 = sadd.s32 %s66, 1
    %p70 = scmp.eq.s32.totalorder %s11, 1
    %p71 = scmp.ne.s32.totalorder %s66, %s68
    %p72 = scmp.eq.s32.totalorder %s11, 0
    %p73 = por %p71, %p72
    %p74 = scmp.ne.s32.totalorder %s66, %s68
    %p75 = scmp.eq.s32.totalorder %s16, 1
    %p76 = por %p74, %p75
    %p77 = scmp.ne.s32.totalorder %s68, %s69
    %p78 = scmp.eq.s32.totalorder %s16, 0
    %p79 = por %p77, %p78
    %p80 = scmp.ne.s32.totalorder %s68, %s69
    %p81 = scmp.eq.s32.totalorder %s17, 1
    %p82 = por %p80, %p81
    %p84 = scmp.ne.s32.totalorder %s69, %s83
    %p85 = scmp.eq.s32.totalorder %s17, 0
    %p86 = por %p84, %p85
    %s88 = sadd.s32 %s87, 1
    %p91 = scmp.eq.s32.totalorder %s11, 1
    %p92 = scmp.ne.s32.totalorder %s87, %s89
    %p93 = scmp.eq.s32.totalorder %s11, 0
    %p94 = por %p92, %p93
    %p95 = scmp.ne.s32.totalorder %s87, %s89
    %p96 = scmp.eq.s32.totalorder %s16, 1
    %p97 = por %p95, %p96
    %p98 = scmp.ne.s32.totalorder %s89, %s90
    %p99 = scmp.eq.s32.totalorder %s16, 0
    %p100 = por %p98, %p99
    %p101 = scmp.ne.s32.totalorder %s89, %s90
    %p102 = scmp.eq.s32.totalorder %s17, 1
    %p103 = por %p101, %p102
    %p105 = scmp.ne.s32.totalorder %s90, %s104
    %p106 = scmp.eq.s32.totalorder %s17, 0
    %p107 = por %p105, %p106
    %s109 = sadd.s32 %s108, 1
    %p112 = scmp.eq.s32.totalorder %s11, 1
    %p113 = scmp.ne.s32.totalorder %s108, %s110
    %p114 = scmp.eq.s32.totalorder %s11, 0
    %p115 = por %p113, %p114
    %p116 = scmp.ne.s32.totalorder %s108, %s110
    %p117 = scmp.eq.s32.totalorder %s16, 1
    %p118 = por %p116, %p117
    %p119 = scmp.ne.s32.totalorder %s110, %s111
    %p120 = scmp.eq.s32.totalorder %s16, 0
    %p121 = por %p119, %p120
    %p122 = scmp.ne.s32.totalorder %s110, %s111
    %p123 = scmp.eq.s32.totalorder %s17, 1
    %p124 = por %p122, %p123
    %p126 = scmp.ne.s32.totalorder %s111, %s125
    %p127 = scmp.eq.s32.totalorder %s17, 0
    %p128 = por %p126, %p127
    %s129 = ssub.s32 %s11, %s18
    %p130 = scmp.eq.s32.totalorder %s129, 0
    %s132 = sadd.s32 %s131, 1
    %s133 = scalar_select %p130, %s131, %s132
    %p136 = pneg %p130
    %p137 = scmp.eq.s32.totalorder %s11, 1
    %p138 = por %p136, %p137
    %p139 = scmp.ne.s32.totalorder %s131, %s134
    %p140 = scmp.eq.s32.totalorder %s11, 0
    %p141 = por %p139, %p140
    %p142 = scmp.ne.s32.totalorder %s131, %s134
    %p143 = scmp.eq.s32.totalorder %s16, 1
    %p144 = por %p142, %p143
    %p145 = scmp.ne.s32.totalorder %s134, %s135
    %p146 = scmp.eq.s32.totalorder %s16, 0
    %p147 = por %p145, %p146
    %p148 = scmp.ne.s32.totalorder %s134, %s135
    %p149 = scmp.eq.s32.totalorder %s17, 1
    %p150 = por %p148, %p149
    %p152 = scmp.ne.s32.totalorder %s135, %s151
    %p153 = scmp.eq.s32.totalorder %s17, 0
    %p154 = por %p152, %p153
    %p155 = scmp.le.s32.totalorder 1, %s11
    %p156 = scmp.lt.s32.totalorder %s11, 3
    %p157 = pnand %p155, %p156
    %p158 = pneg %p157
    // Predicated region
    $region9: #{tpu_custom_call.1} parent=5 // pred_check
      _
    $region10: #{tpu_custom_call.1} parent=5 // pred_check_branch
      %160 = sbr.rel (%p157) target = $region12
    $region11: #{tpu_custom_call.1} parent=5 // pred_region
      %s161 = ssub.s32 %s11, 1
      // Predicated region
      $region13: #{tpu_custom_call.1} parent=11 // pred_check
        %p162 = pneg %p58
      $region14: #{tpu_custom_call.1} parent=11 // pred_check_branch
        %164 = sbr.rel (%p162) target = $region16
      $region15: #{tpu_custom_call.1} parent=11 // pred_region
        _
      $region16: #{tpu_custom_call.1} parent=11 // pred_fallthru
        _
      // Predicated region
      $region17: #{tpu_custom_call.1} parent=11 // pred_check
        %p165 = pneg %p79
      $region18: #{tpu_custom_call.1} parent=11 // pred_check_branch
        %167 = sbr.rel (%p165) target = $region20
      $region19: #{tpu_custom_call.1} parent=11 // pred_region
        _
      $region20: #{tpu_custom_call.1} parent=11 // pred_fallthru
        _
      // Predicated region
      $region21: #{tpu_custom_call.1} parent=11 // pred_check
        %p168 = pneg %p100
      $region22: #{tpu_custom_call.1} parent=11 // pred_check_branch
        %170 = sbr.rel (%p168) target = $region24
      $region23: #{tpu_custom_call.1} parent=11 // pred_region
        _
      $region24: #{tpu_custom_call.1} parent=11 // pred_fallthru
        _
      // Predicated region
      $region25: #{tpu_custom_call.1} parent=11 // pred_check
        %p171 = pneg %p121
      $region26: #{tpu_custom_call.1} parent=11 // pred_check_branch
        %173 = sbr.rel (%p171) target = $region28
      $region27: #{tpu_custom_call.1} parent=11 // pred_region
        _
      $region28: #{tpu_custom_call.1} parent=11 // pred_fallthru
        _
    $region12: #{tpu_custom_call.1} parent=5 // pred_fallthru
      _
    %p174 = scmp.lt.s32.totalorder %s11, 2
    // Predicated region
    $region29: #{tpu_custom_call.1} parent=5 // pred_check
      %p175 = pneg %p174
    $region30: #{tpu_custom_call.1} parent=5 // pred_check_branch
      %177 = sbr.rel (%p175) target = $region32
    $region31: #{tpu_custom_call.1} parent=5 // pred_region
      // Predicated region
      $region33: #{tpu_custom_call.1} parent=31 // pred_check
        %p178 = pneg %p31
      $region34: #{tpu_custom_call.1} parent=31 // pred_check_branch
        %180 = sbr.rel (%p178) target = $region36
      $region35: #{tpu_custom_call.1} parent=31 // pred_region
        %p181 = scmp.lt.s32.totalorder %s11, 1
        %s182 = scalar_select %p181, %s11, 1
        %s183 = smul.addr %s182, 54
        %s184 = smul.addr %s183, 8
        %s185 = scalar_lea.vmem %s0, %s184
      $region36: #{tpu_custom_call.1} parent=31 // pred_fallthru
        _
    $region32: #{tpu_custom_call.1} parent=5 // pred_fallthru
      _
    %p186 = scmp.le.s32.totalorder 1, %s11
    %p187 = scmp.lt.s32.totalorder %s11, 3
    %p188 = pnand %p186, %p187
    %p189 = pneg %p188
    // Predicated region
    $region37: #{tpu_custom_call.1} parent=5 // pred_check
      _
    $region38: #{tpu_custom_call.1} parent=5 // pred_check_branch
      %191 = sbr.rel (%p188) target = $region40
    $region39: #{tpu_custom_call.1} parent=5 // pred_region
      %s192 = ssub.s32 %s11, 1
      %p193 = scmp.lt.s32.totalorder %s16, 1
      %s194 = scalar_select %p193, %s16, 1
      %s195 = smul.addr %s194, 54
      %s196 = smul.addr %s195, 8
      %s197 = scalar_lea.vmem %s0, %s196
      %p198 = pneg %p37
      %p199 = pneg %p34
      %p200 = pneg %p58
      %p201 = pneg %p55
      %p202 = pneg %p79
      %p203 = pneg %p76
      %p204 = pneg %p100
      %p205 = pneg %p97
      %p206 = pneg %p121
      %p207 = pneg %p118
      %p208 = pneg %p147
      %p209 = pneg %p144
      %p210 = scmp.lt.s32.totalorder %s16, 1
      %s211 = scalar_select %p210, %s16, 1
      %s212 = smul.addr %s211, 32
      %s213 = smul.addr %s212, 8
      %s214 = scalar_lea.vmem %s5, %s213
      %p215 = scmp.lt.s32.totalorder %s16, 1
      %s216 = scalar_select %p215, %s16, 1
      %s217 = smul.addr %s216, 54
      %s218 = smul.addr %s217, 8
      %s219 = scalar_lea.vmem %s0, %s218
      %p220 = scmp.lt.s32.totalorder %s16, 1
      %s221 = scalar_select %p220, %s16, 1
      %s222 = smul.addr %s221, 32
      %s223 = smul.addr %s222, 8
      %s224 = scalar_lea.vmem %s5, %s223
      %v225 = vld [vmem:[%s219] sm:$0xff]
      %v226 = vld [vmem:[%s219 + $0x8] sm:$0xff]
      %v227 = vld [vmem:[%s219 + $0x18] sm:$0xff]
      %v228 = vld [vmem:[%s219 + $0x20] sm:$0xff]
      %v229 = vld [vmem:[%s219 + $0x30] sm:$0xff]
      %v230 = vld [vmem:[%s219 + $0x38] sm:$0xff]
      %v231 = vld [vmem:[%s219 + $0x48] sm:$0xff]
      %v232 = vld [vmem:[%s219 + $0x50] sm:$0xff]
      %v233 = vld [vmem:[%s219 + $0x60] sm:$0xff]
      %v234 = vld [vmem:[%s219 + $0x68] sm:$0xff]
      %v235 = vld [vmem:[%s219 + $0x78] sm:$0xff]
      %v236 = vld [vmem:[%s219 + $0x80] sm:$0xff]
      %v237 = vld [vmem:[%s219 + $0x90] sm:$0xff]
      %v238 = vld [vmem:[%s219 + $0x98] sm:$0xff]
      %v239 = vld [vmem:[%s219 + $0xa8] sm:$0xff]
      %v240 = vld [vmem:[%s219 + $0xb0] sm:$0xff]
      %v241 = vld [vmem:[%s219 + $0xc0] sm:$0xff]
      %v242 = vld [vmem:[%s219 + $0xc8] sm:$0xff]
      %v243 = vld [vmem:[%s219 + $0xd8] sm:$0xff]
      %v244 = vld [vmem:[%s219 + $0xe0] sm:$0xff]
      %v245 = vld [vmem:[%s219 + $0xf0] sm:$0xff]
      %v246 = vld [vmem:[%s219 + $0xf8] sm:$0xff]
      %v247 = vld [vmem:[%s219 + $0x108] sm:$0xff]
      %v248 = vld [vmem:[%s219 + $0x110] sm:$0xff]
      %v249 = vld [vmem:[%s219 + $0x120] sm:$0xff]
      %v250 = vld [vmem:[%s219 + $0x128] sm:$0xff]
      %v251 = vld [vmem:[%s219 + $0x138] sm:$0xff]
      %v252 = vld [vmem:[%s219 + $0x140] sm:$0xff]
      %v253 = vld [vmem:[%s219 + $0x150] sm:$0xff]
      %v254 = vld [vmem:[%s219 + $0x158] sm:$0xff]
      %v255 = vld [vmem:[%s219 + $0x168] sm:$0xff]
      %v256 = vld [vmem:[%s219 + $0x170] sm:$0xff]
      %v257 = vld [vmem:[%s1] sm:$0xf]
      %v258 = vld [vmem:[%s219 + $0x1] sm:$0xff]
      %v259 = vld [vmem:[%s219 + $0x9] sm:$0xff]
      %v260 = vld [vmem:[%s219 + $0x19] sm:$0xff]
      %v261 = vld [vmem:[%s219 + $0x21] sm:$0xff]
      %v262 = vld [vmem:[%s219 + $0x31] sm:$0xff]
      %v263 = vld [vmem:[%s219 + $0x39] sm:$0xff]
      %v264 = vld [vmem:[%s219 + $0x49] sm:$0xff]
      %v265 = vld [vmem:[%s219 + $0x51] sm:$0xff]
      %v266 = vld [vmem:[%s219 + $0x61] sm:$0xff]
      %v267 = vld [vmem:[%s219 + $0x69] sm:$0xff]
      %v268 = vld [vmem:[%s219 + $0x79] sm:$0xff]
      %v269 = vld [vmem:[%s219 + $0x81] sm:$0xff]
      %v270 = vld [vmem:[%s219 + $0x91] sm:$0xff]
      %v271 = vld [vmem:[%s219 + $0x99] sm:$0xff]
      %v272 = vld [vmem:[%s219 + $0xa9] sm:$0xff]
      %v273 = vld [vmem:[%s219 + $0xb1] sm:$0xff]
      %v274 = vld [vmem:[%s219 + $0xc1] sm:$0xff]
      %v275 = vld [vmem:[%s219 + $0xc9] sm:$0xff]
      %v276 = vld [vmem:[%s219 + $0xd9] sm:$0xff]
      %v277 = vld [vmem:[%s219 + $0xe1] sm:$0xff]
      %v278 = vld [vmem:[%s219 + $0xf1] sm:$0xff]
      %v279 = vld [vmem:[%s219 + $0xf9] sm:$0xff]
      %v280 = vld [vmem:[%s219 + $0x109] sm:$0xff]
      %v281 = vld [vmem:[%s219 + $0x111] sm:$0xff]
      %v282 = vld [vmem:[%s219 + $0x121] sm:$0xff]
      %v283 = vld [vmem:[%s219 + $0x129] sm:$0xff]
      %v284 = vld [vmem:[%s219 + $0x139] sm:$0xff]
      %v285 = vld [vmem:[%s219 + $0x141] sm:$0xff]
      %v286 = vld [vmem:[%s219 + $0x151] sm:$0xff]
      %v287 = vld [vmem:[%s219 + $0x159] sm:$0xff]
      %v288 = vld [vmem:[%s219 + $0x169] sm:$0xff]
      %v289 = vld [vmem:[%s219 + $0x171] sm:$0xff]
      %s290 = scalar_lea.vmem %s1, 4
      %v291 = vld [vmem:[%s290] sm:$0xf]
      %vm292 = vcmask 31744
      %v294 = vsel %vm292, %v258, 0
      %v297 = vsel %vm292, %v259, 0
      %v300 = vsel %vm292, %v260, 0
      %v303 = vsel %vm292, %v261, 0
      %v306 = vsel %vm292, %v262, 0
      %v309 = vsel %vm292, %v263, 0
      %v312 = vsel %vm292, %v264, 0
      %v315 = vsel %vm292, %v265, 0
      %v318 = vsel %vm292, %v266, 0
      %v321 = vsel %vm292, %v267, 0
      %v324 = vsel %vm292, %v268, 0
      %v327 = vsel %vm292, %v269, 0
      %v330 = vsel %vm292, %v270, 0
      %v333 = vsel %vm292, %v271, 0
      %v336 = vsel %vm292, %v272, 0
      %v339 = vsel %vm292, %v273, 0
      %v342 = vsel %vm292, %v274, 0
      %v345 = vsel %vm292, %v275, 0
      %v348 = vsel %vm292, %v276, 0
      %v351 = vsel %vm292, %v277, 0
      %v354 = vsel %vm292, %v278, 0
      %v357 = vsel %vm292, %v279, 0
      %v360 = vsel %vm292, %v280, 0
      %v363 = vsel %vm292, %v281, 0
      %v366 = vsel %vm292, %v282, 0
      %v369 = vsel %vm292, %v283, 0
      %v372 = vsel %vm292, %v284, 0
      %v375 = vsel %vm292, %v285, 0
      %v378 = vsel %vm292, %v286, 0
      %v381 = vsel %vm292, %v287, 0
      %v384 = vsel %vm292, %v288, 0
      %v387 = vsel %vm292, %v289, 0
      %vm389 = vcmask 1043456
      %v391 = vsel %vm389, %v291, 0
      %393 = vmatpush.msra.mxu0 0.0
      %394 = vmatpush.msra.mxu0 0.0
      %395 = vmatpush.msra.mxu0 0.0
      %396 = vmatpush.msra.mxu0 0.0
      %397 = vmatpush.msra.mxu0 0.0
      %398 = vmatpush.msra.mxu0 0.0
      %399 = vmatpush.msra.mxu0 0.0
      %400 = vmatpush.msra.mxu0 0.0
      %401 = vmatpush.msra.mxu0 0.0
      %402 = vmatpush.msra.mxu0 0.0
      %403 = vmatpush.msra.mxu0 0.0
      %404 = vmatpush.msra.mxu0 0.0
      %405 = vmatpush.msra.mxu0 0.0
      %406 = vmatpush.msra.mxu0 0.0
      %407 = vmatpush.msra.mxu0 0.0
      %408 = vmatpush.msra.mxu0 %v391
      %409 = vmatmul.f32.gmra.mxu0 %v294
      %v410 = vpop.f32.mrf.mxu0
      %v411 = vadd.f32 0.0, %v410
      %412 = vmatmul.f32.gmra.mxu0 %v297
      %v413 = vpop.f32.mrf.mxu0
      %v414 = vadd.f32 0.0, %v413
      %415 = vmatmul.f32.gmra.mxu0 %v300
      %v416 = vpop.f32.mrf.mxu0
      %v417 = vadd.f32 0.0, %v416
      %418 = vmatmul.f32.gmra.mxu0 %v303
      %v419 = vpop.f32.mrf.mxu0
      %v420 = vadd.f32 0.0, %v419
      %421 = vmatmul.f32.gmra.mxu0 %v306
      %v422 = vpop.f32.mrf.mxu0
      %v423 = vadd.f32 0.0, %v422
      %424 = vmatmul.f32.gmra.mxu0 %v309
      %v425 = vpop.f32.mrf.mxu0
      %v426 = vadd.f32 0.0, %v425
      %427 = vmatmul.f32.gmra.mxu0 %v312
      %v428 = vpop.f32.mrf.mxu0
      %v429 = vadd.f32 0.0, %v428
      %430 = vmatmul.f32.gmra.mxu0 %v315
      %v431 = vpop.f32.mrf.mxu0
      %v432 = vadd.f32 0.0, %v431
      %433 = vmatmul.f32.gmra.mxu0 %v318
      %v434 = vpop.f32.mrf.mxu0
      %v435 = vadd.f32 0.0, %v434
      %436 = vmatmul.f32.gmra.mxu0 %v321
      %v437 = vpop.f32.mrf.mxu0
      %v438 = vadd.f32 0.0, %v437
      %439 = vmatmul.f32.gmra.mxu0 %v324
      %v440 = vpop.f32.mrf.mxu0
      %v441 = vadd.f32 0.0, %v440
      %442 = vmatmul.f32.gmra.mxu0 %v327
      %v443 = vpop.f32.mrf.mxu0
      %v444 = vadd.f32 0.0, %v443
      %445 = vmatmul.f32.gmra.mxu0 %v330
      %v446 = vpop.f32.mrf.mxu0
      %v447 = vadd.f32 0.0, %v446
      %448 = vmatmul.f32.gmra.mxu0 %v333
      %v449 = vpop.f32.mrf.mxu0
      %v450 = vadd.f32 0.0, %v449
      %451 = vmatmul.f32.gmra.mxu0 %v336
      %v452 = vpop.f32.mrf.mxu0
      %v453 = vadd.f32 0.0, %v452
      %454 = vmatmul.f32.gmra.mxu0 %v339
      %v455 = vpop.f32.mrf.mxu0
      %v456 = vadd.f32 0.0, %v455
      %457 = vmatmul.f32.gmra.mxu0 %v342
      %v458 = vpop.f32.mrf.mxu0
      %v459 = vadd.f32 0.0, %v458
      %460 = vmatmul.f32.gmra.mxu0 %v345
      %v461 = vpop.f32.mrf.mxu0
      %v462 = vadd.f32 0.0, %v461
      %463 = vmatmul.f32.gmra.mxu0 %v348
      %v464 = vpop.f32.mrf.mxu0
      %v465 = vadd.f32 0.0, %v464
      %466 = vmatmul.f32.gmra.mxu0 %v351
      %v467 = vpop.f32.mrf.mxu0
      %v468 = vadd.f32 0.0, %v467
      %469 = vmatmul.f32.gmra.mxu0 %v354
      %v470 = vpop.f32.mrf.mxu0
      %v471 = vadd.f32 0.0, %v470
      %472 = vmatmul.f32.gmra.mxu0 %v357
      %v473 = vpop.f32.mrf.mxu0
      %v474 = vadd.f32 0.0, %v473
      %475 = vmatmul.f32.gmra.mxu0 %v360
      %v476 = vpop.f32.mrf.mxu0
      %v477 = vadd.f32 0.0, %v476
      %478 = vmatmul.f32.gmra.mxu0 %v363
      %v479 = vpop.f32.mrf.mxu0
      %v480 = vadd.f32 0.0, %v479
      %481 = vmatmul.f32.gmra.mxu0 %v366
      %v482 = vpop.f32.mrf.mxu0
      %v483 = vadd.f32 0.0, %v482
      %484 = vmatmul.f32.gmra.mxu0 %v369
      %v485 = vpop.f32.mrf.mxu0
      %v486 = vadd.f32 0.0, %v485
      %487 = vmatmul.f32.gmra.mxu0 %v372
      %v488 = vpop.f32.mrf.mxu0
      %v489 = vadd.f32 0.0, %v488
      %490 = vmatmul.f32.gmra.mxu0 %v375
      %v491 = vpop.f32.mrf.mxu0
      %v492 = vadd.f32 0.0, %v491
      %493 = vmatmul.f32.gmra.mxu0 %v378
      %v494 = vpop.f32.mrf.mxu0
      %v495 = vadd.f32 0.0, %v494
      %496 = vmatmul.f32.gmra.mxu0 %v381
      %v497 = vpop.f32.mrf.mxu0
      %v498 = vadd.f32 0.0, %v497
      %499 = vmatmul.f32.gmra.mxu0 %v384
      %v500 = vpop.f32.mrf.mxu0
      %v501 = vadd.f32 0.0, %v500
      %502 = vmatmul.f32.gmra.mxu0 %v387
      %v503 = vpop.f32.mrf.mxu0
      %v504 = vadd.f32 0.0, %v503
      %505 = vdwg.mxu0
      %v507 = vsel %vm292, %v225, 0
      %v510 = vsel %vm292, %v226, 0
      %v513 = vsel %vm292, %v227, 0
      %v516 = vsel %vm292, %v228, 0
      %v519 = vsel %vm292, %v229, 0
      %v522 = vsel %vm292, %v230, 0
      %v525 = vsel %vm292, %v231, 0
      %v528 = vsel %vm292, %v232, 0
      %v531 = vsel %vm292, %v233, 0
      %v534 = vsel %vm292, %v234, 0
      %v537 = vsel %vm292, %v235, 0
      %v540 = vsel %vm292, %v236, 0
      %v543 = vsel %vm292, %v237, 0
      %v546 = vsel %vm292, %v238, 0
      %v549 = vsel %vm292, %v239, 0
      %v552 = vsel %vm292, %v240, 0
      %v555 = vsel %vm292, %v241, 0
      %v558 = vsel %vm292, %v242, 0
      %v561 = vsel %vm292, %v243, 0
      %v564 = vsel %vm292, %v244, 0
      %v567 = vsel %vm292, %v245, 0
      %v570 = vsel %vm292, %v246, 0
      %v573 = vsel %vm292, %v247, 0
      %v576 = vsel %vm292, %v248, 0
      %v579 = vsel %vm292, %v249, 0
      %v582 = vsel %vm292, %v250, 0
      %v585 = vsel %vm292, %v251, 0
      %v588 = vsel %vm292, %v252, 0
      %v591 = vsel %vm292, %v253, 0
      %v594 = vsel %vm292, %v254, 0
      %v597 = vsel %vm292, %v255, 0
      %v600 = vsel %vm292, %v256, 0
      %v603 = vsel %vm389, %v257, 0
      %605 = vmatpush.msra.mxu0 0.0
      %606 = vmatpush.msra.mxu0 0.0
      %607 = vmatpush.msra.mxu0 0.0
      %608 = vmatpush.msra.mxu0 0.0
      %609 = vmatpush.msra.mxu0 0.0
      %610 = vmatpush.msra.mxu0 0.0
      %611 = vmatpush.msra.mxu0 0.0
      %612 = vmatpush.msra.mxu0 0.0
      %613 = vmatpush.msra.mxu0 0.0
      %614 = vmatpush.msra.mxu0 0.0
      %615 = vmatpush.msra.mxu0 0.0
      %616 = vmatpush.msra.mxu0 0.0
      %617 = vmatpush.msra.mxu0 0.0
      %618 = vmatpush.msra.mxu0 0.0
      %619 = vmatpush.msra.mxu0 0.0
      %620 = vmatpush.msra.mxu0 %v603
      %621 = vmatmul.f32.gmra.mxu0 %v507
      %v622 = vpop.f32.mrf.mxu0
      %v623 = vadd.f32 %v411, %v622
      %624 = vmatmul.f32.gmra.mxu0 %v510
      %v625 = vpop.f32.mrf.mxu0
      %v626 = vadd.f32 %v414, %v625
      %627 = vmatmul.f32.gmra.mxu0 %v513
      %v628 = vpop.f32.mrf.mxu0
      %v629 = vadd.f32 %v417, %v628
      %630 = vmatmul.f32.gmra.mxu0 %v516
      %v631 = vpop.f32.mrf.mxu0
      %v632 = vadd.f32 %v420, %v631
      %633 = vmatmul.f32.gmra.mxu0 %v519
      %v634 = vpop.f32.mrf.mxu0
      %v635 = vadd.f32 %v423, %v634
      %636 = vmatmul.f32.gmra.mxu0 %v522
      %v637 = vpop.f32.mrf.mxu0
      %v638 = vadd.f32 %v426, %v637
      %639 = vmatmul.f32.gmra.mxu0 %v525
      %v640 = vpop.f32.mrf.mxu0
      %v641 = vadd.f32 %v429, %v640
      %642 = vmatmul.f32.gmra.mxu0 %v528
      %v643 = vpop.f32.mrf.mxu0
      %v644 = vadd.f32 %v432, %v643
      %645 = vmatmul.f32.gmra.mxu0 %v531
      %v646 = vpop.f32.mrf.mxu0
      %v647 = vadd.f32 %v435, %v646
      %648 = vmatmul.f32.gmra.mxu0 %v534
      %v649 = vpop.f32.mrf.mxu0
      %v650 = vadd.f32 %v438, %v649
      %651 = vmatmul.f32.gmra.mxu0 %v537
      %v652 = vpop.f32.mrf.mxu0
      %v653 = vadd.f32 %v441, %v652
      %654 = vmatmul.f32.gmra.mxu0 %v540
      %v655 = vpop.f32.mrf.mxu0
      %v656 = vadd.f32 %v444, %v655
      %657 = vmatmul.f32.gmra.mxu0 %v543
      %v658 = vpop.f32.mrf.mxu0
      %v659 = vadd.f32 %v447, %v658
      %660 = vmatmul.f32.gmra.mxu0 %v546
      %v661 = vpop.f32.mrf.mxu0
      %v662 = vadd.f32 %v450, %v661
      %663 = vmatmul.f32.gmra.mxu0 %v549
      %v664 = vpop.f32.mrf.mxu0
      %v665 = vadd.f32 %v453, %v664
      %666 = vmatmul.f32.gmra.mxu0 %v552
      %v667 = vpop.f32.mrf.mxu0
      %v668 = vadd.f32 %v456, %v667
      %669 = vmatmul.f32.gmra.mxu0 %v555
      %v670 = vpop.f32.mrf.mxu0
      %v671 = vadd.f32 %v459, %v670
      %672 = vmatmul.f32.gmra.mxu0 %v558
      %v673 = vpop.f32.mrf.mxu0
      %v674 = vadd.f32 %v462, %v673
      %675 = vmatmul.f32.gmra.mxu0 %v561
      %v676 = vpop.f32.mrf.mxu0
      %v677 = vadd.f32 %v465, %v676
      %678 = vmatmul.f32.gmra.mxu0 %v564
      %v679 = vpop.f32.mrf.mxu0
      %v680 = vadd.f32 %v468, %v679
      %681 = vmatmul.f32.gmra.mxu0 %v567
      %v682 = vpop.f32.mrf.mxu0
      %v683 = vadd.f32 %v471, %v682
      %684 = vmatmul.f32.gmra.mxu0 %v570
      %v685 = vpop.f32.mrf.mxu0
      %v686 = vadd.f32 %v474, %v685
      %687 = vmatmul.f32.gmra.mxu0 %v573
      %v688 = vpop.f32.mrf.mxu0
      %v689 = vadd.f32 %v477, %v688
      %690 = vmatmul.f32.gmra.mxu0 %v576
      %v691 = vpop.f32.mrf.mxu0
      %v692 = vadd.f32 %v480, %v691
      %693 = vmatmul.f32.gmra.mxu0 %v579
      %v694 = vpop.f32.mrf.mxu0
      %v695 = vadd.f32 %v483, %v694
      %696 = vmatmul.f32.gmra.mxu0 %v582
      %v697 = vpop.f32.mrf.mxu0
      %v698 = vadd.f32 %v486, %v697
      %699 = vmatmul.f32.gmra.mxu0 %v585
      %v700 = vpop.f32.mrf.mxu0
      %v701 = vadd.f32 %v489, %v700
      %702 = vmatmul.f32.gmra.mxu0 %v588
      %v703 = vpop.f32.mrf.mxu0
      %v704 = vadd.f32 %v492, %v703
      %705 = vmatmul.f32.gmra.mxu0 %v591
      %v706 = vpop.f32.mrf.mxu0
      %v707 = vadd.f32 %v495, %v706
      %708 = vmatmul.f32.gmra.mxu0 %v594
      %v709 = vpop.f32.mrf.mxu0
      %v710 = vadd.f32 %v498, %v709
      %711 = vmatmul.f32.gmra.mxu0 %v597
      %v712 = vpop.f32.mrf.mxu0
      %v713 = vadd.f32 %v501, %v712
      %714 = vmatmul.f32.gmra.mxu0 %v600
      %v715 = vpop.f32.mrf.mxu0
      %v716 = vadd.f32 %v504, %v715
      %717 = vdwg.mxu0
      %v718 = vld [vmem:[%s219 + $0x2] sm:$0xff]
      %v719 = vld [vmem:[%s219 + $0xa] sm:$0xff]
      %v720 = vld [vmem:[%s219 + $0x1a] sm:$0xff]
      %v721 = vld [vmem:[%s219 + $0x22] sm:$0xff]
      %v722 = vld [vmem:[%s219 + $0x32] sm:$0xff]
      %v723 = vld [vmem:[%s219 + $0x3a] sm:$0xff]
      %v724 = vld [vmem:[%s219 + $0x4a] sm:$0xff]
      %v725 = vld [vmem:[%s219 + $0x52] sm:$0xff]
      %v726 = vld [vmem:[%s219 + $0x62] sm:$0xff]
      %v727 = vld [vmem:[%s219 + $0x6a] sm:$0xff]
      %v728 = vld [vmem:[%s219 + $0x7a] sm:$0xff]
      %v729 = vld [vmem:[%s219 + $0x82] sm:$0xff]
      %v730 = vld [vmem:[%s219 + $0x92] sm:$0xff]
      %v731 = vld [vmem:[%s219 + $0x9a] sm:$0xff]
      %v732 = vld [vmem:[%s219 + $0xaa] sm:$0xff]
      %v733 = vld [vmem:[%s219 + $0xb2] sm:$0xff]
      %v734 = vld [vmem:[%s219 + $0xc2] sm:$0xff]
      %v735 = vld [vmem:[%s219 + $0xca] sm:$0xff]
      %v736 = vld [vmem:[%s219 + $0xda] sm:$0xff]
      %v737 = vld [vmem:[%s219 + $0xe2] sm:$0xff]
      %v738 = vld [vmem:[%s219 + $0xf2] sm:$0xff]
      %v739 = vld [vmem:[%s219 + $0xfa] sm:$0xff]
      %v740 = vld [vmem:[%s219 + $0x10a] sm:$0xff]
      %v741 = vld [vmem:[%s219 + $0x112] sm:$0xff]
      %v742 = vld [vmem:[%s219 + $0x122] sm:$0xff]
      %v743 = vld [vmem:[%s219 + $0x12a] sm:$0xff]
      %v744 = vld [vmem:[%s219 + $0x13a] sm:$0xff]
      %v745 = vld [vmem:[%s219 + $0x142] sm:$0xff]
      %v746 = vld [vmem:[%s219 + $0x152] sm:$0xff]
      %v747 = vld [vmem:[%s219 + $0x15a] sm:$0xff]
      %v748 = vld [vmem:[%s219 + $0x16a] sm:$0xff]
      %v749 = vld [vmem:[%s219 + $0x172] sm:$0xff]
      %s750 = scalar_lea.vmem %s1, 8
      %v751 = vld [vmem:[%s750] sm:$0xf]
      %v753 = vsel %vm292, %v718, 0
      %v756 = vsel %vm292, %v719, 0
      %v759 = vsel %vm292, %v720, 0
      %v762 = vsel %vm292, %v721, 0
      %v765 = vsel %vm292, %v722, 0
      %v768 = vsel %vm292, %v723, 0
      %v771 = vsel %vm292, %v724, 0
      %v774 = vsel %vm292, %v725, 0
      %v777 = vsel %vm292, %v726, 0
      %v780 = vsel %vm292, %v727, 0
      %v783 = vsel %vm292, %v728, 0
      %v786 = vsel %vm292, %v729, 0
      %v789 = vsel %vm292, %v730, 0
      %v792 = vsel %vm292, %v731, 0
      %v795 = vsel %vm292, %v732, 0
      %v798 = vsel %vm292, %v733, 0
      %v801 = vsel %vm292, %v734, 0
      %v804 = vsel %vm292, %v735, 0
      %v807 = vsel %vm292, %v736, 0
      %v810 = vsel %vm292, %v737, 0
      %v813 = vsel %vm292, %v738, 0
      %v816 = vsel %vm292, %v739, 0
      %v819 = vsel %vm292, %v740, 0
      %v822 = vsel %vm292, %v741, 0
      %v825 = vsel %vm292, %v742, 0
      %v828 = vsel %vm292, %v743, 0
      %v831 = vsel %vm292, %v744, 0
      %v834 = vsel %vm292, %v745, 0
      %v837 = vsel %vm292, %v746, 0
      %v840 = vsel %vm292, %v747, 0
      %v843 = vsel %vm292, %v748, 0
      %v846 = vsel %vm292, %v749, 0
      %v849 = vsel %vm389, %v751, 0
      %851 = vmatpush.msra.mxu0 0.0
      %852 = vmatpush.msra.mxu0 0.0
      %853 = vmatpush.msra.mxu0 0.0
      %854 = vmatpush.msra.mxu0 0.0
      %855 = vmatpush.msra.mxu0 0.0
      %856 = vmatpush.msra.mxu0 0.0
      %857 = vmatpush.msra.mxu0 0.0
      %858 = vmatpush.msra.mxu0 0.0
      %859 = vmatpush.msra.mxu0 0.0
      %860 = vmatpush.msra.mxu0 0.0
      %861 = vmatpush.msra.mxu0 0.0
      %862 = vmatpush.msra.mxu0 0.0
      %863 = vmatpush.msra.mxu0 0.0
      %864 = vmatpush.msra.mxu0 0.0
      %865 = vmatpush.msra.mxu0 0.0
      %866 = vmatpush.msra.mxu0 %v849
      %867 = vmatmul.f32.gmra.mxu0 %v753
      %v868 = vpop.f32.mrf.mxu0
      %v869 = vadd.f32 0.0, %v868
      %870 = vmatmul.f32.gmra.mxu0 %v756
      %v871 = vpop.f32.mrf.mxu0
      %v872 = vadd.f32 0.0, %v871
      %873 = vmatmul.f32.gmra.mxu0 %v759
      %v874 = vpop.f32.mrf.mxu0
      %v875 = vadd.f32 0.0, %v874
      %876 = vmatmul.f32.gmra.mxu0 %v762
      %v877 = vpop.f32.mrf.mxu0
      %v878 = vadd.f32 0.0, %v877
      %879 = vmatmul.f32.gmra.mxu0 %v765
      %v880 = vpop.f32.mrf.mxu0
      %v881 = vadd.f32 0.0, %v880
      %882 = vmatmul.f32.gmra.mxu0 %v768
      %v883 = vpop.f32.mrf.mxu0
      %v884 = vadd.f32 0.0, %v883
      %885 = vmatmul.f32.gmra.mxu0 %v771
      %v886 = vpop.f32.mrf.mxu0
      %v887 = vadd.f32 0.0, %v886
      %888 = vmatmul.f32.gmra.mxu0 %v774
      %v889 = vpop.f32.mrf.mxu0
      %v890 = vadd.f32 0.0, %v889
      %891 = vmatmul.f32.gmra.mxu0 %v777
      %v892 = vpop.f32.mrf.mxu0
      %v893 = vadd.f32 0.0, %v892
      %894 = vmatmul.f32.gmra.mxu0 %v780
      %v895 = vpop.f32.mrf.mxu0
      %v896 = vadd.f32 0.0, %v895
      %897 = vmatmul.f32.gmra.mxu0 %v783
      %v898 = vpop.f32.mrf.mxu0
      %v899 = vadd.f32 0.0, %v898
      %900 = vmatmul.f32.gmra.mxu0 %v786
      %v901 = vpop.f32.mrf.mxu0
      %v902 = vadd.f32 0.0, %v901
      %903 = vmatmul.f32.gmra.mxu0 %v789
      %v904 = vpop.f32.mrf.mxu0
      %v905 = vadd.f32 0.0, %v904
      %906 = vmatmul.f32.gmra.mxu0 %v792
      %v907 = vpop.f32.mrf.mxu0
      %v908 = vadd.f32 0.0, %v907
      %909 = vmatmul.f32.gmra.mxu0 %v795
      %v910 = vpop.f32.mrf.mxu0
      %v911 = vadd.f32 0.0, %v910
      %912 = vmatmul.f32.gmra.mxu0 %v798
      %v913 = vpop.f32.mrf.mxu0
      %v914 = vadd.f32 0.0, %v913
      %915 = vmatmul.f32.gmra.mxu0 %v801
      %v916 = vpop.f32.mrf.mxu0
      %v917 = vadd.f32 0.0, %v916
      %918 = vmatmul.f32.gmra.mxu0 %v804
      %v919 = vpop.f32.mrf.mxu0
      %v920 = vadd.f32 0.0, %v919
      %921 = vmatmul.f32.gmra.mxu0 %v807
      %v922 = vpop.f32.mrf.mxu0
      %v923 = vadd.f32 0.0, %v922
      %924 = vmatmul.f32.gmra.mxu0 %v810
      %v925 = vpop.f32.mrf.mxu0
      %v926 = vadd.f32 0.0, %v925
      %927 = vmatmul.f32.gmra.mxu0 %v813
      %v928 = vpop.f32.mrf.mxu0
      %v929 = vadd.f32 0.0, %v928
      %930 = vmatmul.f32.gmra.mxu0 %v816
      %v931 = vpop.f32.mrf.mxu0
      %v932 = vadd.f32 0.0, %v931
      %933 = vmatmul.f32.gmra.mxu0 %v819
      %v934 = vpop.f32.mrf.mxu0
      %v935 = vadd.f32 0.0, %v934
      %936 = vmatmul.f32.gmra.mxu0 %v822
      %v937 = vpop.f32.mrf.mxu0
      %v938 = vadd.f32 0.0, %v937
      %939 = vmatmul.f32.gmra.mxu0 %v825
      %v940 = vpop.f32.mrf.mxu0
      %v941 = vadd.f32 0.0, %v940
      %942 = vmatmul.f32.gmra.mxu0 %v828
      %v943 = vpop.f32.mrf.mxu0
      %v944 = vadd.f32 0.0, %v943
      %945 = vmatmul.f32.gmra.mxu0 %v831
      %v946 = vpop.f32.mrf.mxu0
      %v947 = vadd.f32 0.0, %v946
      %948 = vmatmul.f32.gmra.mxu0 %v834
      %v949 = vpop.f32.mrf.mxu0
      %v950 = vadd.f32 0.0, %v949
      %951 = vmatmul.f32.gmra.mxu0 %v837
      %v952 = vpop.f32.mrf.mxu0
      %v953 = vadd.f32 0.0, %v952
      %954 = vmatmul.f32.gmra.mxu0 %v840
      %v955 = vpop.f32.mrf.mxu0
      %v956 = vadd.f32 0.0, %v955
      %957 = vmatmul.f32.gmra.mxu0 %v843
      %v958 = vpop.f32.mrf.mxu0
      %v959 = vadd.f32 0.0, %v958
      %960 = vmatmul.f32.gmra.mxu0 %v846
      %v961 = vpop.f32.mrf.mxu0
      %v962 = vadd.f32 0.0, %v961
      %963 = vdwg.mxu0
      %v964 = vadd.f32 %v623, %v869
      %v965 = vadd.f32 %v626, %v872
      %v966 = vadd.f32 %v629, %v875
      %v967 = vadd.f32 %v632, %v878
      %v968 = vadd.f32 %v635, %v881
      %v969 = vadd.f32 %v638, %v884
      %v970 = vadd.f32 %v641, %v887
      %v971 = vadd.f32 %v644, %v890
      %v972 = vadd.f32 %v647, %v893
      %v973 = vadd.f32 %v650, %v896
      %v974 = vadd.f32 %v653, %v899
      %v975 = vadd.f32 %v656, %v902
      %v976 = vadd.f32 %v659, %v905
      %v977 = vadd.f32 %v662, %v908
      %v978 = vadd.f32 %v665, %v911
      %v979 = vadd.f32 %v668, %v914
      %v980 = vadd.f32 %v671, %v917
      %v981 = vadd.f32 %v674, %v920
      %v982 = vadd.f32 %v677, %v923
      %v983 = vadd.f32 %v680, %v926
      %v984 = vadd.f32 %v683, %v929
      %v985 = vadd.f32 %v686, %v932
      %v986 = vadd.f32 %v689, %v935
      %v987 = vadd.f32 %v692, %v938
      %v988 = vadd.f32 %v695, %v941
      %v989 = vadd.f32 %v698, %v944
      %v990 = vadd.f32 %v701, %v947
      %v991 = vadd.f32 %v704, %v950
      %v992 = vadd.f32 %v707, %v953
      %v993 = vadd.f32 %v710, %v956
      %v994 = vadd.f32 %v713, %v959
      %v995 = vadd.f32 %v716, %v962
      %s996 = scalar_lea.vmem %s219, 24
      %v997 = vld [vmem:[%s996] sm:$0xff]
      %v998 = vld [vmem:[%s996 + $0x8] sm:$0xff]
      %v999 = vld [vmem:[%s996 + $0x18] sm:$0xff]
      %v1000 = vld [vmem:[%s996 + $0x20] sm:$0xff]
      %v1001 = vld [vmem:[%s996 + $0x30] sm:$0xff]
      %v1002 = vld [vmem:[%s996 + $0x38] sm:$0xff]
      %v1003 = vld [vmem:[%s996 + $0x48] sm:$0xff]
      %v1004 = vld [vmem:[%s996 + $0x50] sm:$0xff]
      %v1005 = vld [vmem:[%s996 + $0x60] sm:$0xff]
      %v1006 = vld [vmem:[%s996 + $0x68] sm:$0xff]
      %v1007 = vld [vmem:[%s996 + $0x78] sm:$0xff]
      %v1008 = vld [vmem:[%s996 + $0x80] sm:$0xff]
      %v1009 = vld [vmem:[%s996 + $0x90] sm:$0xff]
      %v1010 = vld [vmem:[%s996 + $0x98] sm:$0xff]
      %v1011 = vld [vmem:[%s996 + $0xa8] sm:$0xff]
      %v1012 = vld [vmem:[%s996 + $0xb0] sm:$0xff]
      %v1013 = vld [vmem:[%s996 + $0xc0] sm:$0xff]
      %v1014 = vld [vmem:[%s996 + $0xc8] sm:$0xff]
      %v1015 = vld [vmem:[%s996 + $0xd8] sm:$0xff]
      %v1016 = vld [vmem:[%s996 + $0xe0] sm:$0xff]
      %v1017 = vld [vmem:[%s996 + $0xf0] sm:$0xff]
      %v1018 = vld [vmem:[%s996 + $0xf8] sm:$0xff]
      %v1019 = vld [vmem:[%s996 + $0x108] sm:$0xff]
      %v1020 = vld [vmem:[%s996 + $0x110] sm:$0xff]
      %v1021 = vld [vmem:[%s996 + $0x120] sm:$0xff]
      %v1022 = vld [vmem:[%s996 + $0x128] sm:$0xff]
      %v1023 = vld [vmem:[%s996 + $0x138] sm:$0xff]
      %v1024 = vld [vmem:[%s996 + $0x140] sm:$0xff]
      %v1025 = vld [vmem:[%s996 + $0x150] sm:$0xff]
      %v1026 = vld [vmem:[%s996 + $0x158] sm:$0xff]
      %v1027 = vld [vmem:[%s996 + $0x168] sm:$0xff]
      %v1028 = vld [vmem:[%s996 + $0x170] sm:$0xff]
      %s1029 = scalar_lea.vmem %s1, 12
      %v1030 = vld [vmem:[%s1029] sm:$0xf]
      %v1032 = vsel %vm292, %v997, 0
      %v1035 = vsel %vm292, %v998, 0
      %v1038 = vsel %vm292, %v999, 0
      %v1041 = vsel %vm292, %v1000, 0
      %v1044 = vsel %vm292, %v1001, 0
      %v1047 = vsel %vm292, %v1002, 0
      %v1050 = vsel %vm292, %v1003, 0
      %v1053 = vsel %vm292, %v1004, 0
      %v1056 = vsel %vm292, %v1005, 0
      %v1059 = vsel %vm292, %v1006, 0
      %v1062 = vsel %vm292, %v1007, 0
      %v1065 = vsel %vm292, %v1008, 0
      %v1068 = vsel %vm292, %v1009, 0
      %v1071 = vsel %vm292, %v1010, 0
      %v1074 = vsel %vm292, %v1011, 0
      %v1077 = vsel %vm292, %v1012, 0
      %v1080 = vsel %vm292, %v1013, 0
      %v1083 = vsel %vm292, %v1014, 0
      %v1086 = vsel %vm292, %v1015, 0
      %v1089 = vsel %vm292, %v1016, 0
      %v1092 = vsel %vm292, %v1017, 0
      %v1095 = vsel %vm292, %v1018, 0
      %v1098 = vsel %vm292, %v1019, 0
      %v1101 = vsel %vm292, %v1020, 0
      %v1104 = vsel %vm292, %v1021, 0
      %v1107 = vsel %vm292, %v1022, 0
      %v1110 = vsel %vm292, %v1023, 0
      %v1113 = vsel %vm292, %v1024, 0
      %v1116 = vsel %vm292, %v1025, 0
      %v1119 = vsel %vm292, %v1026, 0
      %v1122 = vsel %vm292, %v1027, 0
      %v1125 = vsel %vm292, %v1028, 0
      %v1128 = vsel %vm389, %v1030, 0
      %1130 = vmatpush.msra.mxu0 0.0
      %1131 = vmatpush.msra.mxu0 0.0
      %1132 = vmatpush.msra.mxu0 0.0
      %1133 = vmatpush.msra.mxu0 0.0
      %1134 = vmatpush.msra.mxu0 0.0
      %1135 = vmatpush.msra.mxu0 0.0
      %1136 = vmatpush.msra.mxu0 0.0
      %1137 = vmatpush.msra.mxu0 0.0
      %1138 = vmatpush.msra.mxu0 0.0
      %1139 = vmatpush.msra.mxu0 0.0
      %1140 = vmatpush.msra.mxu0 0.0
      %1141 = vmatpush.msra.mxu0 0.0
      %1142 = vmatpush.msra.mxu0 0.0
      %1143 = vmatpush.msra.mxu0 0.0
      %1144 = vmatpush.msra.mxu0 0.0
      %1145 = vmatpush.msra.mxu0 %v1128
      %1146 = vmatmul.f32.gmra.mxu0 %v1032
      %v1147 = vpop.f32.mrf.mxu0
      %v1148 = vadd.f32 0.0, %v1147
      %1149 = vmatmul.f32.gmra.mxu0 %v1035
      %v1150 = vpop.f32.mrf.mxu0
      %v1151 = vadd.f32 0.0, %v1150
      %1152 = vmatmul.f32.gmra.mxu0 %v1038
      %v1153 = vpop.f32.mrf.mxu0
      %v1154 = vadd.f32 0.0, %v1153
      %1155 = vmatmul.f32.gmra.mxu0 %v1041
      %v1156 = vpop.f32.mrf.mxu0
      %v1157 = vadd.f32 0.0, %v1156
      %1158 = vmatmul.f32.gmra.mxu0 %v1044
      %v1159 = vpop.f32.mrf.mxu0
      %v1160 = vadd.f32 0.0, %v1159
      %1161 = vmatmul.f32.gmra.mxu0 %v1047
      %v1162 = vpop.f32.mrf.mxu0
      %v1163 = vadd.f32 0.0, %v1162
      %1164 = vmatmul.f32.gmra.mxu0 %v1050
      %v1165 = vpop.f32.mrf.mxu0
      %v1166 = vadd.f32 0.0, %v1165
      %1167 = vmatmul.f32.gmra.mxu0 %v1053
      %v1168 = vpop.f32.mrf.mxu0
      %v1169 = vadd.f32 0.0, %v1168
      %1170 = vmatmul.f32.gmra.mxu0 %v1056
      %v1171 = vpop.f32.mrf.mxu0
      %v1172 = vadd.f32 0.0, %v1171
      %1173 = vmatmul.f32.gmra.mxu0 %v1059
      %v1174 = vpop.f32.mrf.mxu0
      %v1175 = vadd.f32 0.0, %v1174
      %1176 = vmatmul.f32.gmra.mxu0 %v1062
      %v1177 = vpop.f32.mrf.mxu0
      %v1178 = vadd.f32 0.0, %v1177
      %1179 = vmatmul.f32.gmra.mxu0 %v1065
      %v1180 = vpop.f32.mrf.mxu0
      %v1181 = vadd.f32 0.0, %v1180
      %1182 = vmatmul.f32.gmra.mxu0 %v1068
      %v1183 = vpop.f32.mrf.mxu0
      %v1184 = vadd.f32 0.0, %v1183
      %1185 = vmatmul.f32.gmra.mxu0 %v1071
      %v1186 = vpop.f32.mrf.mxu0
      %v1187 = vadd.f32 0.0, %v1186
      %1188 = vmatmul.f32.gmra.mxu0 %v1074
      %v1189 = vpop.f32.mrf.mxu0
      %v1190 = vadd.f32 0.0, %v1189
      %1191 = vmatmul.f32.gmra.mxu0 %v1077
      %v1192 = vpop.f32.mrf.mxu0
      %v1193 = vadd.f32 0.0, %v1192
      %1194 = vmatmul.f32.gmra.mxu0 %v1080
      %v1195 = vpop.f32.mrf.mxu0
      %v1196 = vadd.f32 0.0, %v1195
      %1197 = vmatmul.f32.gmra.mxu0 %v1083
      %v1198 = vpop.f32.mrf.mxu0
      %v1199 = vadd.f32 0.0, %v1198
      %1200 = vmatmul.f32.gmra.mxu0 %v1086
      %v1201 = vpop.f32.mrf.mxu0
      %v1202 = vadd.f32 0.0, %v1201
      %1203 = vmatmul.f32.gmra.mxu0 %v1089
      %v1204 = vpop.f32.mrf.mxu0
      %v1205 = vadd.f32 0.0, %v1204
      %1206 = vmatmul.f32.gmra.mxu0 %v1092
      %v1207 = vpop.f32.mrf.mxu0
      %v1208 = vadd.f32 0.0, %v1207
      %1209 = vmatmul.f32.gmra.mxu0 %v1095
      %v1210 = vpop.f32.mrf.mxu0
      %v1211 = vadd.f32 0.0, %v1210
      %1212 = vmatmul.f32.gmra.mxu0 %v1098
      %v1213 = vpop.f32.mrf.mxu0
      %v1214 = vadd.f32 0.0, %v1213
      %1215 = vmatmul.f32.gmra.mxu0 %v1101
      %v1216 = vpop.f32.mrf.mxu0
      %v1217 = vadd.f32 0.0, %v1216
      %1218 = vmatmul.f32.gmra.mxu0 %v1104
      %v1219 = vpop.f32.mrf.mxu0
      %v1220 = vadd.f32 0.0, %v1219
      %1221 = vmatmul.f32.gmra.mxu0 %v1107
      %v1222 = vpop.f32.mrf.mxu0
      %v1223 = vadd.f32 0.0, %v1222
      %1224 = vmatmul.f32.gmra.mxu0 %v1110
      %v1225 = vpop.f32.mrf.mxu0
      %v1226 = vadd.f32 0.0, %v1225
      %1227 = vmatmul.f32.gmra.mxu0 %v1113
      %v1228 = vpop.f32.mrf.mxu0
      %v1229 = vadd.f32 0.0, %v1228
      %1230 = vmatmul.f32.gmra.mxu0 %v1116
      %v1231 = vpop.f32.mrf.mxu0
      %v1232 = vadd.f32 0.0, %v1231
      %1233 = vmatmul.f32.gmra.mxu0 %v1119
      %v1234 = vpop.f32.mrf.mxu0
      %v1235 = vadd.f32 0.0, %v1234
      %1236 = vmatmul.f32.gmra.mxu0 %v1122
      %v1237 = vpop.f32.mrf.mxu0
      %v1238 = vadd.f32 0.0, %v1237
      %1239 = vmatmul.f32.gmra.mxu0 %v1125
      %v1240 = vpop.f32.mrf.mxu0
      %v1241 = vadd.f32 0.0, %v1240
      %1242 = vdwg.mxu0
      %v1243 = vadd.f32 %v964, %v1148
      %v1244 = vadd.f32 %v965, %v1151
      %v1245 = vadd.f32 %v966, %v1154
      %v1246 = vadd.f32 %v967, %v1157
      %v1247 = vadd.f32 %v968, %v1160
      %v1248 = vadd.f32 %v969, %v1163
      %v1249 = vadd.f32 %v970, %v1166
      %v1250 = vadd.f32 %v971, %v1169
      %v1251 = vadd.f32 %v972, %v1172
      %v1252 = vadd.f32 %v973, %v1175
      %v1253 = vadd.f32 %v974, %v1178
      %v1254 = vadd.f32 %v975, %v1181
      %v1255 = vadd.f32 %v976, %v1184
      %v1256 = vadd.f32 %v977, %v1187
      %v1257 = vadd.f32 %v978, %v1190
      %v1258 = vadd.f32 %v979, %v1193
      %v1259 = vadd.f32 %v980, %v1196
      %v1260 = vadd.f32 %v981, %v1199
      %v1261 = vadd.f32 %v982, %v1202
      %v1262 = vadd.f32 %v983, %v1205
      %v1263 = vadd.f32 %v984, %v1208
      %v1264 = vadd.f32 %v985, %v1211
      %v1265 = vadd.f32 %v986, %v1214
      %v1266 = vadd.f32 %v987, %v1217
      %v1267 = vadd.f32 %v988, %v1220
      %v1268 = vadd.f32 %v989, %v1223
      %v1269 = vadd.f32 %v990, %v1226
      %v1270 = vadd.f32 %v991, %v1229
      %v1271 = vadd.f32 %v992, %v1232
      %v1272 = vadd.f32 %v993, %v1235
      %v1273 = vadd.f32 %v994, %v1238
      %v1274 = vadd.f32 %v995, %v1241
      %v1275 = vld [vmem:[%s996 + $0x1] sm:$0xff]
      %v1276 = vld [vmem:[%s996 + $0x9] sm:$0xff]
      %v1277 = vld [vmem:[%s996 + $0x19] sm:$0xff]
      %v1278 = vld [vmem:[%s996 + $0x21] sm:$0xff]
      %v1279 = vld [vmem:[%s996 + $0x31] sm:$0xff]
      %v1280 = vld [vmem:[%s996 + $0x39] sm:$0xff]
      %v1281 = vld [vmem:[%s996 + $0x49] sm:$0xff]
      %v1282 = vld [vmem:[%s996 + $0x51] sm:$0xff]
      %v1283 = vld [vmem:[%s996 + $0x61] sm:$0xff]
      %v1284 = vld [vmem:[%s996 + $0x69] sm:$0xff]
      %v1285 = vld [vmem:[%s996 + $0x79] sm:$0xff]
      %v1286 = vld [vmem:[%s996 + $0x81] sm:$0xff]
      %v1287 = vld [vmem:[%s996 + $0x91] sm:$0xff]
      %v1288 = vld [vmem:[%s996 + $0x99] sm:$0xff]
      %v1289 = vld [vmem:[%s996 + $0xa9] sm:$0xff]
      %v1290 = vld [vmem:[%s996 + $0xb1] sm:$0xff]
      %v1291 = vld [vmem:[%s996 + $0xc1] sm:$0xff]
      %v1292 = vld [vmem:[%s996 + $0xc9] sm:$0xff]
      %v1293 = vld [vmem:[%s996 + $0xd9] sm:$0xff]
      %v1294 = vld [vmem:[%s996 + $0xe1] sm:$0xff]
      %v1295 = vld [vmem:[%s996 + $0xf1] sm:$0xff]
      %v1296 = vld [vmem:[%s996 + $0xf9] sm:$0xff]
      %v1297 = vld [vmem:[%s996 + $0x109] sm:$0xff]
      %v1298 = vld [vmem:[%s996 + $0x111] sm:$0xff]
      %v1299 = vld [vmem:[%s996 + $0x121] sm:$0xff]
      %v1300 = vld [vmem:[%s996 + $0x129] sm:$0xff]
      %v1301 = vld [vmem:[%s996 + $0x139] sm:$0xff]
      %v1302 = vld [vmem:[%s996 + $0x141] sm:$0xff]
      %v1303 = vld [vmem:[%s996 + $0x151] sm:$0xff]
      %v1304 = vld [vmem:[%s996 + $0x159] sm:$0xff]
      %v1305 = vld [vmem:[%s996 + $0x169] sm:$0xff]
      %v1306 = vld [vmem:[%s996 + $0x171] sm:$0xff]
      %s1307 = scalar_lea.vmem %s1, 16
      %v1308 = vld [vmem:[%s1307] sm:$0xf]
      %v1310 = vsel %vm292, %v1275, 0
      %v1313 = vsel %vm292, %v1276, 0
      %v1316 = vsel %vm292, %v1277, 0
      %v1319 = vsel %vm292, %v1278, 0
      %v1322 = vsel %vm292, %v1279, 0
      %v1325 = vsel %vm292, %v1280, 0
      %v1328 = vsel %vm292, %v1281, 0
      %v1331 = vsel %vm292, %v1282, 0
      %v1334 = vsel %vm292, %v1283, 0
      %v1337 = vsel %vm292, %v1284, 0
      %v1340 = vsel %vm292, %v1285, 0
      %v1343 = vsel %vm292, %v1286, 0
      %v1346 = vsel %vm292, %v1287, 0
      %v1349 = vsel %vm292, %v1288, 0
      %v1352 = vsel %vm292, %v1289, 0
      %v1355 = vsel %vm292, %v1290, 0
      %v1358 = vsel %vm292, %v1291, 0
      %v1361 = vsel %vm292, %v1292, 0
      %v1364 = vsel %vm292, %v1293, 0
      %v1367 = vsel %vm292, %v1294, 0
      %v1370 = vsel %vm292, %v1295, 0
      %v1373 = vsel %vm292, %v1296, 0
      %v1376 = vsel %vm292, %v1297, 0
      %v1379 = vsel %vm292, %v1298, 0
      %v1382 = vsel %vm292, %v1299, 0
      %v1385 = vsel %vm292, %v1300, 0
      %v1388 = vsel %vm292, %v1301, 0
      %v1391 = vsel %vm292, %v1302, 0
      %v1394 = vsel %vm292, %v1303, 0
      %v1397 = vsel %vm292, %v1304, 0
      %v1400 = vsel %vm292, %v1305, 0
      %v1403 = vsel %vm292, %v1306, 0
      %v1406 = vsel %vm389, %v1308, 0
      %1408 = vmatpush.msra.mxu0 0.0
      %1409 = vmatpush.msra.mxu0 0.0
      %1410 = vmatpush.msra.mxu0 0.0
      %1411 = vmatpush.msra.mxu0 0.0
      %1412 = vmatpush.msra.mxu0 0.0
      %1413 = vmatpush.msra.mxu0 0.0
      %1414 = vmatpush.msra.mxu0 0.0
      %1415 = vmatpush.msra.mxu0 0.0
      %1416 = vmatpush.msra.mxu0 0.0
      %1417 = vmatpush.msra.mxu0 0.0
      %1418 = vmatpush.msra.mxu0 0.0
      %1419 = vmatpush.msra.mxu0 0.0
      %1420 = vmatpush.msra.mxu0 0.0
      %1421 = vmatpush.msra.mxu0 0.0
      %1422 = vmatpush.msra.mxu0 0.0
      %1423 = vmatpush.msra.mxu0 %v1406
      %1424 = vmatmul.f32.gmra.mxu0 %v1310
      %v1425 = vpop.f32.mrf.mxu0
      %v1426 = vadd.f32 0.0, %v1425
      %1427 = vmatmul.f32.gmra.mxu0 %v1313
      %v1428 = vpop.f32.mrf.mxu0
      %v1429 = vadd.f32 0.0, %v1428
      %1430 = vmatmul.f32.gmra.mxu0 %v1316
      %v1431 = vpop.f32.mrf.mxu0
      %v1432 = vadd.f32 0.0, %v1431
      %1433 = vmatmul.f32.gmra.mxu0 %v1319
      %v1434 = vpop.f32.mrf.mxu0
      %v1435 = vadd.f32 0.0, %v1434
      %1436 = vmatmul.f32.gmra.mxu0 %v1322
      %v1437 = vpop.f32.mrf.mxu0
      %v1438 = vadd.f32 0.0, %v1437
      %1439 = vmatmul.f32.gmra.mxu0 %v1325
      %v1440 = vpop.f32.mrf.mxu0
      %v1441 = vadd.f32 0.0, %v1440
      %1442 = vmatmul.f32.gmra.mxu0 %v1328
      %v1443 = vpop.f32.mrf.mxu0
      %v1444 = vadd.f32 0.0, %v1443
      %1445 = vmatmul.f32.gmra.mxu0 %v1331
      %v1446 = vpop.f32.mrf.mxu0
      %v1447 = vadd.f32 0.0, %v1446
      %1448 = vmatmul.f32.gmra.mxu0 %v1334
      %v1449 = vpop.f32.mrf.mxu0
      %v1450 = vadd.f32 0.0, %v1449
      %1451 = vmatmul.f32.gmra.mxu0 %v1337
      %v1452 = vpop.f32.mrf.mxu0
      %v1453 = vadd.f32 0.0, %v1452
      %1454 = vmatmul.f32.gmra.mxu0 %v1340
      %v1455 = vpop.f32.mrf.mxu0
      %v1456 = vadd.f32 0.0, %v1455
      %1457 = vmatmul.f32.gmra.mxu0 %v1343
      %v1458 = vpop.f32.mrf.mxu0
      %v1459 = vadd.f32 0.0, %v1458
      %1460 = vmatmul.f32.gmra.mxu0 %v1346
      %v1461 = vpop.f32.mrf.mxu0
      %v1462 = vadd.f32 0.0, %v1461
      %1463 = vmatmul.f32.gmra.mxu0 %v1349
      %v1464 = vpop.f32.mrf.mxu0
      %v1465 = vadd.f32 0.0, %v1464
      %1466 = vmatmul.f32.gmra.mxu0 %v1352
      %v1467 = vpop.f32.mrf.mxu0
      %v1468 = vadd.f32 0.0, %v1467
      %1469 = vmatmul.f32.gmra.mxu0 %v1355
      %v1470 = vpop.f32.mrf.mxu0
      %v1471 = vadd.f32 0.0, %v1470
      %1472 = vmatmul.f32.gmra.mxu0 %v1358
      %v1473 = vpop.f32.mrf.mxu0
      %v1474 = vadd.f32 0.0, %v1473
      %1475 = vmatmul.f32.gmra.mxu0 %v1361
      %v1476 = vpop.f32.mrf.mxu0
      %v1477 = vadd.f32 0.0, %v1476
      %1478 = vmatmul.f32.gmra.mxu0 %v1364
      %v1479 = vpop.f32.mrf.mxu0
      %v1480 = vadd.f32 0.0, %v1479
      %1481 = vmatmul.f32.gmra.mxu0 %v1367
      %v1482 = vpop.f32.mrf.mxu0
      %v1483 = vadd.f32 0.0, %v1482
      %1484 = vmatmul.f32.gmra.mxu0 %v1370
      %v1485 = vpop.f32.mrf.mxu0
      %v1486 = vadd.f32 0.0, %v1485
      %1487 = vmatmul.f32.gmra.mxu0 %v1373
      %v1488 = vpop.f32.mrf.mxu0
      %v1489 = vadd.f32 0.0, %v1488
      %1490 = vmatmul.f32.gmra.mxu0 %v1376
      %v1491 = vpop.f32.mrf.mxu0
      %v1492 = vadd.f32 0.0, %v1491
      %1493 = vmatmul.f32.gmra.mxu0 %v1379
      %v1494 = vpop.f32.mrf.mxu0
      %v1495 = vadd.f32 0.0, %v1494
      %1496 = vmatmul.f32.gmra.mxu0 %v1382
      %v1497 = vpop.f32.mrf.mxu0
      %v1498 = vadd.f32 0.0, %v1497
      %1499 = vmatmul.f32.gmra.mxu0 %v1385
      %v1500 = vpop.f32.mrf.mxu0
      %v1501 = vadd.f32 0.0, %v1500
      %1502 = vmatmul.f32.gmra.mxu0 %v1388
      %v1503 = vpop.f32.mrf.mxu0
      %v1504 = vadd.f32 0.0, %v1503
      %1505 = vmatmul.f32.gmra.mxu0 %v1391
      %v1506 = vpop.f32.mrf.mxu0
      %v1507 = vadd.f32 0.0, %v1506
      %1508 = vmatmul.f32.gmra.mxu0 %v1394
      %v1509 = vpop.f32.mrf.mxu0
      %v1510 = vadd.f32 0.0, %v1509
      %1511 = vmatmul.f32.gmra.mxu0 %v1397
      %v1512 = vpop.f32.mrf.mxu0
      %v1513 = vadd.f32 0.0, %v1512
      %1514 = vmatmul.f32.gmra.mxu0 %v1400
      %v1515 = vpop.f32.mrf.mxu0
      %v1516 = vadd.f32 0.0, %v1515
      %1517 = vmatmul.f32.gmra.mxu0 %v1403
      %v1518 = vpop.f32.mrf.mxu0
      %v1519 = vadd.f32 0.0, %v1518
      %1520 = vdwg.mxu0
      %v1521 = vadd.f32 %v1243, %v1426
      %v1522 = vadd.f32 %v1244, %v1429
      %v1523 = vadd.f32 %v1245, %v1432
      %v1524 = vadd.f32 %v1246, %v1435
      %v1525 = vadd.f32 %v1247, %v1438
      %v1526 = vadd.f32 %v1248, %v1441
      %v1527 = vadd.f32 %v1249, %v1444
      %v1528 = vadd.f32 %v1250, %v1447
      %v1529 = vadd.f32 %v1251, %v1450
      %v1530 = vadd.f32 %v1252, %v1453
      %v1531 = vadd.f32 %v1253, %v1456
      %v1532 = vadd.f32 %v1254, %v1459
      %v1533 = vadd.f32 %v1255, %v1462
      %v1534 = vadd.f32 %v1256, %v1465
      %v1535 = vadd.f32 %v1257, %v1468
      %v1536 = vadd.f32 %v1258, %v1471
      %v1537 = vadd.f32 %v1259, %v1474
      %v1538 = vadd.f32 %v1260, %v1477
      %v1539 = vadd.f32 %v1261, %v1480
      %v1540 = vadd.f32 %v1262, %v1483
      %v1541 = vadd.f32 %v1263, %v1486
      %v1542 = vadd.f32 %v1264, %v1489
      %v1543 = vadd.f32 %v1265, %v1492
      %v1544 = vadd.f32 %v1266, %v1495
      %v1545 = vadd.f32 %v1267, %v1498
      %v1546 = vadd.f32 %v1268, %v1501
      %v1547 = vadd.f32 %v1269, %v1504
      %v1548 = vadd.f32 %v1270, %v1507
      %v1549 = vadd.f32 %v1271, %v1510
      %v1550 = vadd.f32 %v1272, %v1513
      %v1551 = vadd.f32 %v1273, %v1516
      %v1552 = vadd.f32 %v1274, %v1519
      %v1553 = vld [vmem:[%s996 + $0x2] sm:$0xff]
      %v1554 = vld [vmem:[%s996 + $0xa] sm:$0xff]
      %v1555 = vld [vmem:[%s996 + $0x1a] sm:$0xff]
      %v1556 = vld [vmem:[%s996 + $0x22] sm:$0xff]
      %v1557 = vld [vmem:[%s996 + $0x32] sm:$0xff]
      %v1558 = vld [vmem:[%s996 + $0x3a] sm:$0xff]
      %v1559 = vld [vmem:[%s996 + $0x4a] sm:$0xff]
      %v1560 = vld [vmem:[%s996 + $0x52] sm:$0xff]
      %v1561 = vld [vmem:[%s996 + $0x62] sm:$0xff]
      %v1562 = vld [vmem:[%s996 + $0x6a] sm:$0xff]
      %v1563 = vld [vmem:[%s996 + $0x7a] sm:$0xff]
      %v1564 = vld [vmem:[%s996 + $0x82] sm:$0xff]
      %v1565 = vld [vmem:[%s996 + $0x92] sm:$0xff]
      %v1566 = vld [vmem:[%s996 + $0x9a] sm:$0xff]
      %v1567 = vld [vmem:[%s996 + $0xaa] sm:$0xff]
      %v1568 = vld [vmem:[%s996 + $0xb2] sm:$0xff]
      %v1569 = vld [vmem:[%s996 + $0xc2] sm:$0xff]
      %v1570 = vld [vmem:[%s996 + $0xca] sm:$0xff]
      %v1571 = vld [vmem:[%s996 + $0xda] sm:$0xff]
      %v1572 = vld [vmem:[%s996 + $0xe2] sm:$0xff]
      %v1573 = vld [vmem:[%s996 + $0xf2] sm:$0xff]
      %v1574 = vld [vmem:[%s996 + $0xfa] sm:$0xff]
      %v1575 = vld [vmem:[%s996 + $0x10a] sm:$0xff]
      %v1576 = vld [vmem:[%s996 + $0x112] sm:$0xff]
      %v1577 = vld [vmem:[%s996 + $0x122] sm:$0xff]
      %v1578 = vld [vmem:[%s996 + $0x12a] sm:$0xff]
      %v1579 = vld [vmem:[%s996 + $0x13a] sm:$0xff]
      %v1580 = vld [vmem:[%s996 + $0x142] sm:$0xff]
      %v1581 = vld [vmem:[%s996 + $0x152] sm:$0xff]
      %v1582 = vld [vmem:[%s996 + $0x15a] sm:$0xff]
      %v1583 = vld [vmem:[%s996 + $0x16a] sm:$0xff]
      %v1584 = vld [vmem:[%s996 + $0x172] sm:$0xff]
      %s1585 = scalar_lea.vmem %s1, 20
      %v1586 = vld [vmem:[%s1585] sm:$0xf]
      %v1588 = vsel %vm292, %v1553, 0
      %v1591 = vsel %vm292, %v1554, 0
      %v1594 = vsel %vm292, %v1555, 0
      %v1597 = vsel %vm292, %v1556, 0
      %v1600 = vsel %vm292, %v1557, 0
      %v1603 = vsel %vm292, %v1558, 0
      %v1606 = vsel %vm292, %v1559, 0
      %v1609 = vsel %vm292, %v1560, 0
      %v1612 = vsel %vm292, %v1561, 0
      %v1615 = vsel %vm292, %v1562, 0
      %v1618 = vsel %vm292, %v1563, 0
      %v1621 = vsel %vm292, %v1564, 0
      %v1624 = vsel %vm292, %v1565, 0
      %v1627 = vsel %vm292, %v1566, 0
      %v1630 = vsel %vm292, %v1567, 0
      %v1633 = vsel %vm292, %v1568, 0
      %v1636 = vsel %vm292, %v1569, 0
      %v1639 = vsel %vm292, %v1570, 0
      %v1642 = vsel %vm292, %v1571, 0
      %v1645 = vsel %vm292, %v1572, 0
      %v1648 = vsel %vm292, %v1573, 0
      %v1651 = vsel %vm292, %v1574, 0
      %v1654 = vsel %vm292, %v1575, 0
      %v1657 = vsel %vm292, %v1576, 0
      %v1660 = vsel %vm292, %v1577, 0
      %v1663 = vsel %vm292, %v1578, 0
      %v1666 = vsel %vm292, %v1579, 0
      %v1669 = vsel %vm292, %v1580, 0
      %v1672 = vsel %vm292, %v1581, 0
      %v1675 = vsel %vm292, %v1582, 0
      %v1678 = vsel %vm292, %v1583, 0
      %v1681 = vsel %vm292, %v1584, 0
      %v1684 = vsel %vm389, %v1586, 0
      %1686 = vmatpush.msra.mxu0 0.0
      %1687 = vmatpush.msra.mxu0 0.0
      %1688 = vmatpush.msra.mxu0 0.0
      %1689 = vmatpush.msra.mxu0 0.0
      %1690 = vmatpush.msra.mxu0 0.0
      %1691 = vmatpush.msra.mxu0 0.0
      %1692 = vmatpush.msra.mxu0 0.0
      %1693 = vmatpush.msra.mxu0 0.0
      %1694 = vmatpush.msra.mxu0 0.0
      %1695 = vmatpush.msra.mxu0 0.0
      %1696 = vmatpush.msra.mxu0 0.0
      %1697 = vmatpush.msra.mxu0 0.0
      %1698 = vmatpush.msra.mxu0 0.0
      %1699 = vmatpush.msra.mxu0 0.0
      %1700 = vmatpush.msra.mxu0 0.0
      %1701 = vmatpush.msra.mxu0 %v1684
      %1702 = vmatmul.f32.gmra.mxu0 %v1588
      %v1703 = vpop.f32.mrf.mxu0
      %v1704 = vadd.f32 0.0, %v1703
      %1705 = vmatmul.f32.gmra.mxu0 %v1591
      %v1706 = vpop.f32.mrf.mxu0
      %v1707 = vadd.f32 0.0, %v1706
      %1708 = vmatmul.f32.gmra.mxu0 %v1594
      %v1709 = vpop.f32.mrf.mxu0
      %v1710 = vadd.f32 0.0, %v1709
      %1711 = vmatmul.f32.gmra.mxu0 %v1597
      %v1712 = vpop.f32.mrf.mxu0
      %v1713 = vadd.f32 0.0, %v1712
      %1714 = vmatmul.f32.gmra.mxu0 %v1600
      %v1715 = vpop.f32.mrf.mxu0
      %v1716 = vadd.f32 0.0, %v1715
      %1717 = vmatmul.f32.gmra.mxu0 %v1603
      %v1718 = vpop.f32.mrf.mxu0
      %v1719 = vadd.f32 0.0, %v1718
      %1720 = vmatmul.f32.gmra.mxu0 %v1606
      %v1721 = vpop.f32.mrf.mxu0
      %v1722 = vadd.f32 0.0, %v1721
      %1723 = vmatmul.f32.gmra.mxu0 %v1609
      %v1724 = vpop.f32.mrf.mxu0
      %v1725 = vadd.f32 0.0, %v1724
      %1726 = vmatmul.f32.gmra.mxu0 %v1612
      %v1727 = vpop.f32.mrf.mxu0
      %v1728 = vadd.f32 0.0, %v1727
      %1729 = vmatmul.f32.gmra.mxu0 %v1615
      %v1730 = vpop.f32.mrf.mxu0
      %v1731 = vadd.f32 0.0, %v1730
      %1732 = vmatmul.f32.gmra.mxu0 %v1618
      %v1733 = vpop.f32.mrf.mxu0
      %v1734 = vadd.f32 0.0, %v1733
      %1735 = vmatmul.f32.gmra.mxu0 %v1621
      %v1736 = vpop.f32.mrf.mxu0
      %v1737 = vadd.f32 0.0, %v1736
      %1738 = vmatmul.f32.gmra.mxu0 %v1624
      %v1739 = vpop.f32.mrf.mxu0
      %v1740 = vadd.f32 0.0, %v1739
      %1741 = vmatmul.f32.gmra.mxu0 %v1627
      %v1742 = vpop.f32.mrf.mxu0
      %v1743 = vadd.f32 0.0, %v1742
      %1744 = vmatmul.f32.gmra.mxu0 %v1630
      %v1745 = vpop.f32.mrf.mxu0
      %v1746 = vadd.f32 0.0, %v1745
      %1747 = vmatmul.f32.gmra.mxu0 %v1633
      %v1748 = vpop.f32.mrf.mxu0
      %v1749 = vadd.f32 0.0, %v1748
      %1750 = vmatmul.f32.gmra.mxu0 %v1636
      %v1751 = vpop.f32.mrf.mxu0
      %v1752 = vadd.f32 0.0, %v1751
      %1753 = vmatmul.f32.gmra.mxu0 %v1639
      %v1754 = vpop.f32.mrf.mxu0
      %v1755 = vadd.f32 0.0, %v1754
      %1756 = vmatmul.f32.gmra.mxu0 %v1642
      %v1757 = vpop.f32.mrf.mxu0
      %v1758 = vadd.f32 0.0, %v1757
      %1759 = vmatmul.f32.gmra.mxu0 %v1645
      %v1760 = vpop.f32.mrf.mxu0
      %v1761 = vadd.f32 0.0, %v1760
      %1762 = vmatmul.f32.gmra.mxu0 %v1648
      %v1763 = vpop.f32.mrf.mxu0
      %v1764 = vadd.f32 0.0, %v1763
      %1765 = vmatmul.f32.gmra.mxu0 %v1651
      %v1766 = vpop.f32.mrf.mxu0
      %v1767 = vadd.f32 0.0, %v1766
      %1768 = vmatmul.f32.gmra.mxu0 %v1654
      %v1769 = vpop.f32.mrf.mxu0
      %v1770 = vadd.f32 0.0, %v1769
      %1771 = vmatmul.f32.gmra.mxu0 %v1657
      %v1772 = vpop.f32.mrf.mxu0
      %v1773 = vadd.f32 0.0, %v1772
      %1774 = vmatmul.f32.gmra.mxu0 %v1660
      %v1775 = vpop.f32.mrf.mxu0
      %v1776 = vadd.f32 0.0, %v1775
      %1777 = vmatmul.f32.gmra.mxu0 %v1663
      %v1778 = vpop.f32.mrf.mxu0
      %v1779 = vadd.f32 0.0, %v1778
      %1780 = vmatmul.f32.gmra.mxu0 %v1666
      %v1781 = vpop.f32.mrf.mxu0
      %v1782 = vadd.f32 0.0, %v1781
      %1783 = vmatmul.f32.gmra.mxu0 %v1669
      %v1784 = vpop.f32.mrf.mxu0
      %v1785 = vadd.f32 0.0, %v1784
      %1786 = vmatmul.f32.gmra.mxu0 %v1672
      %v1787 = vpop.f32.mrf.mxu0
      %v1788 = vadd.f32 0.0, %v1787
      %1789 = vmatmul.f32.gmra.mxu0 %v1675
      %v1790 = vpop.f32.mrf.mxu0
      %v1791 = vadd.f32 0.0, %v1790
      %1792 = vmatmul.f32.gmra.mxu0 %v1678
      %v1793 = vpop.f32.mrf.mxu0
      %v1794 = vadd.f32 0.0, %v1793
      %1795 = vmatmul.f32.gmra.mxu0 %v1681
      %v1796 = vpop.f32.mrf.mxu0
      %v1797 = vadd.f32 0.0, %v1796
      %1798 = vdwg.mxu0
      %v1799 = vadd.f32 %v1521, %v1704
      %v1800 = vadd.f32 %v1522, %v1707
      %v1801 = vadd.f32 %v1523, %v1710
      %v1802 = vadd.f32 %v1524, %v1713
      %v1803 = vadd.f32 %v1525, %v1716
      %v1804 = vadd.f32 %v1526, %v1719
      %v1805 = vadd.f32 %v1527, %v1722
      %v1806 = vadd.f32 %v1528, %v1725
      %v1807 = vadd.f32 %v1529, %v1728
      %v1808 = vadd.f32 %v1530, %v1731
      %v1809 = vadd.f32 %v1531, %v1734
      %v1810 = vadd.f32 %v1532, %v1737
      %v1811 = vadd.f32 %v1533, %v1740
      %v1812 = vadd.f32 %v1534, %v1743
      %v1813 = vadd.f32 %v1535, %v1746
      %v1814 = vadd.f32 %v1536, %v1749
      %v1815 = vadd.f32 %v1537, %v1752
      %v1816 = vadd.f32 %v1538, %v1755
      %v1817 = vadd.f32 %v1539, %v1758
      %v1818 = vadd.f32 %v1540, %v1761
      %v1819 = vadd.f32 %v1541, %v1764
      %v1820 = vadd.f32 %v1542, %v1767
      %v1821 = vadd.f32 %v1543, %v1770
      %v1822 = vadd.f32 %v1544, %v1773
      %v1823 = vadd.f32 %v1545, %v1776
      %v1824 = vadd.f32 %v1546, %v1779
      %v1825 = vadd.f32 %v1547, %v1782
      %v1826 = vadd.f32 %v1548, %v1785
      %v1827 = vadd.f32 %v1549, %v1788
      %v1828 = vadd.f32 %v1550, %v1791
      %v1829 = vadd.f32 %v1551, %v1794
      %v1830 = vadd.f32 %v1552, %v1797
      %s1831 = scalar_lea.vmem %s219, 48
      %v1832 = vld [vmem:[%s1831] sm:$0xff]
      %v1833 = vld [vmem:[%s1831 + $0x8] sm:$0xff]
      %v1834 = vld [vmem:[%s1831 + $0x18] sm:$0xff]
      %v1835 = vld [vmem:[%s1831 + $0x20] sm:$0xff]
      %v1836 = vld [vmem:[%s1831 + $0x30] sm:$0xff]
      %v1837 = vld [vmem:[%s1831 + $0x38] sm:$0xff]
      %v1838 = vld [vmem:[%s1831 + $0x48] sm:$0xff]
      %v1839 = vld [vmem:[%s1831 + $0x50] sm:$0xff]
      %v1840 = vld [vmem:[%s1831 + $0x60] sm:$0xff]
      %v1841 = vld [vmem:[%s1831 + $0x68] sm:$0xff]
      %v1842 = vld [vmem:[%s1831 + $0x78] sm:$0xff]
      %v1843 = vld [vmem:[%s1831 + $0x80] sm:$0xff]
      %v1844 = vld [vmem:[%s1831 + $0x90] sm:$0xff]
      %v1845 = vld [vmem:[%s1831 + $0x98] sm:$0xff]
      %v1846 = vld [vmem:[%s1831 + $0xa8] sm:$0xff]
      %v1847 = vld [vmem:[%s1831 + $0xb0] sm:$0xff]
      %v1848 = vld [vmem:[%s1831 + $0xc0] sm:$0xff]
      %v1849 = vld [vmem:[%s1831 + $0xc8] sm:$0xff]
      %v1850 = vld [vmem:[%s1831 + $0xd8] sm:$0xff]
      %v1851 = vld [vmem:[%s1831 + $0xe0] sm:$0xff]
      %v1852 = vld [vmem:[%s1831 + $0xf0] sm:$0xff]
      %v1853 = vld [vmem:[%s1831 + $0xf8] sm:$0xff]
      %v1854 = vld [vmem:[%s1831 + $0x108] sm:$0xff]
      %v1855 = vld [vmem:[%s1831 + $0x110] sm:$0xff]
      %v1856 = vld [vmem:[%s1831 + $0x120] sm:$0xff]
      %v1857 = vld [vmem:[%s1831 + $0x128] sm:$0xff]
      %v1858 = vld [vmem:[%s1831 + $0x138] sm:$0xff]
      %v1859 = vld [vmem:[%s1831 + $0x140] sm:$0xff]
      %v1860 = vld [vmem:[%s1831 + $0x150] sm:$0xff]
      %v1861 = vld [vmem:[%s1831 + $0x158] sm:$0xff]
      %v1862 = vld [vmem:[%s1831 + $0x168] sm:$0xff]
      %v1863 = vld [vmem:[%s1831 + $0x170] sm:$0xff]
      %s1864 = scalar_lea.vmem %s1, 24
      %v1865 = vld [vmem:[%s1864] sm:$0xf]
      %v1867 = vsel %vm292, %v1832, 0
      %v1870 = vsel %vm292, %v1833, 0
      %v1873 = vsel %vm292, %v1834, 0
      %v1876 = vsel %vm292, %v1835, 0
      %v1879 = vsel %vm292, %v1836, 0
      %v1882 = vsel %vm292, %v1837, 0
      %v1885 = vsel %vm292, %v1838, 0
      %v1888 = vsel %vm292, %v1839, 0
      %v1891 = vsel %vm292, %v1840, 0
      %v1894 = vsel %vm292, %v1841, 0
      %v1897 = vsel %vm292, %v1842, 0
      %v1900 = vsel %vm292, %v1843, 0
      %v1903 = vsel %vm292, %v1844, 0
      %v1906 = vsel %vm292, %v1845, 0
      %v1909 = vsel %vm292, %v1846, 0
      %v1912 = vsel %vm292, %v1847, 0
      %v1915 = vsel %vm292, %v1848, 0
      %v1918 = vsel %vm292, %v1849, 0
      %v1921 = vsel %vm292, %v1850, 0
      %v1924 = vsel %vm292, %v1851, 0
      %v1927 = vsel %vm292, %v1852, 0
      %v1930 = vsel %vm292, %v1853, 0
      %v1933 = vsel %vm292, %v1854, 0
      %v1936 = vsel %vm292, %v1855, 0
      %v1939 = vsel %vm292, %v1856, 0
      %v1942 = vsel %vm292, %v1857, 0
      %v1945 = vsel %vm292, %v1858, 0
      %v1948 = vsel %vm292, %v1859, 0
      %v1951 = vsel %vm292, %v1860, 0
      %v1954 = vsel %vm292, %v1861, 0
      %v1957 = vsel %vm292, %v1862, 0
      %v1960 = vsel %vm292, %v1863, 0
      %v1963 = vsel %vm389, %v1865, 0
      %1965 = vmatpush.msra.mxu0 0.0
      %1966 = vmatpush.msra.mxu0 0.0
      %1967 = vmatpush.msra.mxu0 0.0
      %1968 = vmatpush.msra.mxu0 0.0
      %1969 = vmatpush.msra.mxu0 0.0
      %1970 = vmatpush.msra.mxu0 0.0
      %1971 = vmatpush.msra.mxu0 0.0
      %1972 = vmatpush.msra.mxu0 0.0
      %1973 = vmatpush.msra.mxu0 0.0
      %1974 = vmatpush.msra.mxu0 0.0
      %1975 = vmatpush.msra.mxu0 0.0
      %1976 = vmatpush.msra.mxu0 0.0
      %1977 = vmatpush.msra.mxu0 0.0
      %1978 = vmatpush.msra.mxu0 0.0
      %1979 = vmatpush.msra.mxu0 0.0
      %1980 = vmatpush.msra.mxu0 %v1963
      %1981 = vmatmul.f32.gmra.mxu0 %v1867
      %v1982 = vpop.f32.mrf.mxu0
      %v1983 = vadd.f32 0.0, %v1982
      %1984 = vmatmul.f32.gmra.mxu0 %v1870
      %v1985 = vpop.f32.mrf.mxu0
      %v1986 = vadd.f32 0.0, %v1985
      %1987 = vmatmul.f32.gmra.mxu0 %v1873
      %v1988 = vpop.f32.mrf.mxu0
      %v1989 = vadd.f32 0.0, %v1988
      %1990 = vmatmul.f32.gmra.mxu0 %v1876
      %v1991 = vpop.f32.mrf.mxu0
      %v1992 = vadd.f32 0.0, %v1991
      %1993 = vmatmul.f32.gmra.mxu0 %v1879
      %v1994 = vpop.f32.mrf.mxu0
      %v1995 = vadd.f32 0.0, %v1994
      %1996 = vmatmul.f32.gmra.mxu0 %v1882
      %v1997 = vpop.f32.mrf.mxu0
      %v1998 = vadd.f32 0.0, %v1997
      %1999 = vmatmul.f32.gmra.mxu0 %v1885
      %v2000 = vpop.f32.mrf.mxu0
      %v2001 = vadd.f32 0.0, %v2000
      %2002 = vmatmul.f32.gmra.mxu0 %v1888
      %v2003 = vpop.f32.mrf.mxu0
      %v2004 = vadd.f32 0.0, %v2003
      %2005 = vmatmul.f32.gmra.mxu0 %v1891
      %v2006 = vpop.f32.mrf.mxu0
      %v2007 = vadd.f32 0.0, %v2006
      %2008 = vmatmul.f32.gmra.mxu0 %v1894
      %v2009 = vpop.f32.mrf.mxu0
      %v2010 = vadd.f32 0.0, %v2009
      %2011 = vmatmul.f32.gmra.mxu0 %v1897
      %v2012 = vpop.f32.mrf.mxu0
      %v2013 = vadd.f32 0.0, %v2012
      %2014 = vmatmul.f32.gmra.mxu0 %v1900
      %v2015 = vpop.f32.mrf.mxu0
      %v2016 = vadd.f32 0.0, %v2015
      %2017 = vmatmul.f32.gmra.mxu0 %v1903
      %v2018 = vpop.f32.mrf.mxu0
      %v2019 = vadd.f32 0.0, %v2018
      %2020 = vmatmul.f32.gmra.mxu0 %v1906
      %v2021 = vpop.f32.mrf.mxu0
      %v2022 = vadd.f32 0.0, %v2021
      %2023 = vmatmul.f32.gmra.mxu0 %v1909
      %v2024 = vpop.f32.mrf.mxu0
      %v2025 = vadd.f32 0.0, %v2024
      %2026 = vmatmul.f32.gmra.mxu0 %v1912
      %v2027 = vpop.f32.mrf.mxu0
      %v2028 = vadd.f32 0.0, %v2027
      %2029 = vmatmul.f32.gmra.mxu0 %v1915
      %v2030 = vpop.f32.mrf.mxu0
      %v2031 = vadd.f32 0.0, %v2030
      %2032 = vmatmul.f32.gmra.mxu0 %v1918
      %v2033 = vpop.f32.mrf.mxu0
      %v2034 = vadd.f32 0.0, %v2033
      %2035 = vmatmul.f32.gmra.mxu0 %v1921
      %v2036 = vpop.f32.mrf.mxu0
      %v2037 = vadd.f32 0.0, %v2036
      %2038 = vmatmul.f32.gmra.mxu0 %v1924
      %v2039 = vpop.f32.mrf.mxu0
      %v2040 = vadd.f32 0.0, %v2039
      %2041 = vmatmul.f32.gmra.mxu0 %v1927
      %v2042 = vpop.f32.mrf.mxu0
      %v2043 = vadd.f32 0.0, %v2042
      %2044 = vmatmul.f32.gmra.mxu0 %v1930
      %v2045 = vpop.f32.mrf.mxu0
      %v2046 = vadd.f32 0.0, %v2045
      %2047 = vmatmul.f32.gmra.mxu0 %v1933
      %v2048 = vpop.f32.mrf.mxu0
      %v2049 = vadd.f32 0.0, %v2048
      %2050 = vmatmul.f32.gmra.mxu0 %v1936
      %v2051 = vpop.f32.mrf.mxu0
      %v2052 = vadd.f32 0.0, %v2051
      %2053 = vmatmul.f32.gmra.mxu0 %v1939
      %v2054 = vpop.f32.mrf.mxu0
      %v2055 = vadd.f32 0.0, %v2054
      %2056 = vmatmul.f32.gmra.mxu0 %v1942
      %v2057 = vpop.f32.mrf.mxu0
      %v2058 = vadd.f32 0.0, %v2057
      %2059 = vmatmul.f32.gmra.mxu0 %v1945
      %v2060 = vpop.f32.mrf.mxu0
      %v2061 = vadd.f32 0.0, %v2060
      %2062 = vmatmul.f32.gmra.mxu0 %v1948
      %v2063 = vpop.f32.mrf.mxu0
      %v2064 = vadd.f32 0.0, %v2063
      %2065 = vmatmul.f32.gmra.mxu0 %v1951
      %v2066 = vpop.f32.mrf.mxu0
      %v2067 = vadd.f32 0.0, %v2066
      %2068 = vmatmul.f32.gmra.mxu0 %v1954
      %v2069 = vpop.f32.mrf.mxu0
      %v2070 = vadd.f32 0.0, %v2069
      %2071 = vmatmul.f32.gmra.mxu0 %v1957
      %v2072 = vpop.f32.mrf.mxu0
      %v2073 = vadd.f32 0.0, %v2072
      %2074 = vmatmul.f32.gmra.mxu0 %v1960
      %v2075 = vpop.f32.mrf.mxu0
      %v2076 = vadd.f32 0.0, %v2075
      %2077 = vdwg.mxu0
      %v2078 = vadd.f32 %v1799, %v1983
      %v2079 = vadd.f32 %v1800, %v1986
      %v2080 = vadd.f32 %v1801, %v1989
      %v2081 = vadd.f32 %v1802, %v1992
      %v2082 = vadd.f32 %v1803, %v1995
      %v2083 = vadd.f32 %v1804, %v1998
      %v2084 = vadd.f32 %v1805, %v2001
      %v2085 = vadd.f32 %v1806, %v2004
      %v2086 = vadd.f32 %v1807, %v2007
      %v2087 = vadd.f32 %v1808, %v2010
      %v2088 = vadd.f32 %v1809, %v2013
      %v2089 = vadd.f32 %v1810, %v2016
      %v2090 = vadd.f32 %v1811, %v2019
      %v2091 = vadd.f32 %v1812, %v2022
      %v2092 = vadd.f32 %v1813, %v2025
      %v2093 = vadd.f32 %v1814, %v2028
      %v2094 = vadd.f32 %v1815, %v2031
      %v2095 = vadd.f32 %v1816, %v2034
      %v2096 = vadd.f32 %v1817, %v2037
      %v2097 = vadd.f32 %v1818, %v2040
      %v2098 = vadd.f32 %v1819, %v2043
      %v2099 = vadd.f32 %v1820, %v2046
      %v2100 = vadd.f32 %v1821, %v2049
      %v2101 = vadd.f32 %v1822, %v2052
      %v2102 = vadd.f32 %v1823, %v2055
      %v2103 = vadd.f32 %v1824, %v2058
      %v2104 = vadd.f32 %v1825, %v2061
      %v2105 = vadd.f32 %v1826, %v2064
      %v2106 = vadd.f32 %v1827, %v2067
      %v2107 = vadd.f32 %v1828, %v2070
      %v2108 = vadd.f32 %v1829, %v2073
      %v2109 = vadd.f32 %v1830, %v2076
      %v2110 = vld [vmem:[%s1831 + $0x1] sm:$0xff]
      %v2111 = vld [vmem:[%s1831 + $0x9] sm:$0xff]
      %v2112 = vld [vmem:[%s1831 + $0x19] sm:$0xff]
      %v2113 = vld [vmem:[%s1831 + $0x21] sm:$0xff]
      %v2114 = vld [vmem:[%s1831 + $0x31] sm:$0xff]
      %v2115 = vld [vmem:[%s1831 + $0x39] sm:$0xff]
      %v2116 = vld [vmem:[%s1831 + $0x49] sm:$0xff]
      %v2117 = vld [vmem:[%s1831 + $0x51] sm:$0xff]
      %v2118 = vld [vmem:[%s1831 + $0x61] sm:$0xff]
      %v2119 = vld [vmem:[%s1831 + $0x69] sm:$0xff]
      %v2120 = vld [vmem:[%s1831 + $0x79] sm:$0xff]
      %v2121 = vld [vmem:[%s1831 + $0x81] sm:$0xff]
      %v2122 = vld [vmem:[%s1831 + $0x91] sm:$0xff]
      %v2123 = vld [vmem:[%s1831 + $0x99] sm:$0xff]
      %v2124 = vld [vmem:[%s1831 + $0xa9] sm:$0xff]
      %v2125 = vld [vmem:[%s1831 + $0xb1] sm:$0xff]
      %v2126 = vld [vmem:[%s1831 + $0xc1] sm:$0xff]
      %v2127 = vld [vmem:[%s1831 + $0xc9] sm:$0xff]
      %v2128 = vld [vmem:[%s1831 + $0xd9] sm:$0xff]
      %v2129 = vld [vmem:[%s1831 + $0xe1] sm:$0xff]
      %v2130 = vld [vmem:[%s1831 + $0xf1] sm:$0xff]
      %v2131 = vld [vmem:[%s1831 + $0xf9] sm:$0xff]
      %v2132 = vld [vmem:[%s1831 + $0x109] sm:$0xff]
      %v2133 = vld [vmem:[%s1831 + $0x111] sm:$0xff]
      %v2134 = vld [vmem:[%s1831 + $0x121] sm:$0xff]
      %v2135 = vld [vmem:[%s1831 + $0x129] sm:$0xff]
      %v2136 = vld [vmem:[%s1831 + $0x139] sm:$0xff]
      %v2137 = vld [vmem:[%s1831 + $0x141] sm:$0xff]
      %v2138 = vld [vmem:[%s1831 + $0x151] sm:$0xff]
      %v2139 = vld [vmem:[%s1831 + $0x159] sm:$0xff]
      %v2140 = vld [vmem:[%s1831 + $0x169] sm:$0xff]
      %v2141 = vld [vmem:[%s1831 + $0x171] sm:$0xff]
      %s2142 = scalar_lea.vmem %s1, 28
      %v2143 = vld [vmem:[%s2142] sm:$0xf]
      %v2145 = vsel %vm292, %v2110, 0
      %v2148 = vsel %vm292, %v2111, 0
      %v2151 = vsel %vm292, %v2112, 0
      %v2154 = vsel %vm292, %v2113, 0
      %v2157 = vsel %vm292, %v2114, 0
      %v2160 = vsel %vm292, %v2115, 0
      %v2163 = vsel %vm292, %v2116, 0
      %v2166 = vsel %vm292, %v2117, 0
      %v2169 = vsel %vm292, %v2118, 0
      %v2172 = vsel %vm292, %v2119, 0
      %v2175 = vsel %vm292, %v2120, 0
      %v2178 = vsel %vm292, %v2121, 0
      %v2181 = vsel %vm292, %v2122, 0
      %v2184 = vsel %vm292, %v2123, 0
      %v2187 = vsel %vm292, %v2124, 0
      %v2190 = vsel %vm292, %v2125, 0
      %v2193 = vsel %vm292, %v2126, 0
      %v2196 = vsel %vm292, %v2127, 0
      %v2199 = vsel %vm292, %v2128, 0
      %v2202 = vsel %vm292, %v2129, 0
      %v2205 = vsel %vm292, %v2130, 0
      %v2208 = vsel %vm292, %v2131, 0
      %v2211 = vsel %vm292, %v2132, 0
      %v2214 = vsel %vm292, %v2133, 0
      %v2217 = vsel %vm292, %v2134, 0
      %v2220 = vsel %vm292, %v2135, 0
      %v2223 = vsel %vm292, %v2136, 0
      %v2226 = vsel %vm292, %v2137, 0
      %v2229 = vsel %vm292, %v2138, 0
      %v2232 = vsel %vm292, %v2139, 0
      %v2235 = vsel %vm292, %v2140, 0
      %v2238 = vsel %vm292, %v2141, 0
      %v2241 = vsel %vm389, %v2143, 0
      %2243 = vmatpush.msra.mxu0 0.0
      %2244 = vmatpush.msra.mxu0 0.0
      %2245 = vmatpush.msra.mxu0 0.0
      %2246 = vmatpush.msra.mxu0 0.0
      %2247 = vmatpush.msra.mxu0 0.0
      %2248 = vmatpush.msra.mxu0 0.0
      %2249 = vmatpush.msra.mxu0 0.0
      %2250 = vmatpush.msra.mxu0 0.0
      %2251 = vmatpush.msra.mxu0 0.0
      %2252 = vmatpush.msra.mxu0 0.0
      %2253 = vmatpush.msra.mxu0 0.0
      %2254 = vmatpush.msra.mxu0 0.0
      %2255 = vmatpush.msra.mxu0 0.0
      %2256 = vmatpush.msra.mxu0 0.0
      %2257 = vmatpush.msra.mxu0 0.0
      %2258 = vmatpush.msra.mxu0 %v2241
      %2259 = vmatmul.f32.gmra.mxu0 %v2145
      %v2260 = vpop.f32.mrf.mxu0
      %v2261 = vadd.f32 0.0, %v2260
      %2262 = vmatmul.f32.gmra.mxu0 %v2148
      %v2263 = vpop.f32.mrf.mxu0
      %v2264 = vadd.f32 0.0, %v2263
      %2265 = vmatmul.f32.gmra.mxu0 %v2151
      %v2266 = vpop.f32.mrf.mxu0
      %v2267 = vadd.f32 0.0, %v2266
      %2268 = vmatmul.f32.gmra.mxu0 %v2154
      %v2269 = vpop.f32.mrf.mxu0
      %v2270 = vadd.f32 0.0, %v2269
      %2271 = vmatmul.f32.gmra.mxu0 %v2157
      %v2272 = vpop.f32.mrf.mxu0
      %v2273 = vadd.f32 0.0, %v2272
      %2274 = vmatmul.f32.gmra.mxu0 %v2160
      %v2275 = vpop.f32.mrf.mxu0
      %v2276 = vadd.f32 0.0, %v2275
      %2277 = vmatmul.f32.gmra.mxu0 %v2163
      %v2278 = vpop.f32.mrf.mxu0
      %v2279 = vadd.f32 0.0, %v2278
      %2280 = vmatmul.f32.gmra.mxu0 %v2166
      %v2281 = vpop.f32.mrf.mxu0
      %v2282 = vadd.f32 0.0, %v2281
      %2283 = vmatmul.f32.gmra.mxu0 %v2169
      %v2284 = vpop.f32.mrf.mxu0
      %v2285 = vadd.f32 0.0, %v2284
      %2286 = vmatmul.f32.gmra.mxu0 %v2172
      %v2287 = vpop.f32.mrf.mxu0
      %v2288 = vadd.f32 0.0, %v2287
      %2289 = vmatmul.f32.gmra.mxu0 %v2175
      %v2290 = vpop.f32.mrf.mxu0
      %v2291 = vadd.f32 0.0, %v2290
      %2292 = vmatmul.f32.gmra.mxu0 %v2178
      %v2293 = vpop.f32.mrf.mxu0
      %v2294 = vadd.f32 0.0, %v2293
      %2295 = vmatmul.f32.gmra.mxu0 %v2181
      %v2296 = vpop.f32.mrf.mxu0
      %v2297 = vadd.f32 0.0, %v2296
      %2298 = vmatmul.f32.gmra.mxu0 %v2184
      %v2299 = vpop.f32.mrf.mxu0
      %v2300 = vadd.f32 0.0, %v2299
      %2301 = vmatmul.f32.gmra.mxu0 %v2187
      %v2302 = vpop.f32.mrf.mxu0
      %v2303 = vadd.f32 0.0, %v2302
      %2304 = vmatmul.f32.gmra.mxu0 %v2190
      %v2305 = vpop.f32.mrf.mxu0
      %v2306 = vadd.f32 0.0, %v2305
      %2307 = vmatmul.f32.gmra.mxu0 %v2193
      %v2308 = vpop.f32.mrf.mxu0
      %v2309 = vadd.f32 0.0, %v2308
      %2310 = vmatmul.f32.gmra.mxu0 %v2196
      %v2311 = vpop.f32.mrf.mxu0
      %v2312 = vadd.f32 0.0, %v2311
      %2313 = vmatmul.f32.gmra.mxu0 %v2199
      %v2314 = vpop.f32.mrf.mxu0
      %v2315 = vadd.f32 0.0, %v2314
      %2316 = vmatmul.f32.gmra.mxu0 %v2202
      %v2317 = vpop.f32.mrf.mxu0
      %v2318 = vadd.f32 0.0, %v2317
      %2319 = vmatmul.f32.gmra.mxu0 %v2205
      %v2320 = vpop.f32.mrf.mxu0
      %v2321 = vadd.f32 0.0, %v2320
      %2322 = vmatmul.f32.gmra.mxu0 %v2208
      %v2323 = vpop.f32.mrf.mxu0
      %v2324 = vadd.f32 0.0, %v2323
      %2325 = vmatmul.f32.gmra.mxu0 %v2211
      %v2326 = vpop.f32.mrf.mxu0
      %v2327 = vadd.f32 0.0, %v2326
      %2328 = vmatmul.f32.gmra.mxu0 %v2214
      %v2329 = vpop.f32.mrf.mxu0
      %v2330 = vadd.f32 0.0, %v2329
      %2331 = vmatmul.f32.gmra.mxu0 %v2217
      %v2332 = vpop.f32.mrf.mxu0
      %v2333 = vadd.f32 0.0, %v2332
      %2334 = vmatmul.f32.gmra.mxu0 %v2220
      %v2335 = vpop.f32.mrf.mxu0
      %v2336 = vadd.f32 0.0, %v2335
      %2337 = vmatmul.f32.gmra.mxu0 %v2223
      %v2338 = vpop.f32.mrf.mxu0
      %v2339 = vadd.f32 0.0, %v2338
      %2340 = vmatmul.f32.gmra.mxu0 %v2226
      %v2341 = vpop.f32.mrf.mxu0
      %v2342 = vadd.f32 0.0, %v2341
      %2343 = vmatmul.f32.gmra.mxu0 %v2229
      %v2344 = vpop.f32.mrf.mxu0
      %v2345 = vadd.f32 0.0, %v2344
      %2346 = vmatmul.f32.gmra.mxu0 %v2232
      %v2347 = vpop.f32.mrf.mxu0
      %v2348 = vadd.f32 0.0, %v2347
      %2349 = vmatmul.f32.gmra.mxu0 %v2235
      %v2350 = vpop.f32.mrf.mxu0
      %v2351 = vadd.f32 0.0, %v2350
      %2352 = vmatmul.f32.gmra.mxu0 %v2238
      %v2353 = vpop.f32.mrf.mxu0
      %v2354 = vadd.f32 0.0, %v2353
      %2355 = vdwg.mxu0
      %v2356 = vadd.f32 %v2078, %v2261
      %v2357 = vadd.f32 %v2079, %v2264
      %v2358 = vadd.f32 %v2080, %v2267
      %v2359 = vadd.f32 %v2081, %v2270
      %v2360 = vadd.f32 %v2082, %v2273
      %v2361 = vadd.f32 %v2083, %v2276
      %v2362 = vadd.f32 %v2084, %v2279
      %v2363 = vadd.f32 %v2085, %v2282
      %v2364 = vadd.f32 %v2086, %v2285
      %v2365 = vadd.f32 %v2087, %v2288
      %v2366 = vadd.f32 %v2088, %v2291
      %v2367 = vadd.f32 %v2089, %v2294
      %v2368 = vadd.f32 %v2090, %v2297
      %v2369 = vadd.f32 %v2091, %v2300
      %v2370 = vadd.f32 %v2092, %v2303
      %v2371 = vadd.f32 %v2093, %v2306
      %v2372 = vadd.f32 %v2094, %v2309
      %v2373 = vadd.f32 %v2095, %v2312
      %v2374 = vadd.f32 %v2096, %v2315
      %v2375 = vadd.f32 %v2097, %v2318
      %v2376 = vadd.f32 %v2098, %v2321
      %v2377 = vadd.f32 %v2099, %v2324
      %v2378 = vadd.f32 %v2100, %v2327
      %v2379 = vadd.f32 %v2101, %v2330
      %v2380 = vadd.f32 %v2102, %v2333
      %v2381 = vadd.f32 %v2103, %v2336
      %v2382 = vadd.f32 %v2104, %v2339
      %v2383 = vadd.f32 %v2105, %v2342
      %v2384 = vadd.f32 %v2106, %v2345
      %v2385 = vadd.f32 %v2107, %v2348
      %v2386 = vadd.f32 %v2108, %v2351
      %v2387 = vadd.f32 %v2109, %v2354
      %v2388 = vld [vmem:[%s1831 + $0x2] sm:$0xff]
      %v2389 = vld [vmem:[%s1831 + $0xa] sm:$0xff]
      %v2390 = vld [vmem:[%s1831 + $0x1a] sm:$0xff]
      %v2391 = vld [vmem:[%s1831 + $0x22] sm:$0xff]
      %v2392 = vld [vmem:[%s1831 + $0x32] sm:$0xff]
      %v2393 = vld [vmem:[%s1831 + $0x3a] sm:$0xff]
      %v2394 = vld [vmem:[%s1831 + $0x4a] sm:$0xff]
      %v2395 = vld [vmem:[%s1831 + $0x52] sm:$0xff]
      %v2396 = vld [vmem:[%s1831 + $0x62] sm:$0xff]
      %v2397 = vld [vmem:[%s1831 + $0x6a] sm:$0xff]
      %v2398 = vld [vmem:[%s1831 + $0x7a] sm:$0xff]
      %v2399 = vld [vmem:[%s1831 + $0x82] sm:$0xff]
      %v2400 = vld [vmem:[%s1831 + $0x92] sm:$0xff]
      %v2401 = vld [vmem:[%s1831 + $0x9a] sm:$0xff]
      %v2402 = vld [vmem:[%s1831 + $0xaa] sm:$0xff]
      %v2403 = vld [vmem:[%s1831 + $0xb2] sm:$0xff]
      %v2404 = vld [vmem:[%s1831 + $0xc2] sm:$0xff]
      %v2405 = vld [vmem:[%s1831 + $0xca] sm:$0xff]
      %v2406 = vld [vmem:[%s1831 + $0xda] sm:$0xff]
      %v2407 = vld [vmem:[%s1831 + $0xe2] sm:$0xff]
      %v2408 = vld [vmem:[%s1831 + $0xf2] sm:$0xff]
      %v2409 = vld [vmem:[%s1831 + $0xfa] sm:$0xff]
      %v2410 = vld [vmem:[%s1831 + $0x10a] sm:$0xff]
      %v2411 = vld [vmem:[%s1831 + $0x112] sm:$0xff]
      %v2412 = vld [vmem:[%s1831 + $0x122] sm:$0xff]
      %v2413 = vld [vmem:[%s1831 + $0x12a] sm:$0xff]
      %v2414 = vld [vmem:[%s1831 + $0x13a] sm:$0xff]
      %v2415 = vld [vmem:[%s1831 + $0x142] sm:$0xff]
      %v2416 = vld [vmem:[%s1831 + $0x152] sm:$0xff]
      %v2417 = vld [vmem:[%s1831 + $0x15a] sm:$0xff]
      %v2418 = vld [vmem:[%s1831 + $0x16a] sm:$0xff]
      %v2419 = vld [vmem:[%s1831 + $0x172] sm:$0xff]
      %s2420 = scalar_lea.vmem %s1, 32
      %v2421 = vld [vmem:[%s2420] sm:$0xf]
      %v2423 = vsel %vm292, %v2388, 0
      %v2426 = vsel %vm292, %v2389, 0
      %v2429 = vsel %vm292, %v2390, 0
      %v2432 = vsel %vm292, %v2391, 0
      %v2435 = vsel %vm292, %v2392, 0
      %v2438 = vsel %vm292, %v2393, 0
      %v2441 = vsel %vm292, %v2394, 0
      %v2444 = vsel %vm292, %v2395, 0
      %v2447 = vsel %vm292, %v2396, 0
      %v2450 = vsel %vm292, %v2397, 0
      %v2453 = vsel %vm292, %v2398, 0
      %v2456 = vsel %vm292, %v2399, 0
      %v2459 = vsel %vm292, %v2400, 0
      %v2462 = vsel %vm292, %v2401, 0
      %v2465 = vsel %vm292, %v2402, 0
      %v2468 = vsel %vm292, %v2403, 0
      %v2471 = vsel %vm292, %v2404, 0
      %v2474 = vsel %vm292, %v2405, 0
      %v2477 = vsel %vm292, %v2406, 0
      %v2480 = vsel %vm292, %v2407, 0
      %v2483 = vsel %vm292, %v2408, 0
      %v2486 = vsel %vm292, %v2409, 0
      %v2489 = vsel %vm292, %v2410, 0
      %v2492 = vsel %vm292, %v2411, 0
      %v2495 = vsel %vm292, %v2412, 0
      %v2498 = vsel %vm292, %v2413, 0
      %v2501 = vsel %vm292, %v2414, 0
      %v2504 = vsel %vm292, %v2415, 0
      %v2507 = vsel %vm292, %v2416, 0
      %v2510 = vsel %vm292, %v2417, 0
      %v2513 = vsel %vm292, %v2418, 0
      %v2516 = vsel %vm292, %v2419, 0
      %v2519 = vsel %vm389, %v2421, 0
      %2521 = vmatpush.msra.mxu0 0.0
      %2522 = vmatpush.msra.mxu0 0.0
      %2523 = vmatpush.msra.mxu0 0.0
      %2524 = vmatpush.msra.mxu0 0.0
      %2525 = vmatpush.msra.mxu0 0.0
      %2526 = vmatpush.msra.mxu0 0.0
      %2527 = vmatpush.msra.mxu0 0.0
      %2528 = vmatpush.msra.mxu0 0.0
      %2529 = vmatpush.msra.mxu0 0.0
      %2530 = vmatpush.msra.mxu0 0.0
      %2531 = vmatpush.msra.mxu0 0.0
      %2532 = vmatpush.msra.mxu0 0.0
      %2533 = vmatpush.msra.mxu0 0.0
      %2534 = vmatpush.msra.mxu0 0.0
      %2535 = vmatpush.msra.mxu0 0.0
      %2536 = vmatpush.msra.mxu0 %v2519
      %2537 = vmatmul.f32.gmra.mxu0 %v2423
      %v2538 = vpop.f32.mrf.mxu0
      %v2539 = vadd.f32 0.0, %v2538
      %2540 = vmatmul.f32.gmra.mxu0 %v2426
      %v2541 = vpop.f32.mrf.mxu0
      %v2542 = vadd.f32 0.0, %v2541
      %2543 = vmatmul.f32.gmra.mxu0 %v2429
      %v2544 = vpop.f32.mrf.mxu0
      %v2545 = vadd.f32 0.0, %v2544
      %2546 = vmatmul.f32.gmra.mxu0 %v2432
      %v2547 = vpop.f32.mrf.mxu0
      %v2548 = vadd.f32 0.0, %v2547
      %2549 = vmatmul.f32.gmra.mxu0 %v2435
      %v2550 = vpop.f32.mrf.mxu0
      %v2551 = vadd.f32 0.0, %v2550
      %2552 = vmatmul.f32.gmra.mxu0 %v2438
      %v2553 = vpop.f32.mrf.mxu0
      %v2554 = vadd.f32 0.0, %v2553
      %2555 = vmatmul.f32.gmra.mxu0 %v2441
      %v2556 = vpop.f32.mrf.mxu0
      %v2557 = vadd.f32 0.0, %v2556
      %2558 = vmatmul.f32.gmra.mxu0 %v2444
      %v2559 = vpop.f32.mrf.mxu0
      %v2560 = vadd.f32 0.0, %v2559
      %2561 = vmatmul.f32.gmra.mxu0 %v2447
      %v2562 = vpop.f32.mrf.mxu0
      %v2563 = vadd.f32 0.0, %v2562
      %2564 = vmatmul.f32.gmra.mxu0 %v2450
      %v2565 = vpop.f32.mrf.mxu0
      %v2566 = vadd.f32 0.0, %v2565
      %2567 = vmatmul.f32.gmra.mxu0 %v2453
      %v2568 = vpop.f32.mrf.mxu0
      %v2569 = vadd.f32 0.0, %v2568
      %2570 = vmatmul.f32.gmra.mxu0 %v2456
      %v2571 = vpop.f32.mrf.mxu0
      %v2572 = vadd.f32 0.0, %v2571
      %2573 = vmatmul.f32.gmra.mxu0 %v2459
      %v2574 = vpop.f32.mrf.mxu0
      %v2575 = vadd.f32 0.0, %v2574
      %2576 = vmatmul.f32.gmra.mxu0 %v2462
      %v2577 = vpop.f32.mrf.mxu0
      %v2578 = vadd.f32 0.0, %v2577
      %2579 = vmatmul.f32.gmra.mxu0 %v2465
      %v2580 = vpop.f32.mrf.mxu0
      %v2581 = vadd.f32 0.0, %v2580
      %2582 = vmatmul.f32.gmra.mxu0 %v2468
      %v2583 = vpop.f32.mrf.mxu0
      %v2584 = vadd.f32 0.0, %v2583
      %2585 = vmatmul.f32.gmra.mxu0 %v2471
      %v2586 = vpop.f32.mrf.mxu0
      %v2587 = vadd.f32 0.0, %v2586
      %2588 = vmatmul.f32.gmra.mxu0 %v2474
      %v2589 = vpop.f32.mrf.mxu0
      %v2590 = vadd.f32 0.0, %v2589
      %2591 = vmatmul.f32.gmra.mxu0 %v2477
      %v2592 = vpop.f32.mrf.mxu0
      %v2593 = vadd.f32 0.0, %v2592
      %2594 = vmatmul.f32.gmra.mxu0 %v2480
      %v2595 = vpop.f32.mrf.mxu0
      %v2596 = vadd.f32 0.0, %v2595
      %2597 = vmatmul.f32.gmra.mxu0 %v2483
      %v2598 = vpop.f32.mrf.mxu0
      %v2599 = vadd.f32 0.0, %v2598
      %2600 = vmatmul.f32.gmra.mxu0 %v2486
      %v2601 = vpop.f32.mrf.mxu0
      %v2602 = vadd.f32 0.0, %v2601
      %2603 = vmatmul.f32.gmra.mxu0 %v2489
      %v2604 = vpop.f32.mrf.mxu0
      %v2605 = vadd.f32 0.0, %v2604
      %2606 = vmatmul.f32.gmra.mxu0 %v2492
      %v2607 = vpop.f32.mrf.mxu0
      %v2608 = vadd.f32 0.0, %v2607
      %2609 = vmatmul.f32.gmra.mxu0 %v2495
      %v2610 = vpop.f32.mrf.mxu0
      %v2611 = vadd.f32 0.0, %v2610
      %2612 = vmatmul.f32.gmra.mxu0 %v2498
      %v2613 = vpop.f32.mrf.mxu0
      %v2614 = vadd.f32 0.0, %v2613
      %2615 = vmatmul.f32.gmra.mxu0 %v2501
      %v2616 = vpop.f32.mrf.mxu0
      %v2617 = vadd.f32 0.0, %v2616
      %2618 = vmatmul.f32.gmra.mxu0 %v2504
      %v2619 = vpop.f32.mrf.mxu0
      %v2620 = vadd.f32 0.0, %v2619
      %2621 = vmatmul.f32.gmra.mxu0 %v2507
      %v2622 = vpop.f32.mrf.mxu0
      %v2623 = vadd.f32 0.0, %v2622
      %2624 = vmatmul.f32.gmra.mxu0 %v2510
      %v2625 = vpop.f32.mrf.mxu0
      %v2626 = vadd.f32 0.0, %v2625
      %2627 = vmatmul.f32.gmra.mxu0 %v2513
      %v2628 = vpop.f32.mrf.mxu0
      %v2629 = vadd.f32 0.0, %v2628
      %2630 = vmatmul.f32.gmra.mxu0 %v2516
      %v2631 = vpop.f32.mrf.mxu0
      %v2632 = vadd.f32 0.0, %v2631
      %2633 = vdwg.mxu0
      %v2634 = vadd.f32 %v2356, %v2539
      %v2635 = vadd.f32 %v2357, %v2542
      %v2636 = vadd.f32 %v2358, %v2545
      %v2637 = vadd.f32 %v2359, %v2548
      %v2638 = vadd.f32 %v2360, %v2551
      %v2639 = vadd.f32 %v2361, %v2554
      %v2640 = vadd.f32 %v2362, %v2557
      %v2641 = vadd.f32 %v2363, %v2560
      %v2642 = vadd.f32 %v2364, %v2563
      %v2643 = vadd.f32 %v2365, %v2566
      %v2644 = vadd.f32 %v2366, %v2569
      %v2645 = vadd.f32 %v2367, %v2572
      %v2646 = vadd.f32 %v2368, %v2575
      %v2647 = vadd.f32 %v2369, %v2578
      %v2648 = vadd.f32 %v2370, %v2581
      %v2649 = vadd.f32 %v2371, %v2584
      %v2650 = vadd.f32 %v2372, %v2587
      %v2651 = vadd.f32 %v2373, %v2590
      %v2652 = vadd.f32 %v2374, %v2593
      %v2653 = vadd.f32 %v2375, %v2596
      %v2654 = vadd.f32 %v2376, %v2599
      %v2655 = vadd.f32 %v2377, %v2602
      %v2656 = vadd.f32 %v2378, %v2605
      %v2657 = vadd.f32 %v2379, %v2608
      %v2658 = vadd.f32 %v2380, %v2611
      %v2659 = vadd.f32 %v2381, %v2614
      %v2660 = vadd.f32 %v2382, %v2617
      %v2661 = vadd.f32 %v2383, %v2620
      %v2662 = vadd.f32 %v2384, %v2623
      %v2663 = vadd.f32 %v2385, %v2626
      %v2664 = vadd.f32 %v2386, %v2629
      %v2665 = vadd.f32 %v2387, %v2632
      %v2666 = vld [vmem:[%s2] sm:$0x1]
      %v2668 = vperm.slane %v2666, 0
      %v2670 = vadd.f32 %v2634, %v2668
      %v2671 = vadd.f32 %v2635, %v2668
      %v2672 = vadd.f32 %v2636, %v2668
      %v2673 = vadd.f32 %v2637, %v2668
      %v2674 = vadd.f32 %v2638, %v2668
      %v2675 = vadd.f32 %v2639, %v2668
      %v2676 = vadd.f32 %v2640, %v2668
      %v2677 = vadd.f32 %v2641, %v2668
      %v2678 = vadd.f32 %v2642, %v2668
      %v2679 = vadd.f32 %v2643, %v2668
      %v2680 = vadd.f32 %v2644, %v2668
      %v2681 = vadd.f32 %v2645, %v2668
      %v2682 = vadd.f32 %v2646, %v2668
      %v2683 = vadd.f32 %v2647, %v2668
      %v2684 = vadd.f32 %v2648, %v2668
      %v2685 = vadd.f32 %v2649, %v2668
      %v2686 = vadd.f32 %v2650, %v2668
      %v2687 = vadd.f32 %v2651, %v2668
      %v2688 = vadd.f32 %v2652, %v2668
      %v2689 = vadd.f32 %v2653, %v2668
      %v2690 = vadd.f32 %v2654, %v2668
      %v2691 = vadd.f32 %v2655, %v2668
      %v2692 = vadd.f32 %v2656, %v2668
      %v2693 = vadd.f32 %v2657, %v2668
      %v2694 = vadd.f32 %v2658, %v2668
      %v2695 = vadd.f32 %v2659, %v2668
      %v2696 = vadd.f32 %v2660, %v2668
      %v2697 = vadd.f32 %v2661, %v2668
      %v2698 = vadd.f32 %v2662, %v2668
      %v2699 = vadd.f32 %v2663, %v2668
      %v2700 = vadd.f32 %v2664, %v2668
      %v2701 = vadd.f32 %v2665, %v2668
      %v2702 = vmax.f32 %v2670, 0.0
      %v2703 = vmax.f32 %v2671, 0.0
      %v2704 = vmax.f32 %v2672, 0.0
      %v2705 = vmax.f32 %v2673, 0.0
      %v2706 = vmax.f32 %v2674, 0.0
      %v2707 = vmax.f32 %v2675, 0.0
      %v2708 = vmax.f32 %v2676, 0.0
      %v2709 = vmax.f32 %v2677, 0.0
      %v2710 = vmax.f32 %v2678, 0.0
      %v2711 = vmax.f32 %v2679, 0.0
      %v2712 = vmax.f32 %v2680, 0.0
      %v2713 = vmax.f32 %v2681, 0.0
      %v2714 = vmax.f32 %v2682, 0.0
      %v2715 = vmax.f32 %v2683, 0.0
      %v2716 = vmax.f32 %v2684, 0.0
      %v2717 = vmax.f32 %v2685, 0.0
      %v2718 = vmax.f32 %v2686, 0.0
      %v2719 = vmax.f32 %v2687, 0.0
      %v2720 = vmax.f32 %v2688, 0.0
      %v2721 = vmax.f32 %v2689, 0.0
      %v2722 = vmax.f32 %v2690, 0.0
      %v2723 = vmax.f32 %v2691, 0.0
      %v2724 = vmax.f32 %v2692, 0.0
      %v2725 = vmax.f32 %v2693, 0.0
      %v2726 = vmax.f32 %v2694, 0.0
      %v2727 = vmax.f32 %v2695, 0.0
      %v2728 = vmax.f32 %v2696, 0.0
      %v2729 = vmax.f32 %v2697, 0.0
      %v2730 = vmax.f32 %v2698, 0.0
      %v2731 = vmax.f32 %v2699, 0.0
      %v2732 = vmax.f32 %v2700, 0.0
      %v2733 = vmax.f32 %v2701, 0.0
      %s2734 = scalar_lea.vmem [#allocation2], 24
      %2735 = vst.msk [vmem:[%s2734 + $0x1] sm:$0xff] %vm292, %v2702
      %2736 = vst.msk [vmem:[%s2734 + $0x9] sm:$0xff] %vm292, %v2703
      %2737 = vst.msk [vmem:[%s2734 + $0x19] sm:$0xff] %vm292, %v2704
      %2738 = vst.msk [vmem:[%s2734 + $0x21] sm:$0xff] %vm292, %v2705
      %2739 = vst.msk [vmem:[%s2734 + $0x31] sm:$0xff] %vm292, %v2706
      %2740 = vst.msk [vmem:[%s2734 + $0x39] sm:$0xff] %vm292, %v2707
      %2741 = vst.msk [vmem:[%s2734 + $0x49] sm:$0xff] %vm292, %v2708
      %2742 = vst.msk [vmem:[%s2734 + $0x51] sm:$0xff] %vm292, %v2709
      %2743 = vst.msk [vmem:[%s2734 + $0x61] sm:$0xff] %vm292, %v2710
      %2744 = vst.msk [vmem:[%s2734 + $0x69] sm:$0xff] %vm292, %v2711
      %2745 = vst.msk [vmem:[%s2734 + $0x79] sm:$0xff] %vm292, %v2712
      %2746 = vst.msk [vmem:[%s2734 + $0x81] sm:$0xff] %vm292, %v2713
      %2747 = vst.msk [vmem:[%s2734 + $0x91] sm:$0xff] %vm292, %v2714
      %2748 = vst.msk [vmem:[%s2734 + $0x99] sm:$0xff] %vm292, %v2715
      %2749 = vst.msk [vmem:[%s2734 + $0xa9] sm:$0xff] %vm292, %v2716
      %2750 = vst.msk [vmem:[%s2734 + $0xb1] sm:$0xff] %vm292, %v2717
      %2751 = vst.msk [vmem:[%s2734 + $0xc1] sm:$0xff] %vm292, %v2718
      %2752 = vst.msk [vmem:[%s2734 + $0xc9] sm:$0xff] %vm292, %v2719
      %2753 = vst.msk [vmem:[%s2734 + $0xd9] sm:$0xff] %vm292, %v2720
      %2754 = vst.msk [vmem:[%s2734 + $0xe1] sm:$0xff] %vm292, %v2721
      %2755 = vst.msk [vmem:[%s2734 + $0xf1] sm:$0xff] %vm292, %v2722
      %2756 = vst.msk [vmem:[%s2734 + $0xf9] sm:$0xff] %vm292, %v2723
      %2757 = vst.msk [vmem:[%s2734 + $0x109] sm:$0xff] %vm292, %v2724
      %2758 = vst.msk [vmem:[%s2734 + $0x111] sm:$0xff] %vm292, %v2725
      %2759 = vst.msk [vmem:[%s2734 + $0x121] sm:$0xff] %vm292, %v2726
      %2760 = vst.msk [vmem:[%s2734 + $0x129] sm:$0xff] %vm292, %v2727
      %2761 = vst.msk [vmem:[%s2734 + $0x139] sm:$0xff] %vm292, %v2728
      %2762 = vst.msk [vmem:[%s2734 + $0x141] sm:$0xff] %vm292, %v2729
      %2763 = vst.msk [vmem:[%s2734 + $0x151] sm:$0xff] %vm292, %v2730
      %2764 = vst.msk [vmem:[%s2734 + $0x159] sm:$0xff] %vm292, %v2731
      %2765 = vst.msk [vmem:[%s2734 + $0x169] sm:$0xff] %vm292, %v2732
      %2766 = vst.msk [vmem:[%s2734 + $0x171] sm:$0xff] %vm292, %v2733
      %2767 = vst.msk [vmem:[#allocation2] sm:$0xff] %vm292, 0.0
      %2768 = vst.msk [vmem:[#allocation2 + $0x8] sm:$0xff] %vm292, 0.0
      %vm2769 = vcmask 25600
      %2770 = vst.msk [vmem:[#allocation2 + $0x10] sm:$0x3] %vm2769, 0.0
      %s2771 = scalar_lea.vmem [#allocation2], 408
      %2772 = vst.msk [vmem:[%s2771] sm:$0xff] %vm292, 0.0
      %2773 = vst.msk [vmem:[%s2771 + $0x8] sm:$0xff] %vm292, 0.0
      %2774 = vst.msk [vmem:[%s2771 + $0x10] sm:$0x3] %vm2769, 0.0
      %vm2775 = vcmask 24576
      %2776 = vst.msk [vmem:[#allocation2] sm:$0x1] %vm2775, 0.0
      %2777 = vst.msk [vmem:[#allocation2 + $0x18] sm:$0x1] %vm2775, 0.0
      %2778 = vst.msk [vmem:[#allocation2 + $0x30] sm:$0x1] %vm2775, 0.0
      %2779 = vst.msk [vmem:[#allocation2 + $0x48] sm:$0x1] %vm2775, 0.0
      %2780 = vst.msk [vmem:[#allocation2 + $0x60] sm:$0x1] %vm2775, 0.0
      %2781 = vst.msk [vmem:[#allocation2 + $0x78] sm:$0x1] %vm2775, 0.0
      %2782 = vst.msk [vmem:[#allocation2 + $0x90] sm:$0x1] %vm2775, 0.0
      %2783 = vst.msk [vmem:[#allocation2 + $0xa8] sm:$0x1] %vm2775, 0.0
      %2784 = vst.msk [vmem:[#allocation2 + $0xc0] sm:$0x1] %vm2775, 0.0
      %2785 = vst.msk [vmem:[#allocation2 + $0xd8] sm:$0x1] %vm2775, 0.0
      %2786 = vst.msk [vmem:[#allocation2 + $0xf0] sm:$0x1] %vm2775, 0.0
      %2787 = vst.msk [vmem:[#allocation2 + $0x108] sm:$0x1] %vm2775, 0.0
      %2788 = vst.msk [vmem:[#allocation2 + $0x120] sm:$0x1] %vm2775, 0.0
      %2789 = vst.msk [vmem:[#allocation2 + $0x138] sm:$0x1] %vm2775, 0.0
      %2790 = vst.msk [vmem:[#allocation2 + $0x150] sm:$0x1] %vm2775, 0.0
      %2791 = vst.msk [vmem:[#allocation2 + $0x168] sm:$0x1] %vm2775, 0.0
      %2792 = vst.msk [vmem:[#allocation2 + $0x180] sm:$0x1] %vm2775, 0.0
      %2793 = vst.msk [vmem:[#allocation2 + $0x198] sm:$0x1] %vm2775, 0.0
      %2794 = vst.msk [vmem:[#allocation2 + $0x11] sm:$0x1] %vm2775, 0.0
      %2795 = vst.msk [vmem:[#allocation2 + $0x29] sm:$0x1] %vm2775, 0.0
      %2796 = vst.msk [vmem:[#allocation2 + $0x41] sm:$0x1] %vm2775, 0.0
      %2797 = vst.msk [vmem:[#allocation2 + $0x59] sm:$0x1] %vm2775, 0.0
      %2798 = vst.msk [vmem:[#allocation2 + $0x71] sm:$0x1] %vm2775, 0.0
      %2799 = vst.msk [vmem:[#allocation2 + $0x89] sm:$0x1] %vm2775, 0.0
      %2800 = vst.msk [vmem:[#allocation2 + $0xa1] sm:$0x1] %vm2775, 0.0
      %2801 = vst.msk [vmem:[#allocation2 + $0xb9] sm:$0x1] %vm2775, 0.0
      %2802 = vst.msk [vmem:[#allocation2 + $0xd1] sm:$0x1] %vm2775, 0.0
      %2803 = vst.msk [vmem:[#allocation2 + $0xe9] sm:$0x1] %vm2775, 0.0
      %2804 = vst.msk [vmem:[#allocation2 + $0x101] sm:$0x1] %vm2775, 0.0
      %2805 = vst.msk [vmem:[#allocation2 + $0x119] sm:$0x1] %vm2775, 0.0
      %2806 = vst.msk [vmem:[#allocation2 + $0x131] sm:$0x1] %vm2775, 0.0
      %2807 = vst.msk [vmem:[#allocation2 + $0x149] sm:$0x1] %vm2775, 0.0
      %2808 = vst.msk [vmem:[#allocation2 + $0x161] sm:$0x1] %vm2775, 0.0
      %2809 = vst.msk [vmem:[#allocation2 + $0x179] sm:$0x1] %vm2775, 0.0
      %2810 = vst.msk [vmem:[#allocation2 + $0x191] sm:$0x1] %vm2775, 0.0
      %2811 = vst.msk [vmem:[#allocation2 + $0x1a9] sm:$0x1] %vm2775, 0.0
      %v2812 = vld [vmem:[#allocation2] sm:$0xff]
      %v2813 = vld [vmem:[#allocation2 + $0x8] sm:$0xff]
      %v2814 = vld [vmem:[#allocation2 + $0x18] sm:$0xff]
      %v2815 = vld [vmem:[#allocation2 + $0x20] sm:$0xff]
      %v2816 = vld [vmem:[#allocation2 + $0x30] sm:$0xff]
      %v2817 = vld [vmem:[#allocation2 + $0x38] sm:$0xff]
      %v2818 = vld [vmem:[#allocation2 + $0x48] sm:$0xff]
      %v2819 = vld [vmem:[#allocation2 + $0x50] sm:$0xff]
      %v2820 = vld [vmem:[#allocation2 + $0x60] sm:$0xff]
      %v2821 = vld [vmem:[#allocation2 + $0x68] sm:$0xff]
      %v2822 = vld [vmem:[#allocation2 + $0x78] sm:$0xff]
      %v2823 = vld [vmem:[#allocation2 + $0x80] sm:$0xff]
      %v2824 = vld [vmem:[#allocation2 + $0x90] sm:$0xff]
      %v2825 = vld [vmem:[#allocation2 + $0x98] sm:$0xff]
      %v2826 = vld [vmem:[#allocation2 + $0xa8] sm:$0xff]
      %v2827 = vld [vmem:[#allocation2 + $0xb0] sm:$0xff]
      %v2828 = vld [vmem:[#allocation2 + $0xc0] sm:$0xff]
      %v2829 = vld [vmem:[#allocation2 + $0xc8] sm:$0xff]
      %v2830 = vld [vmem:[#allocation2 + $0xd8] sm:$0xff]
      %v2831 = vld [vmem:[#allocation2 + $0xe0] sm:$0xff]
      %v2832 = vld [vmem:[#allocation2 + $0xf0] sm:$0xff]
      %v2833 = vld [vmem:[#allocation2 + $0xf8] sm:$0xff]
      %v2834 = vld [vmem:[#allocation2 + $0x108] sm:$0xff]
      %v2835 = vld [vmem:[#allocation2 + $0x110] sm:$0xff]
      %v2836 = vld [vmem:[#allocation2 + $0x120] sm:$0xff]
      %v2837 = vld [vmem:[#allocation2 + $0x128] sm:$0xff]
      %v2838 = vld [vmem:[#allocation2 + $0x138] sm:$0xff]
      %v2839 = vld [vmem:[#allocation2 + $0x140] sm:$0xff]
      %v2840 = vld [vmem:[#allocation2 + $0x150] sm:$0xff]
      %v2841 = vld [vmem:[#allocation2 + $0x158] sm:$0xff]
      %v2842 = vld [vmem:[#allocation2 + $0x168] sm:$0xff]
      %v2843 = vld [vmem:[#allocation2 + $0x170] sm:$0xff]
      %v2844 = vld [vmem:[%s3] sm:$0xf]
      %v2845 = vld [vmem:[#allocation2 + $0x1] sm:$0xff]
      %v2846 = vld [vmem:[#allocation2 + $0x9] sm:$0xff]
      %v2847 = vld [vmem:[#allocation2 + $0x19] sm:$0xff]
      %v2848 = vld [vmem:[#allocation2 + $0x21] sm:$0xff]
      %v2849 = vld [vmem:[#allocation2 + $0x31] sm:$0xff]
      %v2850 = vld [vmem:[#allocation2 + $0x39] sm:$0xff]
      %v2851 = vld [vmem:[#allocation2 + $0x49] sm:$0xff]
      %v2852 = vld [vmem:[#allocation2 + $0x51] sm:$0xff]
      %v2853 = vld [vmem:[#allocation2 + $0x61] sm:$0xff]
      %v2854 = vld [vmem:[#allocation2 + $0x69] sm:$0xff]
      %v2855 = vld [vmem:[#allocation2 + $0x79] sm:$0xff]
      %v2856 = vld [vmem:[#allocation2 + $0x81] sm:$0xff]
      %v2857 = vld [vmem:[#allocation2 + $0x91] sm:$0xff]
      %v2858 = vld [vmem:[#allocation2 + $0x99] sm:$0xff]
      %v2859 = vld [vmem:[#allocation2 + $0xa9] sm:$0xff]
      %v2860 = vld [vmem:[#allocation2 + $0xb1] sm:$0xff]
      %v2861 = vld [vmem:[#allocation2 + $0xc1] sm:$0xff]
      %v2862 = vld [vmem:[#allocation2 + $0xc9] sm:$0xff]
      %v2863 = vld [vmem:[#allocation2 + $0xd9] sm:$0xff]
      %v2864 = vld [vmem:[#allocation2 + $0xe1] sm:$0xff]
      %v2865 = vld [vmem:[#allocation2 + $0xf1] sm:$0xff]
      %v2866 = vld [vmem:[#allocation2 + $0xf9] sm:$0xff]
      %v2867 = vld [vmem:[#allocation2 + $0x109] sm:$0xff]
      %v2868 = vld [vmem:[#allocation2 + $0x111] sm:$0xff]
      %v2869 = vld [vmem:[#allocation2 + $0x121] sm:$0xff]
      %v2870 = vld [vmem:[#allocation2 + $0x129] sm:$0xff]
      %v2871 = vld [vmem:[#allocation2 + $0x139] sm:$0xff]
      %v2872 = vld [vmem:[#allocation2 + $0x141] sm:$0xff]
      %v2873 = vld [vmem:[#allocation2 + $0x151] sm:$0xff]
      %v2874 = vld [vmem:[#allocation2 + $0x159] sm:$0xff]
      %v2875 = vld [vmem:[#allocation2 + $0x169] sm:$0xff]
      %v2876 = vld [vmem:[#allocation2 + $0x171] sm:$0xff]
      %s2877 = scalar_lea.vmem %s3, 4
      %v2878 = vld [vmem:[%s2877] sm:$0xf]
      %v2880 = vsel %vm292, %v2845, 0
      %v2883 = vsel %vm292, %v2846, 0
      %v2886 = vsel %vm292, %v2847, 0
      %v2889 = vsel %vm292, %v2848, 0
      %v2892 = vsel %vm292, %v2849, 0
      %v2895 = vsel %vm292, %v2850, 0
      %v2898 = vsel %vm292, %v2851, 0
      %v2901 = vsel %vm292, %v2852, 0
      %v2904 = vsel %vm292, %v2853, 0
      %v2907 = vsel %vm292, %v2854, 0
      %v2910 = vsel %vm292, %v2855, 0
      %v2913 = vsel %vm292, %v2856, 0
      %v2916 = vsel %vm292, %v2857, 0
      %v2919 = vsel %vm292, %v2858, 0
      %v2922 = vsel %vm292, %v2859, 0
      %v2925 = vsel %vm292, %v2860, 0
      %v2928 = vsel %vm292, %v2861, 0
      %v2931 = vsel %vm292, %v2862, 0
      %v2934 = vsel %vm292, %v2863, 0
      %v2937 = vsel %vm292, %v2864, 0
      %v2940 = vsel %vm292, %v2865, 0
      %v2943 = vsel %vm292, %v2866, 0
      %v2946 = vsel %vm292, %v2867, 0
      %v2949 = vsel %vm292, %v2868, 0
      %v2952 = vsel %vm292, %v2869, 0
      %v2955 = vsel %vm292, %v2870, 0
      %v2958 = vsel %vm292, %v2871, 0
      %v2961 = vsel %vm292, %v2872, 0
      %v2964 = vsel %vm292, %v2873, 0
      %v2967 = vsel %vm292, %v2874, 0
      %v2970 = vsel %vm292, %v2875, 0
      %v2973 = vsel %vm292, %v2876, 0
      %v2976 = vsel %vm389, %v2878, 0
      %2978 = vmatpush.msra.mxu0 0.0
      %2979 = vmatpush.msra.mxu0 0.0
      %2980 = vmatpush.msra.mxu0 0.0
      %2981 = vmatpush.msra.mxu0 0.0
      %2982 = vmatpush.msra.mxu0 0.0
      %2983 = vmatpush.msra.mxu0 0.0
      %2984 = vmatpush.msra.mxu0 0.0
      %2985 = vmatpush.msra.mxu0 0.0
      %2986 = vmatpush.msra.mxu0 0.0
      %2987 = vmatpush.msra.mxu0 0.0
      %2988 = vmatpush.msra.mxu0 0.0
      %2989 = vmatpush.msra.mxu0 0.0
      %2990 = vmatpush.msra.mxu0 0.0
      %2991 = vmatpush.msra.mxu0 0.0
      %2992 = vmatpush.msra.mxu0 0.0
      %2993 = vmatpush.msra.mxu0 %v2976
      %2994 = vmatmul.f32.gmra.mxu0 %v2880
      %v2995 = vpop.f32.mrf.mxu0
      %v2996 = vadd.f32 0.0, %v2995
      %2997 = vmatmul.f32.gmra.mxu0 %v2883
      %v2998 = vpop.f32.mrf.mxu0
      %v2999 = vadd.f32 0.0, %v2998
      %3000 = vmatmul.f32.gmra.mxu0 %v2886
      %v3001 = vpop.f32.mrf.mxu0
      %v3002 = vadd.f32 0.0, %v3001
      %3003 = vmatmul.f32.gmra.mxu0 %v2889
      %v3004 = vpop.f32.mrf.mxu0
      %v3005 = vadd.f32 0.0, %v3004
      %3006 = vmatmul.f32.gmra.mxu0 %v2892
      %v3007 = vpop.f32.mrf.mxu0
      %v3008 = vadd.f32 0.0, %v3007
      %3009 = vmatmul.f32.gmra.mxu0 %v2895
      %v3010 = vpop.f32.mrf.mxu0
      %v3011 = vadd.f32 0.0, %v3010
      %3012 = vmatmul.f32.gmra.mxu0 %v2898
      %v3013 = vpop.f32.mrf.mxu0
      %v3014 = vadd.f32 0.0, %v3013
      %3015 = vmatmul.f32.gmra.mxu0 %v2901
      %v3016 = vpop.f32.mrf.mxu0
      %v3017 = vadd.f32 0.0, %v3016
      %3018 = vmatmul.f32.gmra.mxu0 %v2904
      %v3019 = vpop.f32.mrf.mxu0
      %v3020 = vadd.f32 0.0, %v3019
      %3021 = vmatmul.f32.gmra.mxu0 %v2907
      %v3022 = vpop.f32.mrf.mxu0
      %v3023 = vadd.f32 0.0, %v3022
      %3024 = vmatmul.f32.gmra.mxu0 %v2910
      %v3025 = vpop.f32.mrf.mxu0
      %v3026 = vadd.f32 0.0, %v3025
      %3027 = vmatmul.f32.gmra.mxu0 %v2913
      %v3028 = vpop.f32.mrf.mxu0
      %v3029 = vadd.f32 0.0, %v3028
      %3030 = vmatmul.f32.gmra.mxu0 %v2916
      %v3031 = vpop.f32.mrf.mxu0
      %v3032 = vadd.f32 0.0, %v3031
      %3033 = vmatmul.f32.gmra.mxu0 %v2919
      %v3034 = vpop.f32.mrf.mxu0
      %v3035 = vadd.f32 0.0, %v3034
      %3036 = vmatmul.f32.gmra.mxu0 %v2922
      %v3037 = vpop.f32.mrf.mxu0
      %v3038 = vadd.f32 0.0, %v3037
      %3039 = vmatmul.f32.gmra.mxu0 %v2925
      %v3040 = vpop.f32.mrf.mxu0
      %v3041 = vadd.f32 0.0, %v3040
      %3042 = vmatmul.f32.gmra.mxu0 %v2928
      %v3043 = vpop.f32.mrf.mxu0
      %v3044 = vadd.f32 0.0, %v3043
      %3045 = vmatmul.f32.gmra.mxu0 %v2931
      %v3046 = vpop.f32.mrf.mxu0
      %v3047 = vadd.f32 0.0, %v3046
      %3048 = vmatmul.f32.gmra.mxu0 %v2934
      %v3049 = vpop.f32.mrf.mxu0
      %v3050 = vadd.f32 0.0, %v3049
      %3051 = vmatmul.f32.gmra.mxu0 %v2937
      %v3052 = vpop.f32.mrf.mxu0
      %v3053 = vadd.f32 0.0, %v3052
      %3054 = vmatmul.f32.gmra.mxu0 %v2940
      %v3055 = vpop.f32.mrf.mxu0
      %v3056 = vadd.f32 0.0, %v3055
      %3057 = vmatmul.f32.gmra.mxu0 %v2943
      %v3058 = vpop.f32.mrf.mxu0
      %v3059 = vadd.f32 0.0, %v3058
      %3060 = vmatmul.f32.gmra.mxu0 %v2946
      %v3061 = vpop.f32.mrf.mxu0
      %v3062 = vadd.f32 0.0, %v3061
      %3063 = vmatmul.f32.gmra.mxu0 %v2949
      %v3064 = vpop.f32.mrf.mxu0
      %v3065 = vadd.f32 0.0, %v3064
      %3066 = vmatmul.f32.gmra.mxu0 %v2952
      %v3067 = vpop.f32.mrf.mxu0
      %v3068 = vadd.f32 0.0, %v3067
      %3069 = vmatmul.f32.gmra.mxu0 %v2955
      %v3070 = vpop.f32.mrf.mxu0
      %v3071 = vadd.f32 0.0, %v3070
      %3072 = vmatmul.f32.gmra.mxu0 %v2958
      %v3073 = vpop.f32.mrf.mxu0
      %v3074 = vadd.f32 0.0, %v3073
      %3075 = vmatmul.f32.gmra.mxu0 %v2961
      %v3076 = vpop.f32.mrf.mxu0
      %v3077 = vadd.f32 0.0, %v3076
      %3078 = vmatmul.f32.gmra.mxu0 %v2964
      %v3079 = vpop.f32.mrf.mxu0
      %v3080 = vadd.f32 0.0, %v3079
      %3081 = vmatmul.f32.gmra.mxu0 %v2967
      %v3082 = vpop.f32.mrf.mxu0
      %v3083 = vadd.f32 0.0, %v3082
      %3084 = vmatmul.f32.gmra.mxu0 %v2970
      %v3085 = vpop.f32.mrf.mxu0
      %v3086 = vadd.f32 0.0, %v3085
      %3087 = vmatmul.f32.gmra.mxu0 %v2973
      %v3088 = vpop.f32.mrf.mxu0
      %v3089 = vadd.f32 0.0, %v3088
      %3090 = vdwg.mxu0
      %v3092 = vsel %vm292, %v2812, 0
      %v3095 = vsel %vm292, %v2813, 0
      %v3098 = vsel %vm292, %v2814, 0
      %v3101 = vsel %vm292, %v2815, 0
      %v3104 = vsel %vm292, %v2816, 0
      %v3107 = vsel %vm292, %v2817, 0
      %v3110 = vsel %vm292, %v2818, 0
      %v3113 = vsel %vm292, %v2819, 0
      %v3116 = vsel %vm292, %v2820, 0
      %v3119 = vsel %vm292, %v2821, 0
      %v3122 = vsel %vm292, %v2822, 0
      %v3125 = vsel %vm292, %v2823, 0
      %v3128 = vsel %vm292, %v2824, 0
      %v3131 = vsel %vm292, %v2825, 0
      %v3134 = vsel %vm292, %v2826, 0
      %v3137 = vsel %vm292, %v2827, 0
      %v3140 = vsel %vm292, %v2828, 0
      %v3143 = vsel %vm292, %v2829, 0
      %v3146 = vsel %vm292, %v2830, 0
      %v3149 = vsel %vm292, %v2831, 0
      %v3152 = vsel %vm292, %v2832, 0
      %v3155 = vsel %vm292, %v2833, 0
      %v3158 = vsel %vm292, %v2834, 0
      %v3161 = vsel %vm292, %v2835, 0
      %v3164 = vsel %vm292, %v2836, 0
      %v3167 = vsel %vm292, %v2837, 0
      %v3170 = vsel %vm292, %v2838, 0
      %v3173 = vsel %vm292, %v2839, 0
      %v3176 = vsel %vm292, %v2840, 0
      %v3179 = vsel %vm292, %v2841, 0
      %v3182 = vsel %vm292, %v2842, 0
      %v3185 = vsel %vm292, %v2843, 0
      %v3188 = vsel %vm389, %v2844, 0
      %3190 = vmatpush.msra.mxu0 0.0
      %3191 = vmatpush.msra.mxu0 0.0
      %3192 = vmatpush.msra.mxu0 0.0
      %3193 = vmatpush.msra.mxu0 0.0
      %3194 = vmatpush.msra.mxu0 0.0
      %3195 = vmatpush.msra.mxu0 0.0
      %3196 = vmatpush.msra.mxu0 0.0
      %3197 = vmatpush.msra.mxu0 0.0
      %3198 = vmatpush.msra.mxu0 0.0
      %3199 = vmatpush.msra.mxu0 0.0
      %3200 = vmatpush.msra.mxu0 0.0
      %3201 = vmatpush.msra.mxu0 0.0
      %3202 = vmatpush.msra.mxu0 0.0
      %3203 = vmatpush.msra.mxu0 0.0
      %3204 = vmatpush.msra.mxu0 0.0
      %3205 = vmatpush.msra.mxu0 %v3188
      %3206 = vmatmul.f32.gmra.mxu0 %v3092
      %v3207 = vpop.f32.mrf.mxu0
      %v3208 = vadd.f32 %v2996, %v3207
      %3209 = vmatmul.f32.gmra.mxu0 %v3095
      %v3210 = vpop.f32.mrf.mxu0
      %v3211 = vadd.f32 %v2999, %v3210
      %3212 = vmatmul.f32.gmra.mxu0 %v3098
      %v3213 = vpop.f32.mrf.mxu0
      %v3214 = vadd.f32 %v3002, %v3213
      %3215 = vmatmul.f32.gmra.mxu0 %v3101
      %v3216 = vpop.f32.mrf.mxu0
      %v3217 = vadd.f32 %v3005, %v3216
      %3218 = vmatmul.f32.gmra.mxu0 %v3104
      %v3219 = vpop.f32.mrf.mxu0
      %v3220 = vadd.f32 %v3008, %v3219
      %3221 = vmatmul.f32.gmra.mxu0 %v3107
      %v3222 = vpop.f32.mrf.mxu0
      %v3223 = vadd.f32 %v3011, %v3222
      %3224 = vmatmul.f32.gmra.mxu0 %v3110
      %v3225 = vpop.f32.mrf.mxu0
      %v3226 = vadd.f32 %v3014, %v3225
      %3227 = vmatmul.f32.gmra.mxu0 %v3113
      %v3228 = vpop.f32.mrf.mxu0
      %v3229 = vadd.f32 %v3017, %v3228
      %3230 = vmatmul.f32.gmra.mxu0 %v3116
      %v3231 = vpop.f32.mrf.mxu0
      %v3232 = vadd.f32 %v3020, %v3231
      %3233 = vmatmul.f32.gmra.mxu0 %v3119
      %v3234 = vpop.f32.mrf.mxu0
      %v3235 = vadd.f32 %v3023, %v3234
      %3236 = vmatmul.f32.gmra.mxu0 %v3122
      %v3237 = vpop.f32.mrf.mxu0
      %v3238 = vadd.f32 %v3026, %v3237
      %3239 = vmatmul.f32.gmra.mxu0 %v3125
      %v3240 = vpop.f32.mrf.mxu0
      %v3241 = vadd.f32 %v3029, %v3240
      %3242 = vmatmul.f32.gmra.mxu0 %v3128
      %v3243 = vpop.f32.mrf.mxu0
      %v3244 = vadd.f32 %v3032, %v3243
      %3245 = vmatmul.f32.gmra.mxu0 %v3131
      %v3246 = vpop.f32.mrf.mxu0
      %v3247 = vadd.f32 %v3035, %v3246
      %3248 = vmatmul.f32.gmra.mxu0 %v3134
      %v3249 = vpop.f32.mrf.mxu0
      %v3250 = vadd.f32 %v3038, %v3249
      %3251 = vmatmul.f32.gmra.mxu0 %v3137
      %v3252 = vpop.f32.mrf.mxu0
      %v3253 = vadd.f32 %v3041, %v3252
      %3254 = vmatmul.f32.gmra.mxu0 %v3140
      %v3255 = vpop.f32.mrf.mxu0
      %v3256 = vadd.f32 %v3044, %v3255
      %3257 = vmatmul.f32.gmra.mxu0 %v3143
      %v3258 = vpop.f32.mrf.mxu0
      %v3259 = vadd.f32 %v3047, %v3258
      %3260 = vmatmul.f32.gmra.mxu0 %v3146
      %v3261 = vpop.f32.mrf.mxu0
      %v3262 = vadd.f32 %v3050, %v3261
      %3263 = vmatmul.f32.gmra.mxu0 %v3149
      %v3264 = vpop.f32.mrf.mxu0
      %v3265 = vadd.f32 %v3053, %v3264
      %3266 = vmatmul.f32.gmra.mxu0 %v3152
      %v3267 = vpop.f32.mrf.mxu0
      %v3268 = vadd.f32 %v3056, %v3267
      %3269 = vmatmul.f32.gmra.mxu0 %v3155
      %v3270 = vpop.f32.mrf.mxu0
      %v3271 = vadd.f32 %v3059, %v3270
      %3272 = vmatmul.f32.gmra.mxu0 %v3158
      %v3273 = vpop.f32.mrf.mxu0
      %v3274 = vadd.f32 %v3062, %v3273
      %3275 = vmatmul.f32.gmra.mxu0 %v3161
      %v3276 = vpop.f32.mrf.mxu0
      %v3277 = vadd.f32 %v3065, %v3276
      %3278 = vmatmul.f32.gmra.mxu0 %v3164
      %v3279 = vpop.f32.mrf.mxu0
      %v3280 = vadd.f32 %v3068, %v3279
      %3281 = vmatmul.f32.gmra.mxu0 %v3167
      %v3282 = vpop.f32.mrf.mxu0
      %v3283 = vadd.f32 %v3071, %v3282
      %3284 = vmatmul.f32.gmra.mxu0 %v3170
      %v3285 = vpop.f32.mrf.mxu0
      %v3286 = vadd.f32 %v3074, %v3285
      %3287 = vmatmul.f32.gmra.mxu0 %v3173
      %v3288 = vpop.f32.mrf.mxu0
      %v3289 = vadd.f32 %v3077, %v3288
      %3290 = vmatmul.f32.gmra.mxu0 %v3176
      %v3291 = vpop.f32.mrf.mxu0
      %v3292 = vadd.f32 %v3080, %v3291
      %3293 = vmatmul.f32.gmra.mxu0 %v3179
      %v3294 = vpop.f32.mrf.mxu0
      %v3295 = vadd.f32 %v3083, %v3294
      %3296 = vmatmul.f32.gmra.mxu0 %v3182
      %v3297 = vpop.f32.mrf.mxu0
      %v3298 = vadd.f32 %v3086, %v3297
      %3299 = vmatmul.f32.gmra.mxu0 %v3185
      %v3300 = vpop.f32.mrf.mxu0
      %v3301 = vadd.f32 %v3089, %v3300
      %3302 = vdwg.mxu0
      %v3303 = vld [vmem:[#allocation2 + $0x2] sm:$0xff]
      %v3304 = vld [vmem:[#allocation2 + $0xa] sm:$0xff]
      %v3305 = vld [vmem:[#allocation2 + $0x1a] sm:$0xff]
      %v3306 = vld [vmem:[#allocation2 + $0x22] sm:$0xff]
      %v3307 = vld [vmem:[#allocation2 + $0x32] sm:$0xff]
      %v3308 = vld [vmem:[#allocation2 + $0x3a] sm:$0xff]
      %v3309 = vld [vmem:[#allocation2 + $0x4a] sm:$0xff]
      %v3310 = vld [vmem:[#allocation2 + $0x52] sm:$0xff]
      %v3311 = vld [vmem:[#allocation2 + $0x62] sm:$0xff]
      %v3312 = vld [vmem:[#allocation2 + $0x6a] sm:$0xff]
      %v3313 = vld [vmem:[#allocation2 + $0x7a] sm:$0xff]
      %v3314 = vld [vmem:[#allocation2 + $0x82] sm:$0xff]
      %v3315 = vld [vmem:[#allocation2 + $0x92] sm:$0xff]
      %v3316 = vld [vmem:[#allocation2 + $0x9a] sm:$0xff]
      %v3317 = vld [vmem:[#allocation2 + $0xaa] sm:$0xff]
      %v3318 = vld [vmem:[#allocation2 + $0xb2] sm:$0xff]
      %v3319 = vld [vmem:[#allocation2 + $0xc2] sm:$0xff]
      %v3320 = vld [vmem:[#allocation2 + $0xca] sm:$0xff]
      %v3321 = vld [vmem:[#allocation2 + $0xda] sm:$0xff]
      %v3322 = vld [vmem:[#allocation2 + $0xe2] sm:$0xff]
      %v3323 = vld [vmem:[#allocation2 + $0xf2] sm:$0xff]
      %v3324 = vld [vmem:[#allocation2 + $0xfa] sm:$0xff]
      %v3325 = vld [vmem:[#allocation2 + $0x10a] sm:$0xff]
      %v3326 = vld [vmem:[#allocation2 + $0x112] sm:$0xff]
      %v3327 = vld [vmem:[#allocation2 + $0x122] sm:$0xff]
      %v3328 = vld [vmem:[#allocation2 + $0x12a] sm:$0xff]
      %v3329 = vld [vmem:[#allocation2 + $0x13a] sm:$0xff]
      %v3330 = vld [vmem:[#allocation2 + $0x142] sm:$0xff]
      %v3331 = vld [vmem:[#allocation2 + $0x152] sm:$0xff]
      %v3332 = vld [vmem:[#allocation2 + $0x15a] sm:$0xff]
      %v3333 = vld [vmem:[#allocation2 + $0x16a] sm:$0xff]
      %v3334 = vld [vmem:[#allocation2 + $0x172] sm:$0xff]
      %s3335 = scalar_lea.vmem %s3, 8
      %v3336 = vld [vmem:[%s3335] sm:$0xf]
      %v3338 = vsel %vm292, %v3303, 0
      %v3341 = vsel %vm292, %v3304, 0
      %v3344 = vsel %vm292, %v3305, 0
      %v3347 = vsel %vm292, %v3306, 0
      %v3350 = vsel %vm292, %v3307, 0
      %v3353 = vsel %vm292, %v3308, 0
      %v3356 = vsel %vm292, %v3309, 0
      %v3359 = vsel %vm292, %v3310, 0
      %v3362 = vsel %vm292, %v3311, 0
      %v3365 = vsel %vm292, %v3312, 0
      %v3368 = vsel %vm292, %v3313, 0
      %v3371 = vsel %vm292, %v3314, 0
      %v3374 = vsel %vm292, %v3315, 0
      %v3377 = vsel %vm292, %v3316, 0
      %v3380 = vsel %vm292, %v3317, 0
      %v3383 = vsel %vm292, %v3318, 0
      %v3386 = vsel %vm292, %v3319, 0
      %v3389 = vsel %vm292, %v3320, 0
      %v3392 = vsel %vm292, %v3321, 0
      %v3395 = vsel %vm292, %v3322, 0
      %v3398 = vsel %vm292, %v3323, 0
      %v3401 = vsel %vm292, %v3324, 0
      %v3404 = vsel %vm292, %v3325, 0
      %v3407 = vsel %vm292, %v3326, 0
      %v3410 = vsel %vm292, %v3327, 0
      %v3413 = vsel %vm292, %v3328, 0
      %v3416 = vsel %vm292, %v3329, 0
      %v3419 = vsel %vm292, %v3330, 0
      %v3422 = vsel %vm292, %v3331, 0
      %v3425 = vsel %vm292, %v3332, 0
      %v3428 = vsel %vm292, %v3333, 0
      %v3431 = vsel %vm292, %v3334, 0
      %v3434 = vsel %vm389, %v3336, 0
      %3436 = vmatpush.msra.mxu0 0.0
      %3437 = vmatpush.msra.mxu0 0.0
      %3438 = vmatpush.msra.mxu0 0.0
      %3439 = vmatpush.msra.mxu0 0.0
      %3440 = vmatpush.msra.mxu0 0.0
      %3441 = vmatpush.msra.mxu0 0.0
      %3442 = vmatpush.msra.mxu0 0.0
      %3443 = vmatpush.msra.mxu0 0.0
      %3444 = vmatpush.msra.mxu0 0.0
      %3445 = vmatpush.msra.mxu0 0.0
      %3446 = vmatpush.msra.mxu0 0.0
      %3447 = vmatpush.msra.mxu0 0.0
      %3448 = vmatpush.msra.mxu0 0.0
      %3449 = vmatpush.msra.mxu0 0.0
      %3450 = vmatpush.msra.mxu0 0.0
      %3451 = vmatpush.msra.mxu0 %v3434
      %3452 = vmatmul.f32.gmra.mxu0 %v3338
      %v3453 = vpop.f32.mrf.mxu0
      %v3454 = vadd.f32 0.0, %v3453
      %3455 = vmatmul.f32.gmra.mxu0 %v3341
      %v3456 = vpop.f32.mrf.mxu0
      %v3457 = vadd.f32 0.0, %v3456
      %3458 = vmatmul.f32.gmra.mxu0 %v3344
      %v3459 = vpop.f32.mrf.mxu0
      %v3460 = vadd.f32 0.0, %v3459
      %3461 = vmatmul.f32.gmra.mxu0 %v3347
      %v3462 = vpop.f32.mrf.mxu0
      %v3463 = vadd.f32 0.0, %v3462
      %3464 = vmatmul.f32.gmra.mxu0 %v3350
      %v3465 = vpop.f32.mrf.mxu0
      %v3466 = vadd.f32 0.0, %v3465
      %3467 = vmatmul.f32.gmra.mxu0 %v3353
      %v3468 = vpop.f32.mrf.mxu0
      %v3469 = vadd.f32 0.0, %v3468
      %3470 = vmatmul.f32.gmra.mxu0 %v3356
      %v3471 = vpop.f32.mrf.mxu0
      %v3472 = vadd.f32 0.0, %v3471
      %3473 = vmatmul.f32.gmra.mxu0 %v3359
      %v3474 = vpop.f32.mrf.mxu0
      %v3475 = vadd.f32 0.0, %v3474
      %3476 = vmatmul.f32.gmra.mxu0 %v3362
      %v3477 = vpop.f32.mrf.mxu0
      %v3478 = vadd.f32 0.0, %v3477
      %3479 = vmatmul.f32.gmra.mxu0 %v3365
      %v3480 = vpop.f32.mrf.mxu0
      %v3481 = vadd.f32 0.0, %v3480
      %3482 = vmatmul.f32.gmra.mxu0 %v3368
      %v3483 = vpop.f32.mrf.mxu0
      %v3484 = vadd.f32 0.0, %v3483
      %3485 = vmatmul.f32.gmra.mxu0 %v3371
      %v3486 = vpop.f32.mrf.mxu0
      %v3487 = vadd.f32 0.0, %v3486
      %3488 = vmatmul.f32.gmra.mxu0 %v3374
      %v3489 = vpop.f32.mrf.mxu0
      %v3490 = vadd.f32 0.0, %v3489
      %3491 = vmatmul.f32.gmra.mxu0 %v3377
      %v3492 = vpop.f32.mrf.mxu0
      %v3493 = vadd.f32 0.0, %v3492
      %3494 = vmatmul.f32.gmra.mxu0 %v3380
      %v3495 = vpop.f32.mrf.mxu0
      %v3496 = vadd.f32 0.0, %v3495
      %3497 = vmatmul.f32.gmra.mxu0 %v3383
      %v3498 = vpop.f32.mrf.mxu0
      %v3499 = vadd.f32 0.0, %v3498
      %3500 = vmatmul.f32.gmra.mxu0 %v3386
      %v3501 = vpop.f32.mrf.mxu0
      %v3502 = vadd.f32 0.0, %v3501
      %3503 = vmatmul.f32.gmra.mxu0 %v3389
      %v3504 = vpop.f32.mrf.mxu0
      %v3505 = vadd.f32 0.0, %v3504
      %3506 = vmatmul.f32.gmra.mxu0 %v3392
      %v3507 = vpop.f32.mrf.mxu0
      %v3508 = vadd.f32 0.0, %v3507
      %3509 = vmatmul.f32.gmra.mxu0 %v3395
      %v3510 = vpop.f32.mrf.mxu0
      %v3511 = vadd.f32 0.0, %v3510
      %3512 = vmatmul.f32.gmra.mxu0 %v3398
      %v3513 = vpop.f32.mrf.mxu0
      %v3514 = vadd.f32 0.0, %v3513
      %3515 = vmatmul.f32.gmra.mxu0 %v3401
      %v3516 = vpop.f32.mrf.mxu0
      %v3517 = vadd.f32 0.0, %v3516
      %3518 = vmatmul.f32.gmra.mxu0 %v3404
      %v3519 = vpop.f32.mrf.mxu0
      %v3520 = vadd.f32 0.0, %v3519
      %3521 = vmatmul.f32.gmra.mxu0 %v3407
      %v3522 = vpop.f32.mrf.mxu0
      %v3523 = vadd.f32 0.0, %v3522
      %3524 = vmatmul.f32.gmra.mxu0 %v3410
      %v3525 = vpop.f32.mrf.mxu0
      %v3526 = vadd.f32 0.0, %v3525
      %3527 = vmatmul.f32.gmra.mxu0 %v3413
      %v3528 = vpop.f32.mrf.mxu0
      %v3529 = vadd.f32 0.0, %v3528
      %3530 = vmatmul.f32.gmra.mxu0 %v3416
      %v3531 = vpop.f32.mrf.mxu0
      %v3532 = vadd.f32 0.0, %v3531
      %3533 = vmatmul.f32.gmra.mxu0 %v3419
      %v3534 = vpop.f32.mrf.mxu0
      %v3535 = vadd.f32 0.0, %v3534
      %3536 = vmatmul.f32.gmra.mxu0 %v3422
      %v3537 = vpop.f32.mrf.mxu0
      %v3538 = vadd.f32 0.0, %v3537
      %3539 = vmatmul.f32.gmra.mxu0 %v3425
      %v3540 = vpop.f32.mrf.mxu0
      %v3541 = vadd.f32 0.0, %v3540
      %3542 = vmatmul.f32.gmra.mxu0 %v3428
      %v3543 = vpop.f32.mrf.mxu0
      %v3544 = vadd.f32 0.0, %v3543
      %3545 = vmatmul.f32.gmra.mxu0 %v3431
      %v3546 = vpop.f32.mrf.mxu0
      %v3547 = vadd.f32 0.0, %v3546
      %3548 = vdwg.mxu0
      %v3549 = vadd.f32 %v3208, %v3454
      %v3550 = vadd.f32 %v3211, %v3457
      %v3551 = vadd.f32 %v3214, %v3460
      %v3552 = vadd.f32 %v3217, %v3463
      %v3553 = vadd.f32 %v3220, %v3466
      %v3554 = vadd.f32 %v3223, %v3469
      %v3555 = vadd.f32 %v3226, %v3472
      %v3556 = vadd.f32 %v3229, %v3475
      %v3557 = vadd.f32 %v3232, %v3478
      %v3558 = vadd.f32 %v3235, %v3481
      %v3559 = vadd.f32 %v3238, %v3484
      %v3560 = vadd.f32 %v3241, %v3487
      %v3561 = vadd.f32 %v3244, %v3490
      %v3562 = vadd.f32 %v3247, %v3493
      %v3563 = vadd.f32 %v3250, %v3496
      %v3564 = vadd.f32 %v3253, %v3499
      %v3565 = vadd.f32 %v3256, %v3502
      %v3566 = vadd.f32 %v3259, %v3505
      %v3567 = vadd.f32 %v3262, %v3508
      %v3568 = vadd.f32 %v3265, %v3511
      %v3569 = vadd.f32 %v3268, %v3514
      %v3570 = vadd.f32 %v3271, %v3517
      %v3571 = vadd.f32 %v3274, %v3520
      %v3572 = vadd.f32 %v3277, %v3523
      %v3573 = vadd.f32 %v3280, %v3526
      %v3574 = vadd.f32 %v3283, %v3529
      %v3575 = vadd.f32 %v3286, %v3532
      %v3576 = vadd.f32 %v3289, %v3535
      %v3577 = vadd.f32 %v3292, %v3538
      %v3578 = vadd.f32 %v3295, %v3541
      %v3579 = vadd.f32 %v3298, %v3544
      %v3580 = vadd.f32 %v3301, %v3547
      %v3581 = vld [vmem:[%s2734] sm:$0xff]
      %v3582 = vld [vmem:[%s2734 + $0x8] sm:$0xff]
      %v3583 = vld [vmem:[%s2734 + $0x18] sm:$0xff]
      %v3584 = vld [vmem:[%s2734 + $0x20] sm:$0xff]
      %v3585 = vld [vmem:[%s2734 + $0x30] sm:$0xff]
      %v3586 = vld [vmem:[%s2734 + $0x38] sm:$0xff]
      %v3587 = vld [vmem:[%s2734 + $0x48] sm:$0xff]
      %v3588 = vld [vmem:[%s2734 + $0x50] sm:$0xff]
      %v3589 = vld [vmem:[%s2734 + $0x60] sm:$0xff]
      %v3590 = vld [vmem:[%s2734 + $0x68] sm:$0xff]
      %v3591 = vld [vmem:[%s2734 + $0x78] sm:$0xff]
      %v3592 = vld [vmem:[%s2734 + $0x80] sm:$0xff]
      %v3593 = vld [vmem:[%s2734 + $0x90] sm:$0xff]
      %v3594 = vld [vmem:[%s2734 + $0x98] sm:$0xff]
      %v3595 = vld [vmem:[%s2734 + $0xa8] sm:$0xff]
      %v3596 = vld [vmem:[%s2734 + $0xb0] sm:$0xff]
      %v3597 = vld [vmem:[%s2734 + $0xc0] sm:$0xff]
      %v3598 = vld [vmem:[%s2734 + $0xc8] sm:$0xff]
      %v3599 = vld [vmem:[%s2734 + $0xd8] sm:$0xff]
      %v3600 = vld [vmem:[%s2734 + $0xe0] sm:$0xff]
      %v3601 = vld [vmem:[%s2734 + $0xf0] sm:$0xff]
      %v3602 = vld [vmem:[%s2734 + $0xf8] sm:$0xff]
      %v3603 = vld [vmem:[%s2734 + $0x108] sm:$0xff]
      %v3604 = vld [vmem:[%s2734 + $0x110] sm:$0xff]
      %v3605 = vld [vmem:[%s2734 + $0x120] sm:$0xff]
      %v3606 = vld [vmem:[%s2734 + $0x128] sm:$0xff]
      %v3607 = vld [vmem:[%s2734 + $0x138] sm:$0xff]
      %v3608 = vld [vmem:[%s2734 + $0x140] sm:$0xff]
      %v3609 = vld [vmem:[%s2734 + $0x150] sm:$0xff]
      %v3610 = vld [vmem:[%s2734 + $0x158] sm:$0xff]
      %v3611 = vld [vmem:[%s2734 + $0x168] sm:$0xff]
      %v3612 = vld [vmem:[%s2734 + $0x170] sm:$0xff]
      %s3613 = scalar_lea.vmem %s3, 12
      %v3614 = vld [vmem:[%s3613] sm:$0xf]
      %v3616 = vsel %vm292, %v3581, 0
      %v3619 = vsel %vm292, %v3582, 0
      %v3622 = vsel %vm292, %v3583, 0
      %v3625 = vsel %vm292, %v3584, 0
      %v3628 = vsel %vm292, %v3585, 0
      %v3631 = vsel %vm292, %v3586, 0
      %v3634 = vsel %vm292, %v3587, 0
      %v3637 = vsel %vm292, %v3588, 0
      %v3640 = vsel %vm292, %v3589, 0
      %v3643 = vsel %vm292, %v3590, 0
      %v3646 = vsel %vm292, %v3591, 0
      %v3649 = vsel %vm292, %v3592, 0
      %v3652 = vsel %vm292, %v3593, 0
      %v3655 = vsel %vm292, %v3594, 0
      %v3658 = vsel %vm292, %v3595, 0
      %v3661 = vsel %vm292, %v3596, 0
      %v3664 = vsel %vm292, %v3597, 0
      %v3667 = vsel %vm292, %v3598, 0
      %v3670 = vsel %vm292, %v3599, 0
      %v3673 = vsel %vm292, %v3600, 0
      %v3676 = vsel %vm292, %v3601, 0
      %v3679 = vsel %vm292, %v3602, 0
      %v3682 = vsel %vm292, %v3603, 0
      %v3685 = vsel %vm292, %v3604, 0
      %v3688 = vsel %vm292, %v3605, 0
      %v3691 = vsel %vm292, %v3606, 0
      %v3694 = vsel %vm292, %v3607, 0
      %v3697 = vsel %vm292, %v3608, 0
      %v3700 = vsel %vm292, %v3609, 0
      %v3703 = vsel %vm292, %v3610, 0
      %v3706 = vsel %vm292, %v3611, 0
      %v3709 = vsel %vm292, %v3612, 0
      %v3712 = vsel %vm389, %v3614, 0
      %3714 = vmatpush.msra.mxu0 0.0
      %3715 = vmatpush.msra.mxu0 0.0
      %3716 = vmatpush.msra.mxu0 0.0
      %3717 = vmatpush.msra.mxu0 0.0
      %3718 = vmatpush.msra.mxu0 0.0
      %3719 = vmatpush.msra.mxu0 0.0
      %3720 = vmatpush.msra.mxu0 0.0
      %3721 = vmatpush.msra.mxu0 0.0
      %3722 = vmatpush.msra.mxu0 0.0
      %3723 = vmatpush.msra.mxu0 0.0
      %3724 = vmatpush.msra.mxu0 0.0
      %3725 = vmatpush.msra.mxu0 0.0
      %3726 = vmatpush.msra.mxu0 0.0
      %3727 = vmatpush.msra.mxu0 0.0
      %3728 = vmatpush.msra.mxu0 0.0
      %3729 = vmatpush.msra.mxu0 %v3712
      %3730 = vmatmul.f32.gmra.mxu0 %v3616
      %v3731 = vpop.f32.mrf.mxu0
      %v3732 = vadd.f32 0.0, %v3731
      %3733 = vmatmul.f32.gmra.mxu0 %v3619
      %v3734 = vpop.f32.mrf.mxu0
      %v3735 = vadd.f32 0.0, %v3734
      %3736 = vmatmul.f32.gmra.mxu0 %v3622
      %v3737 = vpop.f32.mrf.mxu0
      %v3738 = vadd.f32 0.0, %v3737
      %3739 = vmatmul.f32.gmra.mxu0 %v3625
      %v3740 = vpop.f32.mrf.mxu0
      %v3741 = vadd.f32 0.0, %v3740
      %3742 = vmatmul.f32.gmra.mxu0 %v3628
      %v3743 = vpop.f32.mrf.mxu0
      %v3744 = vadd.f32 0.0, %v3743
      %3745 = vmatmul.f32.gmra.mxu0 %v3631
      %v3746 = vpop.f32.mrf.mxu0
      %v3747 = vadd.f32 0.0, %v3746
      %3748 = vmatmul.f32.gmra.mxu0 %v3634
      %v3749 = vpop.f32.mrf.mxu0
      %v3750 = vadd.f32 0.0, %v3749
      %3751 = vmatmul.f32.gmra.mxu0 %v3637
      %v3752 = vpop.f32.mrf.mxu0
      %v3753 = vadd.f32 0.0, %v3752
      %3754 = vmatmul.f32.gmra.mxu0 %v3640
      %v3755 = vpop.f32.mrf.mxu0
      %v3756 = vadd.f32 0.0, %v3755
      %3757 = vmatmul.f32.gmra.mxu0 %v3643
      %v3758 = vpop.f32.mrf.mxu0
      %v3759 = vadd.f32 0.0, %v3758
      %3760 = vmatmul.f32.gmra.mxu0 %v3646
      %v3761 = vpop.f32.mrf.mxu0
      %v3762 = vadd.f32 0.0, %v3761
      %3763 = vmatmul.f32.gmra.mxu0 %v3649
      %v3764 = vpop.f32.mrf.mxu0
      %v3765 = vadd.f32 0.0, %v3764
      %3766 = vmatmul.f32.gmra.mxu0 %v3652
      %v3767 = vpop.f32.mrf.mxu0
      %v3768 = vadd.f32 0.0, %v3767
      %3769 = vmatmul.f32.gmra.mxu0 %v3655
      %v3770 = vpop.f32.mrf.mxu0
      %v3771 = vadd.f32 0.0, %v3770
      %3772 = vmatmul.f32.gmra.mxu0 %v3658
      %v3773 = vpop.f32.mrf.mxu0
      %v3774 = vadd.f32 0.0, %v3773
      %3775 = vmatmul.f32.gmra.mxu0 %v3661
      %v3776 = vpop.f32.mrf.mxu0
      %v3777 = vadd.f32 0.0, %v3776
      %3778 = vmatmul.f32.gmra.mxu0 %v3664
      %v3779 = vpop.f32.mrf.mxu0
      %v3780 = vadd.f32 0.0, %v3779
      %3781 = vmatmul.f32.gmra.mxu0 %v3667
      %v3782 = vpop.f32.mrf.mxu0
      %v3783 = vadd.f32 0.0, %v3782
      %3784 = vmatmul.f32.gmra.mxu0 %v3670
      %v3785 = vpop.f32.mrf.mxu0
      %v3786 = vadd.f32 0.0, %v3785
      %3787 = vmatmul.f32.gmra.mxu0 %v3673
      %v3788 = vpop.f32.mrf.mxu0
      %v3789 = vadd.f32 0.0, %v3788
      %3790 = vmatmul.f32.gmra.mxu0 %v3676
      %v3791 = vpop.f32.mrf.mxu0
      %v3792 = vadd.f32 0.0, %v3791
      %3793 = vmatmul.f32.gmra.mxu0 %v3679
      %v3794 = vpop.f32.mrf.mxu0
      %v3795 = vadd.f32 0.0, %v3794
      %3796 = vmatmul.f32.gmra.mxu0 %v3682
      %v3797 = vpop.f32.mrf.mxu0
      %v3798 = vadd.f32 0.0, %v3797
      %3799 = vmatmul.f32.gmra.mxu0 %v3685
      %v3800 = vpop.f32.mrf.mxu0
      %v3801 = vadd.f32 0.0, %v3800
      %3802 = vmatmul.f32.gmra.mxu0 %v3688
      %v3803 = vpop.f32.mrf.mxu0
      %v3804 = vadd.f32 0.0, %v3803
      %3805 = vmatmul.f32.gmra.mxu0 %v3691
      %v3806 = vpop.f32.mrf.mxu0
      %v3807 = vadd.f32 0.0, %v3806
      %3808 = vmatmul.f32.gmra.mxu0 %v3694
      %v3809 = vpop.f32.mrf.mxu0
      %v3810 = vadd.f32 0.0, %v3809
      %3811 = vmatmul.f32.gmra.mxu0 %v3697
      %v3812 = vpop.f32.mrf.mxu0
      %v3813 = vadd.f32 0.0, %v3812
      %3814 = vmatmul.f32.gmra.mxu0 %v3700
      %v3815 = vpop.f32.mrf.mxu0
      %v3816 = vadd.f32 0.0, %v3815
      %3817 = vmatmul.f32.gmra.mxu0 %v3703
      %v3818 = vpop.f32.mrf.mxu0
      %v3819 = vadd.f32 0.0, %v3818
      %3820 = vmatmul.f32.gmra.mxu0 %v3706
      %v3821 = vpop.f32.mrf.mxu0
      %v3822 = vadd.f32 0.0, %v3821
      %3823 = vmatmul.f32.gmra.mxu0 %v3709
      %v3824 = vpop.f32.mrf.mxu0
      %v3825 = vadd.f32 0.0, %v3824
      %3826 = vdwg.mxu0
      %v3827 = vadd.f32 %v3549, %v3732
      %v3828 = vadd.f32 %v3550, %v3735
      %v3829 = vadd.f32 %v3551, %v3738
      %v3830 = vadd.f32 %v3552, %v3741
      %v3831 = vadd.f32 %v3553, %v3744
      %v3832 = vadd.f32 %v3554, %v3747
      %v3833 = vadd.f32 %v3555, %v3750
      %v3834 = vadd.f32 %v3556, %v3753
      %v3835 = vadd.f32 %v3557, %v3756
      %v3836 = vadd.f32 %v3558, %v3759
      %v3837 = vadd.f32 %v3559, %v3762
      %v3838 = vadd.f32 %v3560, %v3765
      %v3839 = vadd.f32 %v3561, %v3768
      %v3840 = vadd.f32 %v3562, %v3771
      %v3841 = vadd.f32 %v3563, %v3774
      %v3842 = vadd.f32 %v3564, %v3777
      %v3843 = vadd.f32 %v3565, %v3780
      %v3844 = vadd.f32 %v3566, %v3783
      %v3845 = vadd.f32 %v3567, %v3786
      %v3846 = vadd.f32 %v3568, %v3789
      %v3847 = vadd.f32 %v3569, %v3792
      %v3848 = vadd.f32 %v3570, %v3795
      %v3849 = vadd.f32 %v3571, %v3798
      %v3850 = vadd.f32 %v3572, %v3801
      %v3851 = vadd.f32 %v3573, %v3804
      %v3852 = vadd.f32 %v3574, %v3807
      %v3853 = vadd.f32 %v3575, %v3810
      %v3854 = vadd.f32 %v3576, %v3813
      %v3855 = vadd.f32 %v3577, %v3816
      %v3856 = vadd.f32 %v3578, %v3819
      %v3857 = vadd.f32 %v3579, %v3822
      %v3858 = vadd.f32 %v3580, %v3825
      %v3859 = vld [vmem:[%s2734 + $0x1] sm:$0xff]
      %v3860 = vld [vmem:[%s2734 + $0x9] sm:$0xff]
      %v3861 = vld [vmem:[%s2734 + $0x19] sm:$0xff]
      %v3862 = vld [vmem:[%s2734 + $0x21] sm:$0xff]
      %v3863 = vld [vmem:[%s2734 + $0x31] sm:$0xff]
      %v3864 = vld [vmem:[%s2734 + $0x39] sm:$0xff]
      %v3865 = vld [vmem:[%s2734 + $0x49] sm:$0xff]
      %v3866 = vld [vmem:[%s2734 + $0x51] sm:$0xff]
      %v3867 = vld [vmem:[%s2734 + $0x61] sm:$0xff]
      %v3868 = vld [vmem:[%s2734 + $0x69] sm:$0xff]
      %v3869 = vld [vmem:[%s2734 + $0x79] sm:$0xff]
      %v3870 = vld [vmem:[%s2734 + $0x81] sm:$0xff]
      %v3871 = vld [vmem:[%s2734 + $0x91] sm:$0xff]
      %v3872 = vld [vmem:[%s2734 + $0x99] sm:$0xff]
      %v3873 = vld [vmem:[%s2734 + $0xa9] sm:$0xff]
      %v3874 = vld [vmem:[%s2734 + $0xb1] sm:$0xff]
      %v3875 = vld [vmem:[%s2734 + $0xc1] sm:$0xff]
      %v3876 = vld [vmem:[%s2734 + $0xc9] sm:$0xff]
      %v3877 = vld [vmem:[%s2734 + $0xd9] sm:$0xff]
      %v3878 = vld [vmem:[%s2734 + $0xe1] sm:$0xff]
      %v3879 = vld [vmem:[%s2734 + $0xf1] sm:$0xff]
      %v3880 = vld [vmem:[%s2734 + $0xf9] sm:$0xff]
      %v3881 = vld [vmem:[%s2734 + $0x109] sm:$0xff]
      %v3882 = vld [vmem:[%s2734 + $0x111] sm:$0xff]
      %v3883 = vld [vmem:[%s2734 + $0x121] sm:$0xff]
      %v3884 = vld [vmem:[%s2734 + $0x129] sm:$0xff]
      %v3885 = vld [vmem:[%s2734 + $0x139] sm:$0xff]
      %v3886 = vld [vmem:[%s2734 + $0x141] sm:$0xff]
      %v3887 = vld [vmem:[%s2734 + $0x151] sm:$0xff]
      %v3888 = vld [vmem:[%s2734 + $0x159] sm:$0xff]
      %v3889 = vld [vmem:[%s2734 + $0x169] sm:$0xff]
      %v3890 = vld [vmem:[%s2734 + $0x171] sm:$0xff]
      %s3891 = scalar_lea.vmem %s3, 16
      %v3892 = vld [vmem:[%s3891] sm:$0xf]
      %v3894 = vsel %vm292, %v3859, 0
      %v3897 = vsel %vm292, %v3860, 0
      %v3900 = vsel %vm292, %v3861, 0
      %v3903 = vsel %vm292, %v3862, 0
      %v3906 = vsel %vm292, %v3863, 0
      %v3909 = vsel %vm292, %v3864, 0
      %v3912 = vsel %vm292, %v3865, 0
      %v3915 = vsel %vm292, %v3866, 0
      %v3918 = vsel %vm292, %v3867, 0
      %v3921 = vsel %vm292, %v3868, 0
      %v3924 = vsel %vm292, %v3869, 0
      %v3927 = vsel %vm292, %v3870, 0
      %v3930 = vsel %vm292, %v3871, 0
      %v3933 = vsel %vm292, %v3872, 0
      %v3936 = vsel %vm292, %v3873, 0
      %v3939 = vsel %vm292, %v3874, 0
      %v3942 = vsel %vm292, %v3875, 0
      %v3945 = vsel %vm292, %v3876, 0
      %v3948 = vsel %vm292, %v3877, 0
      %v3951 = vsel %vm292, %v3878, 0
      %v3954 = vsel %vm292, %v3879, 0
      %v3957 = vsel %vm292, %v3880, 0
      %v3960 = vsel %vm292, %v3881, 0
      %v3963 = vsel %vm292, %v3882, 0
      %v3966 = vsel %vm292, %v3883, 0
      %v3969 = vsel %vm292, %v3884, 0
      %v3972 = vsel %vm292, %v3885, 0
      %v3975 = vsel %vm292, %v3886, 0
      %v3978 = vsel %vm292, %v3887, 0
      %v3981 = vsel %vm292, %v3888, 0
      %v3984 = vsel %vm292, %v3889, 0
      %v3987 = vsel %vm292, %v3890, 0
      %v3990 = vsel %vm389, %v3892, 0
      %3992 = vmatpush.msra.mxu0 0.0
      %3993 = vmatpush.msra.mxu0 0.0
      %3994 = vmatpush.msra.mxu0 0.0
      %3995 = vmatpush.msra.mxu0 0.0
      %3996 = vmatpush.msra.mxu0 0.0
      %3997 = vmatpush.msra.mxu0 0.0
      %3998 = vmatpush.msra.mxu0 0.0
      %3999 = vmatpush.msra.mxu0 0.0
      %4000 = vmatpush.msra.mxu0 0.0
      %4001 = vmatpush.msra.mxu0 0.0
      %4002 = vmatpush.msra.mxu0 0.0
      %4003 = vmatpush.msra.mxu0 0.0
      %4004 = vmatpush.msra.mxu0 0.0
      %4005 = vmatpush.msra.mxu0 0.0
      %4006 = vmatpush.msra.mxu0 0.0
      %4007 = vmatpush.msra.mxu0 %v3990
      %4008 = vmatmul.f32.gmra.mxu0 %v3894
      %v4009 = vpop.f32.mrf.mxu0
      %v4010 = vadd.f32 0.0, %v4009
      %4011 = vmatmul.f32.gmra.mxu0 %v3897
      %v4012 = vpop.f32.mrf.mxu0
      %v4013 = vadd.f32 0.0, %v4012
      %4014 = vmatmul.f32.gmra.mxu0 %v3900
      %v4015 = vpop.f32.mrf.mxu0
      %v4016 = vadd.f32 0.0, %v4015
      %4017 = vmatmul.f32.gmra.mxu0 %v3903
      %v4018 = vpop.f32.mrf.mxu0
      %v4019 = vadd.f32 0.0, %v4018
      %4020 = vmatmul.f32.gmra.mxu0 %v3906
      %v4021 = vpop.f32.mrf.mxu0
      %v4022 = vadd.f32 0.0, %v4021
      %4023 = vmatmul.f32.gmra.mxu0 %v3909
      %v4024 = vpop.f32.mrf.mxu0
      %v4025 = vadd.f32 0.0, %v4024
      %4026 = vmatmul.f32.gmra.mxu0 %v3912
      %v4027 = vpop.f32.mrf.mxu0
      %v4028 = vadd.f32 0.0, %v4027
      %4029 = vmatmul.f32.gmra.mxu0 %v3915
      %v4030 = vpop.f32.mrf.mxu0
      %v4031 = vadd.f32 0.0, %v4030
      %4032 = vmatmul.f32.gmra.mxu0 %v3918
      %v4033 = vpop.f32.mrf.mxu0
      %v4034 = vadd.f32 0.0, %v4033
      %4035 = vmatmul.f32.gmra.mxu0 %v3921
      %v4036 = vpop.f32.mrf.mxu0
      %v4037 = vadd.f32 0.0, %v4036
      %4038 = vmatmul.f32.gmra.mxu0 %v3924
      %v4039 = vpop.f32.mrf.mxu0
      %v4040 = vadd.f32 0.0, %v4039
      %4041 = vmatmul.f32.gmra.mxu0 %v3927
      %v4042 = vpop.f32.mrf.mxu0
      %v4043 = vadd.f32 0.0, %v4042
      %4044 = vmatmul.f32.gmra.mxu0 %v3930
      %v4045 = vpop.f32.mrf.mxu0
      %v4046 = vadd.f32 0.0, %v4045
      %4047 = vmatmul.f32.gmra.mxu0 %v3933
      %v4048 = vpop.f32.mrf.mxu0
      %v4049 = vadd.f32 0.0, %v4048
      %4050 = vmatmul.f32.gmra.mxu0 %v3936
      %v4051 = vpop.f32.mrf.mxu0
      %v4052 = vadd.f32 0.0, %v4051
      %4053 = vmatmul.f32.gmra.mxu0 %v3939
      %v4054 = vpop.f32.mrf.mxu0
      %v4055 = vadd.f32 0.0, %v4054
      %4056 = vmatmul.f32.gmra.mxu0 %v3942
      %v4057 = vpop.f32.mrf.mxu0
      %v4058 = vadd.f32 0.0, %v4057
      %4059 = vmatmul.f32.gmra.mxu0 %v3945
      %v4060 = vpop.f32.mrf.mxu0
      %v4061 = vadd.f32 0.0, %v4060
      %4062 = vmatmul.f32.gmra.mxu0 %v3948
      %v4063 = vpop.f32.mrf.mxu0
      %v4064 = vadd.f32 0.0, %v4063
      %4065 = vmatmul.f32.gmra.mxu0 %v3951
      %v4066 = vpop.f32.mrf.mxu0
      %v4067 = vadd.f32 0.0, %v4066
      %4068 = vmatmul.f32.gmra.mxu0 %v3954
      %v4069 = vpop.f32.mrf.mxu0
      %v4070 = vadd.f32 0.0, %v4069
      %4071 = vmatmul.f32.gmra.mxu0 %v3957
      %v4072 = vpop.f32.mrf.mxu0
      %v4073 = vadd.f32 0.0, %v4072
      %4074 = vmatmul.f32.gmra.mxu0 %v3960
      %v4075 = vpop.f32.mrf.mxu0
      %v4076 = vadd.f32 0.0, %v4075
      %4077 = vmatmul.f32.gmra.mxu0 %v3963
      %v4078 = vpop.f32.mrf.mxu0
      %v4079 = vadd.f32 0.0, %v4078
      %4080 = vmatmul.f32.gmra.mxu0 %v3966
      %v4081 = vpop.f32.mrf.mxu0
      %v4082 = vadd.f32 0.0, %v4081
      %4083 = vmatmul.f32.gmra.mxu0 %v3969
      %v4084 = vpop.f32.mrf.mxu0
      %v4085 = vadd.f32 0.0, %v4084
      %4086 = vmatmul.f32.gmra.mxu0 %v3972
      %v4087 = vpop.f32.mrf.mxu0
      %v4088 = vadd.f32 0.0, %v4087
      %4089 = vmatmul.f32.gmra.mxu0 %v3975
      %v4090 = vpop.f32.mrf.mxu0
      %v4091 = vadd.f32 0.0, %v4090
      %4092 = vmatmul.f32.gmra.mxu0 %v3978
      %v4093 = vpop.f32.mrf.mxu0
      %v4094 = vadd.f32 0.0, %v4093
      %4095 = vmatmul.f32.gmra.mxu0 %v3981
      %v4096 = vpop.f32.mrf.mxu0
      %v4097 = vadd.f32 0.0, %v4096
      %4098 = vmatmul.f32.gmra.mxu0 %v3984
      %v4099 = vpop.f32.mrf.mxu0
      %v4100 = vadd.f32 0.0, %v4099
      %4101 = vmatmul.f32.gmra.mxu0 %v3987
      %v4102 = vpop.f32.mrf.mxu0
      %v4103 = vadd.f32 0.0, %v4102
      %4104 = vdwg.mxu0
      %v4105 = vadd.f32 %v3827, %v4010
      %v4106 = vadd.f32 %v3828, %v4013
      %v4107 = vadd.f32 %v3829, %v4016
      %v4108 = vadd.f32 %v3830, %v4019
      %v4109 = vadd.f32 %v3831, %v4022
      %v4110 = vadd.f32 %v3832, %v4025
      %v4111 = vadd.f32 %v3833, %v4028
      %v4112 = vadd.f32 %v3834, %v4031
      %v4113 = vadd.f32 %v3835, %v4034
      %v4114 = vadd.f32 %v3836, %v4037
      %v4115 = vadd.f32 %v3837, %v4040
      %v4116 = vadd.f32 %v3838, %v4043
      %v4117 = vadd.f32 %v3839, %v4046
      %v4118 = vadd.f32 %v3840, %v4049
      %v4119 = vadd.f32 %v3841, %v4052
      %v4120 = vadd.f32 %v3842, %v4055
      %v4121 = vadd.f32 %v3843, %v4058
      %v4122 = vadd.f32 %v3844, %v4061
      %v4123 = vadd.f32 %v3845, %v4064
      %v4124 = vadd.f32 %v3846, %v4067
      %v4125 = vadd.f32 %v3847, %v4070
      %v4126 = vadd.f32 %v3848, %v4073
      %v4127 = vadd.f32 %v3849, %v4076
      %v4128 = vadd.f32 %v3850, %v4079
      %v4129 = vadd.f32 %v3851, %v4082
      %v4130 = vadd.f32 %v3852, %v4085
      %v4131 = vadd.f32 %v3853, %v4088
      %v4132 = vadd.f32 %v3854, %v4091
      %v4133 = vadd.f32 %v3855, %v4094
      %v4134 = vadd.f32 %v3856, %v4097
      %v4135 = vadd.f32 %v3857, %v4100
      %v4136 = vadd.f32 %v3858, %v4103
      %v4137 = vld [vmem:[%s2734 + $0x2] sm:$0xff]
      %v4138 = vld [vmem:[%s2734 + $0xa] sm:$0xff]
      %v4139 = vld [vmem:[%s2734 + $0x1a] sm:$0xff]
      %v4140 = vld [vmem:[%s2734 + $0x22] sm:$0xff]
      %v4141 = vld [vmem:[%s2734 + $0x32] sm:$0xff]
      %v4142 = vld [vmem:[%s2734 + $0x3a] sm:$0xff]
      %v4143 = vld [vmem:[%s2734 + $0x4a] sm:$0xff]
      %v4144 = vld [vmem:[%s2734 + $0x52] sm:$0xff]
      %v4145 = vld [vmem:[%s2734 + $0x62] sm:$0xff]
      %v4146 = vld [vmem:[%s2734 + $0x6a] sm:$0xff]
      %v4147 = vld [vmem:[%s2734 + $0x7a] sm:$0xff]
      %v4148 = vld [vmem:[%s2734 + $0x82] sm:$0xff]
      %v4149 = vld [vmem:[%s2734 + $0x92] sm:$0xff]
      %v4150 = vld [vmem:[%s2734 + $0x9a] sm:$0xff]
      %v4151 = vld [vmem:[%s2734 + $0xaa] sm:$0xff]
      %v4152 = vld [vmem:[%s2734 + $0xb2] sm:$0xff]
      %v4153 = vld [vmem:[%s2734 + $0xc2] sm:$0xff]
      %v4154 = vld [vmem:[%s2734 + $0xca] sm:$0xff]
      %v4155 = vld [vmem:[%s2734 + $0xda] sm:$0xff]
      %v4156 = vld [vmem:[%s2734 + $0xe2] sm:$0xff]
      %v4157 = vld [vmem:[%s2734 + $0xf2] sm:$0xff]
      %v4158 = vld [vmem:[%s2734 + $0xfa] sm:$0xff]
      %v4159 = vld [vmem:[%s2734 + $0x10a] sm:$0xff]
      %v4160 = vld [vmem:[%s2734 + $0x112] sm:$0xff]
      %v4161 = vld [vmem:[%s2734 + $0x122] sm:$0xff]
      %v4162 = vld [vmem:[%s2734 + $0x12a] sm:$0xff]
      %v4163 = vld [vmem:[%s2734 + $0x13a] sm:$0xff]
      %v4164 = vld [vmem:[%s2734 + $0x142] sm:$0xff]
      %v4165 = vld [vmem:[%s2734 + $0x152] sm:$0xff]
      %v4166 = vld [vmem:[%s2734 + $0x15a] sm:$0xff]
      %v4167 = vld [vmem:[%s2734 + $0x16a] sm:$0xff]
      %v4168 = vld [vmem:[%s2734 + $0x172] sm:$0xff]
      %s4169 = scalar_lea.vmem %s3, 20
      %v4170 = vld [vmem:[%s4169] sm:$0xf]
      %v4172 = vsel %vm292, %v4137, 0
      %v4175 = vsel %vm292, %v4138, 0
      %v4178 = vsel %vm292, %v4139, 0
      %v4181 = vsel %vm292, %v4140, 0
      %v4184 = vsel %vm292, %v4141, 0
      %v4187 = vsel %vm292, %v4142, 0
      %v4190 = vsel %vm292, %v4143, 0
      %v4193 = vsel %vm292, %v4144, 0
      %v4196 = vsel %vm292, %v4145, 0
      %v4199 = vsel %vm292, %v4146, 0
      %v4202 = vsel %vm292, %v4147, 0
      %v4205 = vsel %vm292, %v4148, 0
      %v4208 = vsel %vm292, %v4149, 0
      %v4211 = vsel %vm292, %v4150, 0
      %v4214 = vsel %vm292, %v4151, 0
      %v4217 = vsel %vm292, %v4152, 0
      %v4220 = vsel %vm292, %v4153, 0
      %v4223 = vsel %vm292, %v4154, 0
      %v4226 = vsel %vm292, %v4155, 0
      %v4229 = vsel %vm292, %v4156, 0
      %v4232 = vsel %vm292, %v4157, 0
      %v4235 = vsel %vm292, %v4158, 0
      %v4238 = vsel %vm292, %v4159, 0
      %v4241 = vsel %vm292, %v4160, 0
      %v4244 = vsel %vm292, %v4161, 0
      %v4247 = vsel %vm292, %v4162, 0
      %v4250 = vsel %vm292, %v4163, 0
      %v4253 = vsel %vm292, %v4164, 0
      %v4256 = vsel %vm292, %v4165, 0
      %v4259 = vsel %vm292, %v4166, 0
      %v4262 = vsel %vm292, %v4167, 0
      %v4265 = vsel %vm292, %v4168, 0
      %v4268 = vsel %vm389, %v4170, 0
      %4270 = vmatpush.msra.mxu0 0.0
      %4271 = vmatpush.msra.mxu0 0.0
      %4272 = vmatpush.msra.mxu0 0.0
      %4273 = vmatpush.msra.mxu0 0.0
      %4274 = vmatpush.msra.mxu0 0.0
      %4275 = vmatpush.msra.mxu0 0.0
      %4276 = vmatpush.msra.mxu0 0.0
      %4277 = vmatpush.msra.mxu0 0.0
      %4278 = vmatpush.msra.mxu0 0.0
      %4279 = vmatpush.msra.mxu0 0.0
      %4280 = vmatpush.msra.mxu0 0.0
      %4281 = vmatpush.msra.mxu0 0.0
      %4282 = vmatpush.msra.mxu0 0.0
      %4283 = vmatpush.msra.mxu0 0.0
      %4284 = vmatpush.msra.mxu0 0.0
      %4285 = vmatpush.msra.mxu0 %v4268
      %4286 = vmatmul.f32.gmra.mxu0 %v4172
      %v4287 = vpop.f32.mrf.mxu0
      %v4288 = vadd.f32 0.0, %v4287
      %4289 = vmatmul.f32.gmra.mxu0 %v4175
      %v4290 = vpop.f32.mrf.mxu0
      %v4291 = vadd.f32 0.0, %v4290
      %4292 = vmatmul.f32.gmra.mxu0 %v4178
      %v4293 = vpop.f32.mrf.mxu0
      %v4294 = vadd.f32 0.0, %v4293
      %4295 = vmatmul.f32.gmra.mxu0 %v4181
      %v4296 = vpop.f32.mrf.mxu0
      %v4297 = vadd.f32 0.0, %v4296
      %4298 = vmatmul.f32.gmra.mxu0 %v4184
      %v4299 = vpop.f32.mrf.mxu0
      %v4300 = vadd.f32 0.0, %v4299
      %4301 = vmatmul.f32.gmra.mxu0 %v4187
      %v4302 = vpop.f32.mrf.mxu0
      %v4303 = vadd.f32 0.0, %v4302
      %4304 = vmatmul.f32.gmra.mxu0 %v4190
      %v4305 = vpop.f32.mrf.mxu0
      %v4306 = vadd.f32 0.0, %v4305
      %4307 = vmatmul.f32.gmra.mxu0 %v4193
      %v4308 = vpop.f32.mrf.mxu0
      %v4309 = vadd.f32 0.0, %v4308
      %4310 = vmatmul.f32.gmra.mxu0 %v4196
      %v4311 = vpop.f32.mrf.mxu0
      %v4312 = vadd.f32 0.0, %v4311
      %4313 = vmatmul.f32.gmra.mxu0 %v4199
      %v4314 = vpop.f32.mrf.mxu0
      %v4315 = vadd.f32 0.0, %v4314
      %4316 = vmatmul.f32.gmra.mxu0 %v4202
      %v4317 = vpop.f32.mrf.mxu0
      %v4318 = vadd.f32 0.0, %v4317
      %4319 = vmatmul.f32.gmra.mxu0 %v4205
      %v4320 = vpop.f32.mrf.mxu0
      %v4321 = vadd.f32 0.0, %v4320
      %4322 = vmatmul.f32.gmra.mxu0 %v4208
      %v4323 = vpop.f32.mrf.mxu0
      %v4324 = vadd.f32 0.0, %v4323
      %4325 = vmatmul.f32.gmra.mxu0 %v4211
      %v4326 = vpop.f32.mrf.mxu0
      %v4327 = vadd.f32 0.0, %v4326
      %4328 = vmatmul.f32.gmra.mxu0 %v4214
      %v4329 = vpop.f32.mrf.mxu0
      %v4330 = vadd.f32 0.0, %v4329
      %4331 = vmatmul.f32.gmra.mxu0 %v4217
      %v4332 = vpop.f32.mrf.mxu0
      %v4333 = vadd.f32 0.0, %v4332
      %4334 = vmatmul.f32.gmra.mxu0 %v4220
      %v4335 = vpop.f32.mrf.mxu0
      %v4336 = vadd.f32 0.0, %v4335
      %4337 = vmatmul.f32.gmra.mxu0 %v4223
      %v4338 = vpop.f32.mrf.mxu0
      %v4339 = vadd.f32 0.0, %v4338
      %4340 = vmatmul.f32.gmra.mxu0 %v4226
      %v4341 = vpop.f32.mrf.mxu0
      %v4342 = vadd.f32 0.0, %v4341
      %4343 = vmatmul.f32.gmra.mxu0 %v4229
      %v4344 = vpop.f32.mrf.mxu0
      %v4345 = vadd.f32 0.0, %v4344
      %4346 = vmatmul.f32.gmra.mxu0 %v4232
      %v4347 = vpop.f32.mrf.mxu0
      %v4348 = vadd.f32 0.0, %v4347
      %4349 = vmatmul.f32.gmra.mxu0 %v4235
      %v4350 = vpop.f32.mrf.mxu0
      %v4351 = vadd.f32 0.0, %v4350
      %4352 = vmatmul.f32.gmra.mxu0 %v4238
      %v4353 = vpop.f32.mrf.mxu0
      %v4354 = vadd.f32 0.0, %v4353
      %4355 = vmatmul.f32.gmra.mxu0 %v4241
      %v4356 = vpop.f32.mrf.mxu0
      %v4357 = vadd.f32 0.0, %v4356
      %4358 = vmatmul.f32.gmra.mxu0 %v4244
      %v4359 = vpop.f32.mrf.mxu0
      %v4360 = vadd.f32 0.0, %v4359
      %4361 = vmatmul.f32.gmra.mxu0 %v4247
      %v4362 = vpop.f32.mrf.mxu0
      %v4363 = vadd.f32 0.0, %v4362
      %4364 = vmatmul.f32.gmra.mxu0 %v4250
      %v4365 = vpop.f32.mrf.mxu0
      %v4366 = vadd.f32 0.0, %v4365
      %4367 = vmatmul.f32.gmra.mxu0 %v4253
      %v4368 = vpop.f32.mrf.mxu0
      %v4369 = vadd.f32 0.0, %v4368
      %4370 = vmatmul.f32.gmra.mxu0 %v4256
      %v4371 = vpop.f32.mrf.mxu0
      %v4372 = vadd.f32 0.0, %v4371
      %4373 = vmatmul.f32.gmra.mxu0 %v4259
      %v4374 = vpop.f32.mrf.mxu0
      %v4375 = vadd.f32 0.0, %v4374
      %4376 = vmatmul.f32.gmra.mxu0 %v4262
      %v4377 = vpop.f32.mrf.mxu0
      %v4378 = vadd.f32 0.0, %v4377
      %4379 = vmatmul.f32.gmra.mxu0 %v4265
      %v4380 = vpop.f32.mrf.mxu0
      %v4381 = vadd.f32 0.0, %v4380
      %4382 = vdwg.mxu0
      %v4383 = vadd.f32 %v4105, %v4288
      %v4384 = vadd.f32 %v4106, %v4291
      %v4385 = vadd.f32 %v4107, %v4294
      %v4386 = vadd.f32 %v4108, %v4297
      %v4387 = vadd.f32 %v4109, %v4300
      %v4388 = vadd.f32 %v4110, %v4303
      %v4389 = vadd.f32 %v4111, %v4306
      %v4390 = vadd.f32 %v4112, %v4309
      %v4391 = vadd.f32 %v4113, %v4312
      %v4392 = vadd.f32 %v4114, %v4315
      %v4393 = vadd.f32 %v4115, %v4318
      %v4394 = vadd.f32 %v4116, %v4321
      %v4395 = vadd.f32 %v4117, %v4324
      %v4396 = vadd.f32 %v4118, %v4327
      %v4397 = vadd.f32 %v4119, %v4330
      %v4398 = vadd.f32 %v4120, %v4333
      %v4399 = vadd.f32 %v4121, %v4336
      %v4400 = vadd.f32 %v4122, %v4339
      %v4401 = vadd.f32 %v4123, %v4342
      %v4402 = vadd.f32 %v4124, %v4345
      %v4403 = vadd.f32 %v4125, %v4348
      %v4404 = vadd.f32 %v4126, %v4351
      %v4405 = vadd.f32 %v4127, %v4354
      %v4406 = vadd.f32 %v4128, %v4357
      %v4407 = vadd.f32 %v4129, %v4360
      %v4408 = vadd.f32 %v4130, %v4363
      %v4409 = vadd.f32 %v4131, %v4366
      %v4410 = vadd.f32 %v4132, %v4369
      %v4411 = vadd.f32 %v4133, %v4372
      %v4412 = vadd.f32 %v4134, %v4375
      %v4413 = vadd.f32 %v4135, %v4378
      %v4414 = vadd.f32 %v4136, %v4381
      %s4415 = scalar_lea.vmem [#allocation2], 48
      %v4416 = vld [vmem:[%s4415] sm:$0xff]
      %v4417 = vld [vmem:[%s4415 + $0x8] sm:$0xff]
      %v4418 = vld [vmem:[%s4415 + $0x18] sm:$0xff]
      %v4419 = vld [vmem:[%s4415 + $0x20] sm:$0xff]
      %v4420 = vld [vmem:[%s4415 + $0x30] sm:$0xff]
      %v4421 = vld [vmem:[%s4415 + $0x38] sm:$0xff]
      %v4422 = vld [vmem:[%s4415 + $0x48] sm:$0xff]
      %v4423 = vld [vmem:[%s4415 + $0x50] sm:$0xff]
      %v4424 = vld [vmem:[%s4415 + $0x60] sm:$0xff]
      %v4425 = vld [vmem:[%s4415 + $0x68] sm:$0xff]
      %v4426 = vld [vmem:[%s4415 + $0x78] sm:$0xff]
      %v4427 = vld [vmem:[%s4415 + $0x80] sm:$0xff]
      %v4428 = vld [vmem:[%s4415 + $0x90] sm:$0xff]
      %v4429 = vld [vmem:[%s4415 + $0x98] sm:$0xff]
      %v4430 = vld [vmem:[%s4415 + $0xa8] sm:$0xff]
      %v4431 = vld [vmem:[%s4415 + $0xb0] sm:$0xff]
      %v4432 = vld [vmem:[%s4415 + $0xc0] sm:$0xff]
      %v4433 = vld [vmem:[%s4415 + $0xc8] sm:$0xff]
      %v4434 = vld [vmem:[%s4415 + $0xd8] sm:$0xff]
      %v4435 = vld [vmem:[%s4415 + $0xe0] sm:$0xff]
      %v4436 = vld [vmem:[%s4415 + $0xf0] sm:$0xff]
      %v4437 = vld [vmem:[%s4415 + $0xf8] sm:$0xff]
      %v4438 = vld [vmem:[%s4415 + $0x108] sm:$0xff]
      %v4439 = vld [vmem:[%s4415 + $0x110] sm:$0xff]
      %v4440 = vld [vmem:[%s4415 + $0x120] sm:$0xff]
      %v4441 = vld [vmem:[%s4415 + $0x128] sm:$0xff]
      %v4442 = vld [vmem:[%s4415 + $0x138] sm:$0xff]
      %v4443 = vld [vmem:[%s4415 + $0x140] sm:$0xff]
      %v4444 = vld [vmem:[%s4415 + $0x150] sm:$0xff]
      %v4445 = vld [vmem:[%s4415 + $0x158] sm:$0xff]
      %v4446 = vld [vmem:[%s4415 + $0x168] sm:$0xff]
      %v4447 = vld [vmem:[%s4415 + $0x170] sm:$0xff]
      %s4448 = scalar_lea.vmem %s3, 24
      %v4449 = vld [vmem:[%s4448] sm:$0xf]
      %v4451 = vsel %vm292, %v4416, 0
      %v4454 = vsel %vm292, %v4417, 0
      %v4457 = vsel %vm292, %v4418, 0
      %v4460 = vsel %vm292, %v4419, 0
      %v4463 = vsel %vm292, %v4420, 0
      %v4466 = vsel %vm292, %v4421, 0
      %v4469 = vsel %vm292, %v4422, 0
      %v4472 = vsel %vm292, %v4423, 0
      %v4475 = vsel %vm292, %v4424, 0
      %v4478 = vsel %vm292, %v4425, 0
      %v4481 = vsel %vm292, %v4426, 0
      %v4484 = vsel %vm292, %v4427, 0
      %v4487 = vsel %vm292, %v4428, 0
      %v4490 = vsel %vm292, %v4429, 0
      %v4493 = vsel %vm292, %v4430, 0
      %v4496 = vsel %vm292, %v4431, 0
      %v4499 = vsel %vm292, %v4432, 0
      %v4502 = vsel %vm292, %v4433, 0
      %v4505 = vsel %vm292, %v4434, 0
      %v4508 = vsel %vm292, %v4435, 0
      %v4511 = vsel %vm292, %v4436, 0
      %v4514 = vsel %vm292, %v4437, 0
      %v4517 = vsel %vm292, %v4438, 0
      %v4520 = vsel %vm292, %v4439, 0
      %v4523 = vsel %vm292, %v4440, 0
      %v4526 = vsel %vm292, %v4441, 0
      %v4529 = vsel %vm292, %v4442, 0
      %v4532 = vsel %vm292, %v4443, 0
      %v4535 = vsel %vm292, %v4444, 0
      %v4538 = vsel %vm292, %v4445, 0
      %v4541 = vsel %vm292, %v4446, 0
      %v4544 = vsel %vm292, %v4447, 0
      %v4547 = vsel %vm389, %v4449, 0
      %4549 = vmatpush.msra.mxu0 0.0
      %4550 = vmatpush.msra.mxu0 0.0
      %4551 = vmatpush.msra.mxu0 0.0
      %4552 = vmatpush.msra.mxu0 0.0
      %4553 = vmatpush.msra.mxu0 0.0
      %4554 = vmatpush.msra.mxu0 0.0
      %4555 = vmatpush.msra.mxu0 0.0
      %4556 = vmatpush.msra.mxu0 0.0
      %4557 = vmatpush.msra.mxu0 0.0
      %4558 = vmatpush.msra.mxu0 0.0
      %4559 = vmatpush.msra.mxu0 0.0
      %4560 = vmatpush.msra.mxu0 0.0
      %4561 = vmatpush.msra.mxu0 0.0
      %4562 = vmatpush.msra.mxu0 0.0
      %4563 = vmatpush.msra.mxu0 0.0
      %4564 = vmatpush.msra.mxu0 %v4547
      %4565 = vmatmul.f32.gmra.mxu0 %v4451
      %v4566 = vpop.f32.mrf.mxu0
      %v4567 = vadd.f32 0.0, %v4566
      %4568 = vmatmul.f32.gmra.mxu0 %v4454
      %v4569 = vpop.f32.mrf.mxu0
      %v4570 = vadd.f32 0.0, %v4569
      %4571 = vmatmul.f32.gmra.mxu0 %v4457
      %v4572 = vpop.f32.mrf.mxu0
      %v4573 = vadd.f32 0.0, %v4572
      %4574 = vmatmul.f32.gmra.mxu0 %v4460
      %v4575 = vpop.f32.mrf.mxu0
      %v4576 = vadd.f32 0.0, %v4575
      %4577 = vmatmul.f32.gmra.mxu0 %v4463
      %v4578 = vpop.f32.mrf.mxu0
      %v4579 = vadd.f32 0.0, %v4578
      %4580 = vmatmul.f32.gmra.mxu0 %v4466
      %v4581 = vpop.f32.mrf.mxu0
      %v4582 = vadd.f32 0.0, %v4581
      %4583 = vmatmul.f32.gmra.mxu0 %v4469
      %v4584 = vpop.f32.mrf.mxu0
      %v4585 = vadd.f32 0.0, %v4584
      %4586 = vmatmul.f32.gmra.mxu0 %v4472
      %v4587 = vpop.f32.mrf.mxu0
      %v4588 = vadd.f32 0.0, %v4587
      %4589 = vmatmul.f32.gmra.mxu0 %v4475
      %v4590 = vpop.f32.mrf.mxu0
      %v4591 = vadd.f32 0.0, %v4590
      %4592 = vmatmul.f32.gmra.mxu0 %v4478
      %v4593 = vpop.f32.mrf.mxu0
      %v4594 = vadd.f32 0.0, %v4593
      %4595 = vmatmul.f32.gmra.mxu0 %v4481
      %v4596 = vpop.f32.mrf.mxu0
      %v4597 = vadd.f32 0.0, %v4596
      %4598 = vmatmul.f32.gmra.mxu0 %v4484
      %v4599 = vpop.f32.mrf.mxu0
      %v4600 = vadd.f32 0.0, %v4599
      %4601 = vmatmul.f32.gmra.mxu0 %v4487
      %v4602 = vpop.f32.mrf.mxu0
      %v4603 = vadd.f32 0.0, %v4602
      %4604 = vmatmul.f32.gmra.mxu0 %v4490
      %v4605 = vpop.f32.mrf.mxu0
      %v4606 = vadd.f32 0.0, %v4605
      %4607 = vmatmul.f32.gmra.mxu0 %v4493
      %v4608 = vpop.f32.mrf.mxu0
      %v4609 = vadd.f32 0.0, %v4608
      %4610 = vmatmul.f32.gmra.mxu0 %v4496
      %v4611 = vpop.f32.mrf.mxu0
      %v4612 = vadd.f32 0.0, %v4611
      %4613 = vmatmul.f32.gmra.mxu0 %v4499
      %v4614 = vpop.f32.mrf.mxu0
      %v4615 = vadd.f32 0.0, %v4614
      %4616 = vmatmul.f32.gmra.mxu0 %v4502
      %v4617 = vpop.f32.mrf.mxu0
      %v4618 = vadd.f32 0.0, %v4617
      %4619 = vmatmul.f32.gmra.mxu0 %v4505
      %v4620 = vpop.f32.mrf.mxu0
      %v4621 = vadd.f32 0.0, %v4620
      %4622 = vmatmul.f32.gmra.mxu0 %v4508
      %v4623 = vpop.f32.mrf.mxu0
      %v4624 = vadd.f32 0.0, %v4623
      %4625 = vmatmul.f32.gmra.mxu0 %v4511
      %v4626 = vpop.f32.mrf.mxu0
      %v4627 = vadd.f32 0.0, %v4626
      %4628 = vmatmul.f32.gmra.mxu0 %v4514
      %v4629 = vpop.f32.mrf.mxu0
      %v4630 = vadd.f32 0.0, %v4629
      %4631 = vmatmul.f32.gmra.mxu0 %v4517
      %v4632 = vpop.f32.mrf.mxu0
      %v4633 = vadd.f32 0.0, %v4632
      %4634 = vmatmul.f32.gmra.mxu0 %v4520
      %v4635 = vpop.f32.mrf.mxu0
      %v4636 = vadd.f32 0.0, %v4635
      %4637 = vmatmul.f32.gmra.mxu0 %v4523
      %v4638 = vpop.f32.mrf.mxu0
      %v4639 = vadd.f32 0.0, %v4638
      %4640 = vmatmul.f32.gmra.mxu0 %v4526
      %v4641 = vpop.f32.mrf.mxu0
      %v4642 = vadd.f32 0.0, %v4641
      %4643 = vmatmul.f32.gmra.mxu0 %v4529
      %v4644 = vpop.f32.mrf.mxu0
      %v4645 = vadd.f32 0.0, %v4644
      %4646 = vmatmul.f32.gmra.mxu0 %v4532
      %v4647 = vpop.f32.mrf.mxu0
      %v4648 = vadd.f32 0.0, %v4647
      %4649 = vmatmul.f32.gmra.mxu0 %v4535
      %v4650 = vpop.f32.mrf.mxu0
      %v4651 = vadd.f32 0.0, %v4650
      %4652 = vmatmul.f32.gmra.mxu0 %v4538
      %v4653 = vpop.f32.mrf.mxu0
      %v4654 = vadd.f32 0.0, %v4653
      %4655 = vmatmul.f32.gmra.mxu0 %v4541
      %v4656 = vpop.f32.mrf.mxu0
      %v4657 = vadd.f32 0.0, %v4656
      %4658 = vmatmul.f32.gmra.mxu0 %v4544
      %v4659 = vpop.f32.mrf.mxu0
      %v4660 = vadd.f32 0.0, %v4659
      %4661 = vdwg.mxu0
      %v4662 = vadd.f32 %v4383, %v4567
      %v4663 = vadd.f32 %v4384, %v4570
      %v4664 = vadd.f32 %v4385, %v4573
      %v4665 = vadd.f32 %v4386, %v4576
      %v4666 = vadd.f32 %v4387, %v4579
      %v4667 = vadd.f32 %v4388, %v4582
      %v4668 = vadd.f32 %v4389, %v4585
      %v4669 = vadd.f32 %v4390, %v4588
      %v4670 = vadd.f32 %v4391, %v4591
      %v4671 = vadd.f32 %v4392, %v4594
      %v4672 = vadd.f32 %v4393, %v4597
      %v4673 = vadd.f32 %v4394, %v4600
      %v4674 = vadd.f32 %v4395, %v4603
      %v4675 = vadd.f32 %v4396, %v4606
      %v4676 = vadd.f32 %v4397, %v4609
      %v4677 = vadd.f32 %v4398, %v4612
      %v4678 = vadd.f32 %v4399, %v4615
      %v4679 = vadd.f32 %v4400, %v4618
      %v4680 = vadd.f32 %v4401, %v4621
      %v4681 = vadd.f32 %v4402, %v4624
      %v4682 = vadd.f32 %v4403, %v4627
      %v4683 = vadd.f32 %v4404, %v4630
      %v4684 = vadd.f32 %v4405, %v4633
      %v4685 = vadd.f32 %v4406, %v4636
      %v4686 = vadd.f32 %v4407, %v4639
      %v4687 = vadd.f32 %v4408, %v4642
      %v4688 = vadd.f32 %v4409, %v4645
      %v4689 = vadd.f32 %v4410, %v4648
      %v4690 = vadd.f32 %v4411, %v4651
      %v4691 = vadd.f32 %v4412, %v4654
      %v4692 = vadd.f32 %v4413, %v4657
      %v4693 = vadd.f32 %v4414, %v4660
      %v4694 = vld [vmem:[%s4415 + $0x1] sm:$0xff]
      %v4695 = vld [vmem:[%s4415 + $0x9] sm:$0xff]
      %v4696 = vld [vmem:[%s4415 + $0x19] sm:$0xff]
      %v4697 = vld [vmem:[%s4415 + $0x21] sm:$0xff]
      %v4698 = vld [vmem:[%s4415 + $0x31] sm:$0xff]
      %v4699 = vld [vmem:[%s4415 + $0x39] sm:$0xff]
      %v4700 = vld [vmem:[%s4415 + $0x49] sm:$0xff]
      %v4701 = vld [vmem:[%s4415 + $0x51] sm:$0xff]
      %v4702 = vld [vmem:[%s4415 + $0x61] sm:$0xff]
      %v4703 = vld [vmem:[%s4415 + $0x69] sm:$0xff]
      %v4704 = vld [vmem:[%s4415 + $0x79] sm:$0xff]
      %v4705 = vld [vmem:[%s4415 + $0x81] sm:$0xff]
      %v4706 = vld [vmem:[%s4415 + $0x91] sm:$0xff]
      %v4707 = vld [vmem:[%s4415 + $0x99] sm:$0xff]
      %v4708 = vld [vmem:[%s4415 + $0xa9] sm:$0xff]
      %v4709 = vld [vmem:[%s4415 + $0xb1] sm:$0xff]
      %v4710 = vld [vmem:[%s4415 + $0xc1] sm:$0xff]
      %v4711 = vld [vmem:[%s4415 + $0xc9] sm:$0xff]
      %v4712 = vld [vmem:[%s4415 + $0xd9] sm:$0xff]
      %v4713 = vld [vmem:[%s4415 + $0xe1] sm:$0xff]
      %v4714 = vld [vmem:[%s4415 + $0xf1] sm:$0xff]
      %v4715 = vld [vmem:[%s4415 + $0xf9] sm:$0xff]
      %v4716 = vld [vmem:[%s4415 + $0x109] sm:$0xff]
      %v4717 = vld [vmem:[%s4415 + $0x111] sm:$0xff]
      %v4718 = vld [vmem:[%s4415 + $0x121] sm:$0xff]
      %v4719 = vld [vmem:[%s4415 + $0x129] sm:$0xff]
      %v4720 = vld [vmem:[%s4415 + $0x139] sm:$0xff]
      %v4721 = vld [vmem:[%s4415 + $0x141] sm:$0xff]
      %v4722 = vld [vmem:[%s4415 + $0x151] sm:$0xff]
      %v4723 = vld [vmem:[%s4415 + $0x159] sm:$0xff]
      %v4724 = vld [vmem:[%s4415 + $0x169] sm:$0xff]
      %v4725 = vld [vmem:[%s4415 + $0x171] sm:$0xff]
      %s4726 = scalar_lea.vmem %s3, 28
      %v4727 = vld [vmem:[%s4726] sm:$0xf]
      %v4729 = vsel %vm292, %v4694, 0
      %v4732 = vsel %vm292, %v4695, 0
      %v4735 = vsel %vm292, %v4696, 0
      %v4738 = vsel %vm292, %v4697, 0
      %v4741 = vsel %vm292, %v4698, 0
      %v4744 = vsel %vm292, %v4699, 0
      %v4747 = vsel %vm292, %v4700, 0
      %v4750 = vsel %vm292, %v4701, 0
      %v4753 = vsel %vm292, %v4702, 0
      %v4756 = vsel %vm292, %v4703, 0
      %v4759 = vsel %vm292, %v4704, 0
      %v4762 = vsel %vm292, %v4705, 0
      %v4765 = vsel %vm292, %v4706, 0
      %v4768 = vsel %vm292, %v4707, 0
      %v4771 = vsel %vm292, %v4708, 0
      %v4774 = vsel %vm292, %v4709, 0
      %v4777 = vsel %vm292, %v4710, 0
      %v4780 = vsel %vm292, %v4711, 0
      %v4783 = vsel %vm292, %v4712, 0
      %v4786 = vsel %vm292, %v4713, 0
      %v4789 = vsel %vm292, %v4714, 0
      %v4792 = vsel %vm292, %v4715, 0
      %v4795 = vsel %vm292, %v4716, 0
      %v4798 = vsel %vm292, %v4717, 0
      %v4801 = vsel %vm292, %v4718, 0
      %v4804 = vsel %vm292, %v4719, 0
      %v4807 = vsel %vm292, %v4720, 0
      %v4810 = vsel %vm292, %v4721, 0
      %v4813 = vsel %vm292, %v4722, 0
      %v4816 = vsel %vm292, %v4723, 0
      %v4819 = vsel %vm292, %v4724, 0
      %v4822 = vsel %vm292, %v4725, 0
      %v4825 = vsel %vm389, %v4727, 0
      %4827 = vmatpush.msra.mxu0 0.0
      %4828 = vmatpush.msra.mxu0 0.0
      %4829 = vmatpush.msra.mxu0 0.0
      %4830 = vmatpush.msra.mxu0 0.0
      %4831 = vmatpush.msra.mxu0 0.0
      %4832 = vmatpush.msra.mxu0 0.0
      %4833 = vmatpush.msra.mxu0 0.0
      %4834 = vmatpush.msra.mxu0 0.0
      %4835 = vmatpush.msra.mxu0 0.0
      %4836 = vmatpush.msra.mxu0 0.0
      %4837 = vmatpush.msra.mxu0 0.0
      %4838 = vmatpush.msra.mxu0 0.0
      %4839 = vmatpush.msra.mxu0 0.0
      %4840 = vmatpush.msra.mxu0 0.0
      %4841 = vmatpush.msra.mxu0 0.0
      %4842 = vmatpush.msra.mxu0 %v4825
      %4843 = vmatmul.f32.gmra.mxu0 %v4729
      %v4844 = vpop.f32.mrf.mxu0
      %v4845 = vadd.f32 0.0, %v4844
      %4846 = vmatmul.f32.gmra.mxu0 %v4732
      %v4847 = vpop.f32.mrf.mxu0
      %v4848 = vadd.f32 0.0, %v4847
      %4849 = vmatmul.f32.gmra.mxu0 %v4735
      %v4850 = vpop.f32.mrf.mxu0
      %v4851 = vadd.f32 0.0, %v4850
      %4852 = vmatmul.f32.gmra.mxu0 %v4738
      %v4853 = vpop.f32.mrf.mxu0
      %v4854 = vadd.f32 0.0, %v4853
      %4855 = vmatmul.f32.gmra.mxu0 %v4741
      %v4856 = vpop.f32.mrf.mxu0
      %v4857 = vadd.f32 0.0, %v4856
      %4858 = vmatmul.f32.gmra.mxu0 %v4744
      %v4859 = vpop.f32.mrf.mxu0
      %v4860 = vadd.f32 0.0, %v4859
      %4861 = vmatmul.f32.gmra.mxu0 %v4747
      %v4862 = vpop.f32.mrf.mxu0
      %v4863 = vadd.f32 0.0, %v4862
      %4864 = vmatmul.f32.gmra.mxu0 %v4750
      %v4865 = vpop.f32.mrf.mxu0
      %v4866 = vadd.f32 0.0, %v4865
      %4867 = vmatmul.f32.gmra.mxu0 %v4753
      %v4868 = vpop.f32.mrf.mxu0
      %v4869 = vadd.f32 0.0, %v4868
      %4870 = vmatmul.f32.gmra.mxu0 %v4756
      %v4871 = vpop.f32.mrf.mxu0
      %v4872 = vadd.f32 0.0, %v4871
      %4873 = vmatmul.f32.gmra.mxu0 %v4759
      %v4874 = vpop.f32.mrf.mxu0
      %v4875 = vadd.f32 0.0, %v4874
      %4876 = vmatmul.f32.gmra.mxu0 %v4762
      %v4877 = vpop.f32.mrf.mxu0
      %v4878 = vadd.f32 0.0, %v4877
      %4879 = vmatmul.f32.gmra.mxu0 %v4765
      %v4880 = vpop.f32.mrf.mxu0
      %v4881 = vadd.f32 0.0, %v4880
      %4882 = vmatmul.f32.gmra.mxu0 %v4768
      %v4883 = vpop.f32.mrf.mxu0
      %v4884 = vadd.f32 0.0, %v4883
      %4885 = vmatmul.f32.gmra.mxu0 %v4771
      %v4886 = vpop.f32.mrf.mxu0
      %v4887 = vadd.f32 0.0, %v4886
      %4888 = vmatmul.f32.gmra.mxu0 %v4774
      %v4889 = vpop.f32.mrf.mxu0
      %v4890 = vadd.f32 0.0, %v4889
      %4891 = vmatmul.f32.gmra.mxu0 %v4777
      %v4892 = vpop.f32.mrf.mxu0
      %v4893 = vadd.f32 0.0, %v4892
      %4894 = vmatmul.f32.gmra.mxu0 %v4780
      %v4895 = vpop.f32.mrf.mxu0
      %v4896 = vadd.f32 0.0, %v4895
      %4897 = vmatmul.f32.gmra.mxu0 %v4783
      %v4898 = vpop.f32.mrf.mxu0
      %v4899 = vadd.f32 0.0, %v4898
      %4900 = vmatmul.f32.gmra.mxu0 %v4786
      %v4901 = vpop.f32.mrf.mxu0
      %v4902 = vadd.f32 0.0, %v4901
      %4903 = vmatmul.f32.gmra.mxu0 %v4789
      %v4904 = vpop.f32.mrf.mxu0
      %v4905 = vadd.f32 0.0, %v4904
      %4906 = vmatmul.f32.gmra.mxu0 %v4792
      %v4907 = vpop.f32.mrf.mxu0
      %v4908 = vadd.f32 0.0, %v4907
      %4909 = vmatmul.f32.gmra.mxu0 %v4795
      %v4910 = vpop.f32.mrf.mxu0
      %v4911 = vadd.f32 0.0, %v4910
      %4912 = vmatmul.f32.gmra.mxu0 %v4798
      %v4913 = vpop.f32.mrf.mxu0
      %v4914 = vadd.f32 0.0, %v4913
      %4915 = vmatmul.f32.gmra.mxu0 %v4801
      %v4916 = vpop.f32.mrf.mxu0
      %v4917 = vadd.f32 0.0, %v4916
      %4918 = vmatmul.f32.gmra.mxu0 %v4804
      %v4919 = vpop.f32.mrf.mxu0
      %v4920 = vadd.f32 0.0, %v4919
      %4921 = vmatmul.f32.gmra.mxu0 %v4807
      %v4922 = vpop.f32.mrf.mxu0
      %v4923 = vadd.f32 0.0, %v4922
      %4924 = vmatmul.f32.gmra.mxu0 %v4810
      %v4925 = vpop.f32.mrf.mxu0
      %v4926 = vadd.f32 0.0, %v4925
      %4927 = vmatmul.f32.gmra.mxu0 %v4813
      %v4928 = vpop.f32.mrf.mxu0
      %v4929 = vadd.f32 0.0, %v4928
      %4930 = vmatmul.f32.gmra.mxu0 %v4816
      %v4931 = vpop.f32.mrf.mxu0
      %v4932 = vadd.f32 0.0, %v4931
      %4933 = vmatmul.f32.gmra.mxu0 %v4819
      %v4934 = vpop.f32.mrf.mxu0
      %v4935 = vadd.f32 0.0, %v4934
      %4936 = vmatmul.f32.gmra.mxu0 %v4822
      %v4937 = vpop.f32.mrf.mxu0
      %v4938 = vadd.f32 0.0, %v4937
      %4939 = vdwg.mxu0
      %v4940 = vadd.f32 %v4662, %v4845
      %v4941 = vadd.f32 %v4663, %v4848
      %v4942 = vadd.f32 %v4664, %v4851
      %v4943 = vadd.f32 %v4665, %v4854
      %v4944 = vadd.f32 %v4666, %v4857
      %v4945 = vadd.f32 %v4667, %v4860
      %v4946 = vadd.f32 %v4668, %v4863
      %v4947 = vadd.f32 %v4669, %v4866
      %v4948 = vadd.f32 %v4670, %v4869
      %v4949 = vadd.f32 %v4671, %v4872
      %v4950 = vadd.f32 %v4672, %v4875
      %v4951 = vadd.f32 %v4673, %v4878
      %v4952 = vadd.f32 %v4674, %v4881
      %v4953 = vadd.f32 %v4675, %v4884
      %v4954 = vadd.f32 %v4676, %v4887
      %v4955 = vadd.f32 %v4677, %v4890
      %v4956 = vadd.f32 %v4678, %v4893
      %v4957 = vadd.f32 %v4679, %v4896
      %v4958 = vadd.f32 %v4680, %v4899
      %v4959 = vadd.f32 %v4681, %v4902
      %v4960 = vadd.f32 %v4682, %v4905
      %v4961 = vadd.f32 %v4683, %v4908
      %v4962 = vadd.f32 %v4684, %v4911
      %v4963 = vadd.f32 %v4685, %v4914
      %v4964 = vadd.f32 %v4686, %v4917
      %v4965 = vadd.f32 %v4687, %v4920
      %v4966 = vadd.f32 %v4688, %v4923
      %v4967 = vadd.f32 %v4689, %v4926
      %v4968 = vadd.f32 %v4690, %v4929
      %v4969 = vadd.f32 %v4691, %v4932
      %v4970 = vadd.f32 %v4692, %v4935
      %v4971 = vadd.f32 %v4693, %v4938
      %v4972 = vld [vmem:[%s4415 + $0x2] sm:$0xff]
      %v4973 = vld [vmem:[%s4415 + $0xa] sm:$0xff]
      %v4974 = vld [vmem:[%s4415 + $0x1a] sm:$0xff]
      %v4975 = vld [vmem:[%s4415 + $0x22] sm:$0xff]
      %v4976 = vld [vmem:[%s4415 + $0x32] sm:$0xff]
      %v4977 = vld [vmem:[%s4415 + $0x3a] sm:$0xff]
      %v4978 = vld [vmem:[%s4415 + $0x4a] sm:$0xff]
      %v4979 = vld [vmem:[%s4415 + $0x52] sm:$0xff]
      %v4980 = vld [vmem:[%s4415 + $0x62] sm:$0xff]
      %v4981 = vld [vmem:[%s4415 + $0x6a] sm:$0xff]
      %v4982 = vld [vmem:[%s4415 + $0x7a] sm:$0xff]
      %v4983 = vld [vmem:[%s4415 + $0x82] sm:$0xff]
      %v4984 = vld [vmem:[%s4415 + $0x92] sm:$0xff]
      %v4985 = vld [vmem:[%s4415 + $0x9a] sm:$0xff]
      %v4986 = vld [vmem:[%s4415 + $0xaa] sm:$0xff]
      %v4987 = vld [vmem:[%s4415 + $0xb2] sm:$0xff]
      %v4988 = vld [vmem:[%s4415 + $0xc2] sm:$0xff]
      %v4989 = vld [vmem:[%s4415 + $0xca] sm:$0xff]
      %v4990 = vld [vmem:[%s4415 + $0xda] sm:$0xff]
      %v4991 = vld [vmem:[%s4415 + $0xe2] sm:$0xff]
      %v4992 = vld [vmem:[%s4415 + $0xf2] sm:$0xff]
      %v4993 = vld [vmem:[%s4415 + $0xfa] sm:$0xff]
      %v4994 = vld [vmem:[%s4415 + $0x10a] sm:$0xff]
      %v4995 = vld [vmem:[%s4415 + $0x112] sm:$0xff]
      %v4996 = vld [vmem:[%s4415 + $0x122] sm:$0xff]
      %v4997 = vld [vmem:[%s4415 + $0x12a] sm:$0xff]
      %v4998 = vld [vmem:[%s4415 + $0x13a] sm:$0xff]
      %v4999 = vld [vmem:[%s4415 + $0x142] sm:$0xff]
      %v5000 = vld [vmem:[%s4415 + $0x152] sm:$0xff]
      %v5001 = vld [vmem:[%s4415 + $0x15a] sm:$0xff]
      %v5002 = vld [vmem:[%s4415 + $0x16a] sm:$0xff]
      %v5003 = vld [vmem:[%s4415 + $0x172] sm:$0xff]
      %s5004 = scalar_lea.vmem %s3, 32
      %v5005 = vld [vmem:[%s5004] sm:$0xf]
      %v5007 = vsel %vm292, %v4972, 0
      %v5010 = vsel %vm292, %v4973, 0
      %v5013 = vsel %vm292, %v4974, 0
      %v5016 = vsel %vm292, %v4975, 0
      %v5019 = vsel %vm292, %v4976, 0
      %v5022 = vsel %vm292, %v4977, 0
      %v5025 = vsel %vm292, %v4978, 0
      %v5028 = vsel %vm292, %v4979, 0
      %v5031 = vsel %vm292, %v4980, 0
      %v5034 = vsel %vm292, %v4981, 0
      %v5037 = vsel %vm292, %v4982, 0
      %v5040 = vsel %vm292, %v4983, 0
      %v5043 = vsel %vm292, %v4984, 0
      %v5046 = vsel %vm292, %v4985, 0
      %v5049 = vsel %vm292, %v4986, 0
      %v5052 = vsel %vm292, %v4987, 0
      %v5055 = vsel %vm292, %v4988, 0
      %v5058 = vsel %vm292, %v4989, 0
      %v5061 = vsel %vm292, %v4990, 0
      %v5064 = vsel %vm292, %v4991, 0
      %v5067 = vsel %vm292, %v4992, 0
      %v5070 = vsel %vm292, %v4993, 0
      %v5073 = vsel %vm292, %v4994, 0
      %v5076 = vsel %vm292, %v4995, 0
      %v5079 = vsel %vm292, %v4996, 0
      %v5082 = vsel %vm292, %v4997, 0
      %v5085 = vsel %vm292, %v4998, 0
      %v5088 = vsel %vm292, %v4999, 0
      %v5091 = vsel %vm292, %v5000, 0
      %v5094 = vsel %vm292, %v5001, 0
      %v5097 = vsel %vm292, %v5002, 0
      %v5100 = vsel %vm292, %v5003, 0
      %v5103 = vsel %vm389, %v5005, 0
      %5105 = vmatpush.msra.mxu0 0.0
      %5106 = vmatpush.msra.mxu0 0.0
      %5107 = vmatpush.msra.mxu0 0.0
      %5108 = vmatpush.msra.mxu0 0.0
      %5109 = vmatpush.msra.mxu0 0.0
      %5110 = vmatpush.msra.mxu0 0.0
      %5111 = vmatpush.msra.mxu0 0.0
      %5112 = vmatpush.msra.mxu0 0.0
      %5113 = vmatpush.msra.mxu0 0.0
      %5114 = vmatpush.msra.mxu0 0.0
      %5115 = vmatpush.msra.mxu0 0.0
      %5116 = vmatpush.msra.mxu0 0.0
      %5117 = vmatpush.msra.mxu0 0.0
      %5118 = vmatpush.msra.mxu0 0.0
      %5119 = vmatpush.msra.mxu0 0.0
      %5120 = vmatpush.msra.mxu0 %v5103
      %5121 = vmatmul.f32.gmra.mxu0 %v5007
      %v5122 = vpop.f32.mrf.mxu0
      %v5123 = vadd.f32 0.0, %v5122
      %5124 = vmatmul.f32.gmra.mxu0 %v5010
      %v5125 = vpop.f32.mrf.mxu0
      %v5126 = vadd.f32 0.0, %v5125
      %5127 = vmatmul.f32.gmra.mxu0 %v5013
      %v5128 = vpop.f32.mrf.mxu0
      %v5129 = vadd.f32 0.0, %v5128
      %5130 = vmatmul.f32.gmra.mxu0 %v5016
      %v5131 = vpop.f32.mrf.mxu0
      %v5132 = vadd.f32 0.0, %v5131
      %5133 = vmatmul.f32.gmra.mxu0 %v5019
      %v5134 = vpop.f32.mrf.mxu0
      %v5135 = vadd.f32 0.0, %v5134
      %5136 = vmatmul.f32.gmra.mxu0 %v5022
      %v5137 = vpop.f32.mrf.mxu0
      %v5138 = vadd.f32 0.0, %v5137
      %5139 = vmatmul.f32.gmra.mxu0 %v5025
      %v5140 = vpop.f32.mrf.mxu0
      %v5141 = vadd.f32 0.0, %v5140
      %5142 = vmatmul.f32.gmra.mxu0 %v5028
      %v5143 = vpop.f32.mrf.mxu0
      %v5144 = vadd.f32 0.0, %v5143
      %5145 = vmatmul.f32.gmra.mxu0 %v5031
      %v5146 = vpop.f32.mrf.mxu0
      %v5147 = vadd.f32 0.0, %v5146
      %5148 = vmatmul.f32.gmra.mxu0 %v5034
      %v5149 = vpop.f32.mrf.mxu0
      %v5150 = vadd.f32 0.0, %v5149
      %5151 = vmatmul.f32.gmra.mxu0 %v5037
      %v5152 = vpop.f32.mrf.mxu0
      %v5153 = vadd.f32 0.0, %v5152
      %5154 = vmatmul.f32.gmra.mxu0 %v5040
      %v5155 = vpop.f32.mrf.mxu0
      %v5156 = vadd.f32 0.0, %v5155
      %5157 = vmatmul.f32.gmra.mxu0 %v5043
      %v5158 = vpop.f32.mrf.mxu0
      %v5159 = vadd.f32 0.0, %v5158
      %5160 = vmatmul.f32.gmra.mxu0 %v5046
      %v5161 = vpop.f32.mrf.mxu0
      %v5162 = vadd.f32 0.0, %v5161
      %5163 = vmatmul.f32.gmra.mxu0 %v5049
      %v5164 = vpop.f32.mrf.mxu0
      %v5165 = vadd.f32 0.0, %v5164
      %5166 = vmatmul.f32.gmra.mxu0 %v5052
      %v5167 = vpop.f32.mrf.mxu0
      %v5168 = vadd.f32 0.0, %v5167
      %5169 = vmatmul.f32.gmra.mxu0 %v5055
      %v5170 = vpop.f32.mrf.mxu0
      %v5171 = vadd.f32 0.0, %v5170
      %5172 = vmatmul.f32.gmra.mxu0 %v5058
      %v5173 = vpop.f32.mrf.mxu0
      %v5174 = vadd.f32 0.0, %v5173
      %5175 = vmatmul.f32.gmra.mxu0 %v5061
      %v5176 = vpop.f32.mrf.mxu0
      %v5177 = vadd.f32 0.0, %v5176
      %5178 = vmatmul.f32.gmra.mxu0 %v5064
      %v5179 = vpop.f32.mrf.mxu0
      %v5180 = vadd.f32 0.0, %v5179
      %5181 = vmatmul.f32.gmra.mxu0 %v5067
      %v5182 = vpop.f32.mrf.mxu0
      %v5183 = vadd.f32 0.0, %v5182
      %5184 = vmatmul.f32.gmra.mxu0 %v5070
      %v5185 = vpop.f32.mrf.mxu0
      %v5186 = vadd.f32 0.0, %v5185
      %5187 = vmatmul.f32.gmra.mxu0 %v5073
      %v5188 = vpop.f32.mrf.mxu0
      %v5189 = vadd.f32 0.0, %v5188
      %5190 = vmatmul.f32.gmra.mxu0 %v5076
      %v5191 = vpop.f32.mrf.mxu0
      %v5192 = vadd.f32 0.0, %v5191
      %5193 = vmatmul.f32.gmra.mxu0 %v5079
      %v5194 = vpop.f32.mrf.mxu0
      %v5195 = vadd.f32 0.0, %v5194
      %5196 = vmatmul.f32.gmra.mxu0 %v5082
      %v5197 = vpop.f32.mrf.mxu0
      %v5198 = vadd.f32 0.0, %v5197
      %5199 = vmatmul.f32.gmra.mxu0 %v5085
      %v5200 = vpop.f32.mrf.mxu0
      %v5201 = vadd.f32 0.0, %v5200
      %5202 = vmatmul.f32.gmra.mxu0 %v5088
      %v5203 = vpop.f32.mrf.mxu0
      %v5204 = vadd.f32 0.0, %v5203
      %5205 = vmatmul.f32.gmra.mxu0 %v5091
      %v5206 = vpop.f32.mrf.mxu0
      %v5207 = vadd.f32 0.0, %v5206
      %5208 = vmatmul.f32.gmra.mxu0 %v5094
      %v5209 = vpop.f32.mrf.mxu0
      %v5210 = vadd.f32 0.0, %v5209
      %5211 = vmatmul.f32.gmra.mxu0 %v5097
      %v5212 = vpop.f32.mrf.mxu0
      %v5213 = vadd.f32 0.0, %v5212
      %5214 = vmatmul.f32.gmra.mxu0 %v5100
      %v5215 = vpop.f32.mrf.mxu0
      %v5216 = vadd.f32 0.0, %v5215
      %5217 = vdwg.mxu0
      %v5218 = vadd.f32 %v4940, %v5123
      %v5219 = vadd.f32 %v4941, %v5126
      %v5220 = vadd.f32 %v4942, %v5129
      %v5221 = vadd.f32 %v4943, %v5132
      %v5222 = vadd.f32 %v4944, %v5135
      %v5223 = vadd.f32 %v4945, %v5138
      %v5224 = vadd.f32 %v4946, %v5141
      %v5225 = vadd.f32 %v4947, %v5144
      %v5226 = vadd.f32 %v4948, %v5147
      %v5227 = vadd.f32 %v4949, %v5150
      %v5228 = vadd.f32 %v4950, %v5153
      %v5229 = vadd.f32 %v4951, %v5156
      %v5230 = vadd.f32 %v4952, %v5159
      %v5231 = vadd.f32 %v4953, %v5162
      %v5232 = vadd.f32 %v4954, %v5165
      %v5233 = vadd.f32 %v4955, %v5168
      %v5234 = vadd.f32 %v4956, %v5171
      %v5235 = vadd.f32 %v4957, %v5174
      %v5236 = vadd.f32 %v4958, %v5177
      %v5237 = vadd.f32 %v4959, %v5180
      %v5238 = vadd.f32 %v4960, %v5183
      %v5239 = vadd.f32 %v4961, %v5186
      %v5240 = vadd.f32 %v4962, %v5189
      %v5241 = vadd.f32 %v4963, %v5192
      %v5242 = vadd.f32 %v4964, %v5195
      %v5243 = vadd.f32 %v4965, %v5198
      %v5244 = vadd.f32 %v4966, %v5201
      %v5245 = vadd.f32 %v4967, %v5204
      %v5246 = vadd.f32 %v4968, %v5207
      %v5247 = vadd.f32 %v4969, %v5210
      %v5248 = vadd.f32 %v4970, %v5213
      %v5249 = vadd.f32 %v4971, %v5216
      %v5250 = vld [vmem:[%s4] sm:$0x1]
      %v5252 = vperm.slane %v5250, 0
      %v5254 = vadd.f32 %v5218, %v5252
      %v5255 = vadd.f32 %v5219, %v5252
      %v5256 = vadd.f32 %v5220, %v5252
      %v5257 = vadd.f32 %v5221, %v5252
      %v5258 = vadd.f32 %v5222, %v5252
      %v5259 = vadd.f32 %v5223, %v5252
      %v5260 = vadd.f32 %v5224, %v5252
      %v5261 = vadd.f32 %v5225, %v5252
      %v5262 = vadd.f32 %v5226, %v5252
      %v5263 = vadd.f32 %v5227, %v5252
      %v5264 = vadd.f32 %v5228, %v5252
      %v5265 = vadd.f32 %v5229, %v5252
      %v5266 = vadd.f32 %v5230, %v5252
      %v5267 = vadd.f32 %v5231, %v5252
      %v5268 = vadd.f32 %v5232, %v5252
      %v5269 = vadd.f32 %v5233, %v5252
      %v5270 = vadd.f32 %v5234, %v5252
      %v5271 = vadd.f32 %v5235, %v5252
      %v5272 = vadd.f32 %v5236, %v5252
      %v5273 = vadd.f32 %v5237, %v5252
      %v5274 = vadd.f32 %v5238, %v5252
      %v5275 = vadd.f32 %v5239, %v5252
      %v5276 = vadd.f32 %v5240, %v5252
      %v5277 = vadd.f32 %v5241, %v5252
      %v5278 = vadd.f32 %v5242, %v5252
      %v5279 = vadd.f32 %v5243, %v5252
      %v5280 = vadd.f32 %v5244, %v5252
      %v5281 = vadd.f32 %v5245, %v5252
      %v5282 = vadd.f32 %v5246, %v5252
      %v5283 = vadd.f32 %v5247, %v5252
      %v5284 = vadd.f32 %v5248, %v5252
      %v5285 = vadd.f32 %v5249, %v5252
      %v5286 = vld [vmem:[%s996 + $0x1] sm:$0xff]
      %v5287 = vld [vmem:[%s996 + $0x9] sm:$0xff]
      %v5288 = vld [vmem:[%s996 + $0x19] sm:$0xff]
      %v5289 = vld [vmem:[%s996 + $0x21] sm:$0xff]
      %v5290 = vld [vmem:[%s996 + $0x31] sm:$0xff]
      %v5291 = vld [vmem:[%s996 + $0x39] sm:$0xff]
      %v5292 = vld [vmem:[%s996 + $0x49] sm:$0xff]
      %v5293 = vld [vmem:[%s996 + $0x51] sm:$0xff]
      %v5294 = vld [vmem:[%s996 + $0x61] sm:$0xff]
      %v5295 = vld [vmem:[%s996 + $0x69] sm:$0xff]
      %v5296 = vld [vmem:[%s996 + $0x79] sm:$0xff]
      %v5297 = vld [vmem:[%s996 + $0x81] sm:$0xff]
      %v5298 = vld [vmem:[%s996 + $0x91] sm:$0xff]
      %v5299 = vld [vmem:[%s996 + $0x99] sm:$0xff]
      %v5300 = vld [vmem:[%s996 + $0xa9] sm:$0xff]
      %v5301 = vld [vmem:[%s996 + $0xb1] sm:$0xff]
      %v5302 = vld [vmem:[%s996 + $0xc1] sm:$0xff]
      %v5303 = vld [vmem:[%s996 + $0xc9] sm:$0xff]
      %v5304 = vld [vmem:[%s996 + $0xd9] sm:$0xff]
      %v5305 = vld [vmem:[%s996 + $0xe1] sm:$0xff]
      %v5306 = vld [vmem:[%s996 + $0xf1] sm:$0xff]
      %v5307 = vld [vmem:[%s996 + $0xf9] sm:$0xff]
      %v5308 = vld [vmem:[%s996 + $0x109] sm:$0xff]
      %v5309 = vld [vmem:[%s996 + $0x111] sm:$0xff]
      %v5310 = vld [vmem:[%s996 + $0x121] sm:$0xff]
      %v5311 = vld [vmem:[%s996 + $0x129] sm:$0xff]
      %v5312 = vld [vmem:[%s996 + $0x139] sm:$0xff]
      %v5313 = vld [vmem:[%s996 + $0x141] sm:$0xff]
      %v5314 = vld [vmem:[%s996 + $0x151] sm:$0xff]
      %v5315 = vld [vmem:[%s996 + $0x159] sm:$0xff]
      %v5316 = vld [vmem:[%s996 + $0x169] sm:$0xff]
      %v5317 = vld [vmem:[%s996 + $0x171] sm:$0xff]
      %v5318 = vadd.f32 %v5254, %v5286
      %v5319 = vadd.f32 %v5255, %v5287
      %v5320 = vadd.f32 %v5256, %v5288
      %v5321 = vadd.f32 %v5257, %v5289
      %v5322 = vadd.f32 %v5258, %v5290
      %v5323 = vadd.f32 %v5259, %v5291
      %v5324 = vadd.f32 %v5260, %v5292
      %v5325 = vadd.f32 %v5261, %v5293
      %v5326 = vadd.f32 %v5262, %v5294
      %v5327 = vadd.f32 %v5263, %v5295
      %v5328 = vadd.f32 %v5264, %v5296
      %v5329 = vadd.f32 %v5265, %v5297
      %v5330 = vadd.f32 %v5266, %v5298
      %v5331 = vadd.f32 %v5267, %v5299
      %v5332 = vadd.f32 %v5268, %v5300
      %v5333 = vadd.f32 %v5269, %v5301
      %v5334 = vadd.f32 %v5270, %v5302
      %v5335 = vadd.f32 %v5271, %v5303
      %v5336 = vadd.f32 %v5272, %v5304
      %v5337 = vadd.f32 %v5273, %v5305
      %v5338 = vadd.f32 %v5274, %v5306
      %v5339 = vadd.f32 %v5275, %v5307
      %v5340 = vadd.f32 %v5276, %v5308
      %v5341 = vadd.f32 %v5277, %v5309
      %v5342 = vadd.f32 %v5278, %v5310
      %v5343 = vadd.f32 %v5279, %v5311
      %v5344 = vadd.f32 %v5280, %v5312
      %v5345 = vadd.f32 %v5281, %v5313
      %v5346 = vadd.f32 %v5282, %v5314
      %v5347 = vadd.f32 %v5283, %v5315
      %v5348 = vadd.f32 %v5284, %v5316
      %v5349 = vadd.f32 %v5285, %v5317
      %v5350 = vmax.f32 %v5318, 0.0
      %v5351 = vmax.f32 %v5319, 0.0
      %v5352 = vmax.f32 %v5320, 0.0
      %v5353 = vmax.f32 %v5321, 0.0
      %v5354 = vmax.f32 %v5322, 0.0
      %v5355 = vmax.f32 %v5323, 0.0
      %v5356 = vmax.f32 %v5324, 0.0
      %v5357 = vmax.f32 %v5325, 0.0
      %v5358 = vmax.f32 %v5326, 0.0
      %v5359 = vmax.f32 %v5327, 0.0
      %v5360 = vmax.f32 %v5328, 0.0
      %v5361 = vmax.f32 %v5329, 0.0
      %v5362 = vmax.f32 %v5330, 0.0
      %v5363 = vmax.f32 %v5331, 0.0
      %v5364 = vmax.f32 %v5332, 0.0
      %v5365 = vmax.f32 %v5333, 0.0
      %v5366 = vmax.f32 %v5334, 0.0
      %v5367 = vmax.f32 %v5335, 0.0
      %v5368 = vmax.f32 %v5336, 0.0
      %v5369 = vmax.f32 %v5337, 0.0
      %v5370 = vmax.f32 %v5338, 0.0
      %v5371 = vmax.f32 %v5339, 0.0
      %v5372 = vmax.f32 %v5340, 0.0
      %v5373 = vmax.f32 %v5341, 0.0
      %v5374 = vmax.f32 %v5342, 0.0
      %v5375 = vmax.f32 %v5343, 0.0
      %v5376 = vmax.f32 %v5344, 0.0
      %v5377 = vmax.f32 %v5345, 0.0
      %v5378 = vmax.f32 %v5346, 0.0
      %v5379 = vmax.f32 %v5347, 0.0
      %v5380 = vmax.f32 %v5348, 0.0
      %v5381 = vmax.f32 %v5349, 0.0
      %5382 = vst.msk [vmem:[%s224] sm:$0xff] %vm292, %v5350
      %5383 = vst.msk [vmem:[%s224 + $0x8] sm:$0xff] %vm292, %v5351
      %5384 = vst.msk [vmem:[%s224 + $0x10] sm:$0xff] %vm292, %v5352
      %5385 = vst.msk [vmem:[%s224 + $0x18] sm:$0xff] %vm292, %v5353
      %5386 = vst.msk [vmem:[%s224 + $0x20] sm:$0xff] %vm292, %v5354
      %5387 = vst.msk [vmem:[%s224 + $0x28] sm:$0xff] %vm292, %v5355
      %5388 = vst.msk [vmem:[%s224 + $0x30] sm:$0xff] %vm292, %v5356
      %5389 = vst.msk [vmem:[%s224 + $0x38] sm:$0xff] %vm292, %v5357
      %5390 = vst.msk [vmem:[%s224 + $0x40] sm:$0xff] %vm292, %v5358
      %5391 = vst.msk [vmem:[%s224 + $0x48] sm:$0xff] %vm292, %v5359
      %5392 = vst.msk [vmem:[%s224 + $0x50] sm:$0xff] %vm292, %v5360
      %5393 = vst.msk [vmem:[%s224 + $0x58] sm:$0xff] %vm292, %v5361
      %5394 = vst.msk [vmem:[%s224 + $0x60] sm:$0xff] %vm292, %v5362
      %5395 = vst.msk [vmem:[%s224 + $0x68] sm:$0xff] %vm292, %v5363
      %5396 = vst.msk [vmem:[%s224 + $0x70] sm:$0xff] %vm292, %v5364
      %5397 = vst.msk [vmem:[%s224 + $0x78] sm:$0xff] %vm292, %v5365
      %5398 = vst.msk [vmem:[%s224 + $0x80] sm:$0xff] %vm292, %v5366
      %5399 = vst.msk [vmem:[%s224 + $0x88] sm:$0xff] %vm292, %v5367
      %5400 = vst.msk [vmem:[%s224 + $0x90] sm:$0xff] %vm292, %v5368
      %5401 = vst.msk [vmem:[%s224 + $0x98] sm:$0xff] %vm292, %v5369
      %5402 = vst.msk [vmem:[%s224 + $0xa0] sm:$0xff] %vm292, %v5370
      %5403 = vst.msk [vmem:[%s224 + $0xa8] sm:$0xff] %vm292, %v5371
      %5404 = vst.msk [vmem:[%s224 + $0xb0] sm:$0xff] %vm292, %v5372
      %5405 = vst.msk [vmem:[%s224 + $0xb8] sm:$0xff] %vm292, %v5373
      %5406 = vst.msk [vmem:[%s224 + $0xc0] sm:$0xff] %vm292, %v5374
      %5407 = vst.msk [vmem:[%s224 + $0xc8] sm:$0xff] %vm292, %v5375
      %5408 = vst.msk [vmem:[%s224 + $0xd0] sm:$0xff] %vm292, %v5376
      %5409 = vst.msk [vmem:[%s224 + $0xd8] sm:$0xff] %vm292, %v5377
      %5410 = vst.msk [vmem:[%s224 + $0xe0] sm:$0xff] %vm292, %v5378
      %5411 = vst.msk [vmem:[%s224 + $0xe8] sm:$0xff] %vm292, %v5379
      %5412 = vst.msk [vmem:[%s224 + $0xf0] sm:$0xff] %vm292, %v5380
      %5413 = vst.msk [vmem:[%s224 + $0xf8] sm:$0xff] %vm292, %v5381
      %p5414 = scmp.lt.s32.totalorder %s16, 1
      %s5415 = scalar_select %p5414, %s16, 1
      %s5416 = smul.addr %s5415, 32
      %s5417 = smul.addr %s5416, 8
      %s5418 = scalar_lea.vmem %s5, %s5417
      // Predicated region
      $region41: #{tpu_custom_call.1} parent=39 // pred_check
        %p5419 = pneg %p144
      $region42: #{tpu_custom_call.1} parent=39 // pred_check_branch
        %5421 = sbr.rel (%p5419) target = $region44
      $region43: #{tpu_custom_call.1} parent=39 // pred_region
        _
      $region44: #{tpu_custom_call.1} parent=39 // pred_fallthru
        _
    $region40: #{tpu_custom_call.1} parent=5 // pred_fallthru
      _
    %p5422 = scmp.le.s32.totalorder 2, %s11
    // Predicated region
    $region45: #{tpu_custom_call.1} parent=5 // pred_check
      %p5423 = pneg %p5422
    $region46: #{tpu_custom_call.1} parent=5 // pred_check_branch
      %5425 = sbr.rel (%p5423) target = $region48
    $region47: #{tpu_custom_call.1} parent=5 // pred_region
      %s5426 = ssub.s32 %s11, 2
      // Predicated region
      $region49: #{tpu_custom_call.1} parent=47 // pred_check
        %p5427 = pneg %p150
      $region50: #{tpu_custom_call.1} parent=47 // pred_check_branch
        %5429 = sbr.rel (%p5427) target = $region52
      $region51: #{tpu_custom_call.1} parent=47 // pred_region
        %p5430 = scmp.lt.s32.totalorder %s17, 1
        %s5431 = scalar_select %p5430, %s17, 1
        %s5432 = smul.addr %s5431, 32
        %s5433 = smul.addr %s5432, 8
        %s5434 = scalar_lea.vmem %s5, %s5433
      $region52: #{tpu_custom_call.1} parent=47 // pred_fallthru
        _
    $region48: #{tpu_custom_call.1} parent=5 // pred_fallthru
      _
  $region6: #{tpu_custom_call.1} parent=0 // loop_footer
    %s15 = sadd.s32 1, %s11
  $region7: #{tpu_custom_call.1} parent=0 // loop_footer_branch
    %10 = sbr.rel target = $region3
  $region8: #{tpu_custom_call.1} parent=0 // loop_exit
    _

</llo_original>
